<compile_context>
chip_gen: v5e
topology: v5e:2x2
jax: 0.10.0
libtpu: 0.0.40
codegen_flags: <defaults>
</compile_context>

<pallas_src>
import functools

import jax
import jax.numpy as jnp
import numpy as np
from jax.experimental import pallas as pl
from jax.experimental.pallas import tpu as pltpu


_CIN_PAD = 8            # RGB (3) padded to 8 input channels for the first conv
_C1, _C2, _C3 = 16, 32, 64


def _round_up(v, m):
    return (v + m - 1) // m * m


# ------------------------------ in-kernel helpers ------------------------------

def _conv3x3_relu(xflat, w, b, Hc, Wpc):
    """3x3 conv (padding=1) + bias + ReLU as ONE K=9*Cin MXU matmul.

    xflat: ((Hc+3)*Wpc, Cin) f32; flat row p = py*Wpc + px of the zero-padded
           image (valid pixel (y, x) at row (y+1)*Wpc + (x+1); every other row
           and column, including the trailing slack row, is zero).
    w:     (9*Cin, Cout) bf16, rows ordered (kh, kw, cin).
    b:     (1, Cout) f32.
    Returns (Hc*Wpc, Cout) f32; row q = y*Wpc + x.  Columns x in [Wc, Wpc) hold
    finite junk that is never selected by the pooling gather downstream.
    """
    L = Hc * Wpc
    cols = []
    for kh in range(3):
        for kw in range(3):
            off = kh * Wpc + kw        # kh*Wpc is sublane-aligned (Wpc % 8 == 0)
            cols.append(xflat[off:off + L, :])
    x9 = jnp.concatenate(cols, axis=1).astype(jnp.bfloat16)     # (L, 9*Cin)
    acc = jnp.dot(x9, w, preferred_element_type=jnp.float32)
    return jnp.maximum(acc + b, 0.0)


def _pool2x2_scatter(acc, g, Hc, Wc, Wpc, dst_ref, dst_stride, dst_off):
    """Fused 2x2 max-pool + scatter into the next stage's flat buffer.

    acc: (Hc*Wpc, C) conv+ReLU output.  Per pooled row p: vertical max of image
    rows 2p / 2p+1 (two ALIGNED value slices -> views), a tiny exact 0/1 gather
    matmul g (2*Wh, Wpc) pulls even/odd columns (O(W^2) memory — replaces the
    old O(H^2*W^2) whole-image selection matmul), horizontal max, then a direct
    store at dst_ref row p*dst_stride + dst_off.
    """
    Hh, Wh = Hc // 2, Wc // 2
    for p in range(Hh):
        top = acc[2 * p * Wpc:(2 * p + 1) * Wpc, :]
        bot = acc[(2 * p + 1) * Wpc:(2 * p + 2) * Wpc, :]
        vm = jnp.maximum(top, bot)                                # (Wpc, C)
        eo = jnp.dot(g, vm, preferred_element_type=jnp.float32)   # (2*Wh, C)
        row = jnp.maximum(eo[:Wh, :], eo[Wh:, :])                 # (Wh, C)
        dst_ref[pl.ds(p * dst_stride + dst_off, Wh), :] = row


def _convnet_kernel(x_ref,
                    w1_ref, b1_ref, w2_ref, b2_ref, w3_ref, b3_ref,
                    g1_ref, g2_ref, g3_ref,
                    d1_ref, db1_ref, d2_ref, db2_ref, d3_ref, db3_ref,
                    out_ref,
                    pad2_ref, pad3_ref, dense_ref,
                    *, H, W, Wp0, Wp1, Wp2):
    """Whole ConvNet forward for one image; every intermediate stays in VMEM."""
    H2, W2, H4, W4 = H // 2, W // 2, H // 4, W // 4

    # -------- stage 1: conv(8->16)+ReLU, pool -> padded-flat stage-2 buffer ----
    a = _conv3x3_relu(x_ref[0], w1_ref[...], b1_ref[...], H, Wp0)
    pad2_ref[...] = jnp.zeros(pad2_ref.shape, jnp.float32)   # pads & slack = 0
    _pool2x2_scatter(a, g1_ref[...], H, W, Wp0, pad2_ref, Wp1, Wp1 + 1)

    # -------- stage 2: conv(16->32)+ReLU, pool -> padded-flat stage-3 buffer ---
    a = _conv3x3_relu(pad2_ref[...], w2_ref[...], b2_ref[...], H2, Wp1)
    pad3_ref[...] = jnp.zeros(pad3_ref.shape, jnp.float32)
    _pool2x2_scatter(a, g2_ref[...], H2, W2, Wp1, pad3_ref, Wp2, Wp2 + 1)

    # -------- stage 3: conv(32->64)+ReLU, pool -> dense (H/8*W/8, 64) rows -----
    a = _conv3x3_relu(pad3_ref[...], w3_ref[...], b3_ref[...], H4, Wp2)
    _pool2x2_scatter(a, g3_ref[...], H4, W4, Wp2, dense_ref, W // 8, 0)

    # ---- decoder: 3 x ConvTranspose2d(k=2,s=2) as lane-dense pyramid matmuls --
    r = dense_ref[...]
    r = jnp.dot(r.astype(jnp.bfloat16), d1_ref[...],
                preferred_element_type=jnp.float32) + db1_ref[...]
    r = jnp.maximum(r, 0.0)
    r = jnp.dot(r.astype(jnp.bfloat16), d2_ref[...],
                preferred_element_type=jnp.float32) + db2_ref[...]
    r = jnp.maximum(r, 0.0)
    r = jnp.dot(r.astype(jnp.bfloat16), d3_ref[...],
                preferred_element_type=jnp.float32) + db3_ref[...]
    out_ref[0] = r.astype(out_ref.dtype)


# -------------------------- host-side (compile-time) prep ----------------------

def _pool_gather_matrix(W, Wp):
    """(2*Wh, Wp) 0/1 matrix: rows [0,Wh) pick even columns 2j, rows [Wh,2Wh)
    pick odd columns 2j+1 of a width-Wp flat row (only columns < W are read)."""
    Wh = W // 2
    g = np.zeros((2 * Wh, Wp), np.float32)
    for j in range(Wh):
        g[j, 2 * j] = 1.0
        g[Wh + j, 2 * j + 1] = 1.0
    return jnp.asarray(g)


# ----------------------------------- forward -----------------------------------

def convnet_forward(params, x_nchw):
    """x_nchw: (N, 3, H, W) float32 -> (N, num_classes, H, W). H, W % 8 == 0."""
    N, cin, H, W = x_nchw.shape
    assert cin == 3 and H % 8 == 0 and W % 8 == 0
    num_classes = params["dec3"][0].shape[1]

    # 8-aligned flat row strides per encoder stage (sublane-aligned tap shifts).
    Wp0 = _round_up(W + 2, 8)
    Wp1 = _round_up(W // 2 + 2, 8)
    Wp2 = _round_up(W // 4 + 2, 8)
    M3 = (H // 8) * (W // 8)
    out_cols = 64 * num_classes

    # --- one-time weight reshaping (tiny, outside the kernel) ------------------
    def conv_w(w, pad_to=None):
        # (Cout, Cin, 3, 3) -> (9*Cin', Cout), rows ordered (kh, kw, cin), bf16
        w = jnp.transpose(w, (2, 3, 1, 0))
        if pad_to is not None:
            w = jnp.pad(w, ((0, 0), (0, 0), (0, pad_to - w.shape[2]), (0, 0)))
        return w.reshape(-1, w.shape[-1]).astype(jnp.bfloat16)

    def deconv_w(w):
        # (Cin, Cout, 2, 2) -> (Cin, 4*Cout), cols ordered (kh, kw, cout)
        return jnp.transpose(w, (0, 2, 3, 1)).reshape(w.shape[0], -1)

    w1 = conv_w(params["enc1"][0], pad_to=_CIN_PAD)
    w2 = conv_w(params["enc2"][0])
    w3 = conv_w(params["enc3"][0])
    b1 = params["enc1"][1].reshape(1, -1)
    b2 = params["enc2"][1].reshape(1, -1)
    b3 = params["enc3"][1].reshape(1, -1)

    # decoder: block-diagonal weights -> each stage is one lane-dense matmul on
    # the (deep-pixel x sub-pixel pyramid) layout.
    d1 = deconv_w(params["dec1"][0]).astype(jnp.bfloat16)                      # (64, 128)
    d2 = jnp.kron(jnp.eye(4, dtype=jnp.float32),
                  deconv_w(params["dec2"][0])).astype(jnp.bfloat16)            # (128, 256)
    d3 = jnp.kron(jnp.eye(16, dtype=jnp.float32),
                  deconv_w(params["dec3"][0])).astype(jnp.bfloat16)            # (256, 64*NC)
    db1 = jnp.tile(params["dec1"][1], 4).reshape(1, -1)
    db2 = jnp.tile(params["dec2"][1], 16).reshape(1, -1)
    db3 = jnp.tile(params["dec3"][1], 64).reshape(1, -1)

    # tiny O(W^2) pooling gather matrices (exact, kept in f32)
    g1 = _pool_gather_matrix(W, Wp0)
    g2 = _pool_gather_matrix(W // 2, Wp1)
    g3 = _pool_gather_matrix(W // 4, Wp2)

    # --- input: NCHW -> zero-padded flat NHWC rows (lanes = channels) ----------
    x = jnp.transpose(x_nchw, (0, 2, 3, 1))
    x = jnp.pad(x, ((0, 0), (1, 2), (1, Wp0 - W - 1), (0, _CIN_PAD - cin)))
    x = x.reshape(N, (H + 3) * Wp0, _CIN_PAD)

    operands = (x, w1, b1, w2, b2, w3, b3, g1, g2, g3,
                d1, db1, d2, db2, d3, db3)

    def full_spec(a):
        return pl.BlockSpec(a.shape, lambda b: (0,) * a.ndim)

    in_specs = [pl.BlockSpec((1,) + x.shape[1:], lambda b: (b, 0, 0))]
    in_specs += [full_spec(a) for a in operands[1:]]

    # rough cost hint for the XLA scheduler
    flops = 0
    for (Hc, Wc, Wpc, K, Co) in ((H, W, Wp0, 9 * _CIN_PAD, _C1),
                                 (H // 2, W // 2, Wp1, 9 * _C1, _C2),
                                 (H // 4, W // 4, Wp2, 9 * _C2, _C3)):
        flops += 2 * Hc * Wpc * K * Co                 # fused K=9*Cin conv matmul
        flops += (Hc // 2) * 2 * Wc * Wpc * Co         # per-row pooling gathers
    flops += 2 * M3 * (64 * 128 + 128 * 256 + 256 * out_cols)
    flops *= N
    bytes_accessed = sum(int(a.size) * a.dtype.itemsize for a in operands) \
        + N * M3 * out_cols * 4

    out = pl.pallas_call(
        functools.partial(_convnet_kernel, H=H, W=W, Wp0=Wp0, Wp1=Wp1, Wp2=Wp2),
        out_shape=jax.ShapeDtypeStruct((N, M3, out_cols), jnp.float32),
        grid=(N,),
        in_specs=in_specs,
        out_specs=pl.BlockSpec((1, M3, out_cols), lambda b: (b, 0, 0)),
        scratch_shapes=[
            pltpu.VMEM(((H // 2 + 3) * Wp1, _C1), jnp.float32),   # padded stage-2 act
            pltpu.VMEM(((H // 4 + 3) * Wp2, _C2), jnp.float32),   # padded stage-3 act
            pltpu.VMEM((M3, _C3), jnp.float32),                   # dense decoder input
        ],
        compiler_params=pltpu.CompilerParams(
            dimension_semantics=("parallel",)),
        cost_estimate=pl.CostEstimate(flops=flops, transcendentals=0,
                                      bytes_accessed=bytes_accessed),
    )(*operands)

    # --- unscramble decoder pixel pyramid -> NCHW (one tiny layout op) ---------
    out = out.reshape(N, H // 8, W // 8, 2, 2, 2, 2, 2, 2, num_classes)
    out = jnp.transpose(out, (0, 9, 1, 3, 5, 7, 2, 4, 6, 8))
    return out.reshape(N, num_classes, H, W)


# ---------------------------------- parameters ----------------------------------

def _init_conv(key, cout, cin, kh, kw):
    fan_in = cin * kh * kw
    bound = 1.0 / np.sqrt(fan_in)
    kw_, kb_ = jax.random.split(key)
    w = jax.random.uniform(kw_, (cout, cin, kh, kw), jnp.float32, -bound, bound)
    b = jax.random.uniform(kb_, (cout,), jnp.float32, -bound, bound)
    return w, b


def _init_deconv(key, cin, cout, kh, kw):
    fan_in = cin * kh * kw
    bound = 1.0 / np.sqrt(fan_in)
    kw_, kb_ = jax.random.split(key)
    w = jax.random.uniform(kw_, (cin, cout, kh, kw), jnp.float32, -bound, bound)
    b = jax.random.uniform(kb_, (cout,), jnp.float32, -bound, bound)
    return w, b


def init_params(key, num_classes):
    ks = jax.random.split(key, 6)
    return {
        "enc1": _init_conv(ks[0], 16, 3, 3, 3),
        "enc2": _init_conv(ks[1], 32, 16, 3, 3),
        "enc3": _init_conv(ks[2], 64, 32, 3, 3),
        "dec1": _init_deconv(ks[3], 64, 32, 2, 2),
        "dec2": _init_deconv(ks[4], 32, 16, 2, 2),
        "dec3": _init_deconv(ks[5], 16, num_classes, 2, 2),
    }


# ----------------------------- pure-XLA reference -------------------------------

def _reference_forward(params, x):
    """Pure-XLA f32 reference (no Pallas) used for a numerical cross-check."""
    def conv(x, w, b):
        y = jax.lax.conv_general_dilated(
            x, w, window_strides=(1, 1), padding=((1, 1), (1, 1)),
            dimension_numbers=("NCHW", "OIHW", "NCHW"))
        return jax.nn.relu(y + b[None, :, None, None])

    def pool(x):
        return jax.lax.reduce_window(x, -jnp.inf, jax.lax.max,
                                     (1, 1, 2, 2), (1, 1, 2, 2), "VALID")

    def deconv(x, w, b, relu):
        n, _, h, wd = x.shape
        co = w.shape[1]
        y = jnp.einsum("nihw,ioab->nohawb", x, w).reshape(n, co, 2 * h, 2 * wd)
        y = y + b[None, :, None, None]
        return jax.nn.relu(y) if relu else y

    x = pool(conv(x, *params["enc1"]))
    x = pool(conv(x, *params["enc2"]))
    x = pool(conv(x, *params["enc3"]))
    x = deconv(x, *params["dec1"], relu=True)
    x = deconv(x, *params["dec2"], relu=True)
    x = deconv(x, *params["dec3"], relu=False)
    return x


# -------------------------------------- main ------------------------------------

if __name__ == "__main__":
    num_classes = 4
    key = jax.random.PRNGKey(0)
    k_params, k_x = jax.random.split(key)

    params = init_params(k_params, num_classes)
    x = jax.random.normal(k_x, (2, 3, 16, 16), dtype=jnp.float32)  # NCHW like PyTorch

    out = jax.jit(convnet_forward)(params, x)
    out = jax.block_until_ready(out)

    assert out.shape == (2, num_classes, 16, 16), out.shape
    assert out.dtype == jnp.float32

    # numerical cross-check against the pure-XLA f32 reference; tolerance is
    # loose because the kernel intentionally runs its matmuls with bf16
    # operands (f32 accumulation).
    ref = jax.block_until_ready(_reference_forward(params, x))
    np.testing.assert_allclose(np.asarray(out), np.asarray(ref), rtol=5e-2, atol=3e-2)

    print("KERNEL_OK")
</pallas_src>

<mosaic_0001>
module attributes {stable_mosaic.version = 11 : i64} {
  func.func @_convnet_kernel(%arg0: i32, %arg1: memref<1x456x8xf32, #tpu.memory_space<vmem>>, %arg2: memref<72x16xbf16, #tpu.memory_space<vmem>>, %arg3: memref<1x16xf32, #tpu.memory_space<vmem>>, %arg4: memref<144x32xbf16, #tpu.memory_space<vmem>>, %arg5: memref<1x32xf32, #tpu.memory_space<vmem>>, %arg6: memref<288x64xbf16, #tpu.memory_space<vmem>>, %arg7: memref<1x64xf32, #tpu.memory_space<vmem>>, %arg8: memref<16x24xf32, #tpu.memory_space<vmem>>, %arg9: memref<8x16xf32, #tpu.memory_space<vmem>>, %arg10: memref<4x8xf32, #tpu.memory_space<vmem>>, %arg11: memref<64x128xbf16, #tpu.memory_space<vmem>>, %arg12: memref<1x128xf32, #tpu.memory_space<vmem>>, %arg13: memref<128x256xbf16, #tpu.memory_space<vmem>>, %arg14: memref<1x256xf32, #tpu.memory_space<vmem>>, %arg15: memref<256x256xbf16, #tpu.memory_space<vmem>>, %arg16: memref<1x256xf32, #tpu.memory_space<vmem>>, %arg17: memref<1x4x256xf32, #tpu.memory_space<vmem>>, %arg18: memref<176x16xf32, #tpu.memory_space<vmem>>, %arg19: memref<56x32xf32, #tpu.memory_space<vmem>>, %arg20: memref<4x64xf32, #tpu.memory_space<vmem>>) attributes {dimension_semantics = [#tpu.dimension_semantics<parallel>], iteration_bounds = array<i64: 2>, scalar_prefetch = 0 : i64, scratch_operands = 3 : i64, tpu.core_type = #tpu.core_type<tc>, window_params = [{transform_indices = @transform_0, window_bounds = array<i64: 1, 456, 8>}, {pipeline_mode = #tpu.pipeline_mode<synchronous>, transform_indices = @transform_1, window_bounds = array<i64: 72, 16>}, {pipeline_mode = #tpu.pipeline_mode<synchronous>, transform_indices = @transform_2, window_bounds = array<i64: 1, 16>}, {pipeline_mode = #tpu.pipeline_mode<synchronous>, transform_indices = @transform_3, window_bounds = array<i64: 144, 32>}, {pipeline_mode = #tpu.pipeline_mode<synchronous>, transform_indices = @transform_4, window_bounds = array<i64: 1, 32>}, {pipeline_mode = #tpu.pipeline_mode<synchronous>, transform_indices = @transform_5, window_bounds = array<i64: 288, 64>}, {pipeline_mode = #tpu.pipeline_mode<synchronous>, transform_indices = @transform_6, window_bounds = array<i64: 1, 64>}, {pipeline_mode = #tpu.pipeline_mode<synchronous>, transform_indices = @transform_7, window_bounds = array<i64: 16, 24>}, {pipeline_mode = #tpu.pipeline_mode<synchronous>, transform_indices = @transform_8, window_bounds = array<i64: 8, 16>}, {pipeline_mode = #tpu.pipeline_mode<synchronous>, transform_indices = @transform_9, window_bounds = array<i64: 4, 8>}, {pipeline_mode = #tpu.pipeline_mode<synchronous>, transform_indices = @transform_10, window_bounds = array<i64: 64, 128>}, {pipeline_mode = #tpu.pipeline_mode<synchronous>, transform_indices = @transform_11, window_bounds = array<i64: 1, 128>}, {pipeline_mode = #tpu.pipeline_mode<synchronous>, transform_indices = @transform_12, window_bounds = array<i64: 128, 256>}, {pipeline_mode = #tpu.pipeline_mode<synchronous>, transform_indices = @transform_13, window_bounds = array<i64: 1, 256>}, {pipeline_mode = #tpu.pipeline_mode<synchronous>, transform_indices = @transform_14, window_bounds = array<i64: 256, 256>}, {pipeline_mode = #tpu.pipeline_mode<synchronous>, transform_indices = @transform_15, window_bounds = array<i64: 1, 256>}, {transform_indices = @transform_16, window_bounds = array<i64: 1, 4, 256>}]} {
    %c0 = arith.constant 0 : index
    %c0_0 = arith.constant 0 : index
    %c0_1 = arith.constant 0 : index
    %0 = vector.load %arg1[%c0, %c0_0, %c0_1] : memref<1x456x8xf32, #tpu.memory_space<vmem>>, vector<1x456x8xf32>
    %1 = vector.shape_cast %0 : vector<1x456x8xf32> to vector<456x8xf32>
    %c0_2 = arith.constant 0 : index
    %c0_3 = arith.constant 0 : index
    %2 = vector.load %arg2[%c0_2, %c0_3] : memref<72x16xbf16, #tpu.memory_space<vmem>>, vector<72x16xbf16>
    %c0_4 = arith.constant 0 : index
    %c0_5 = arith.constant 0 : index
    %3 = vector.load %arg3[%c0_4, %c0_5] : memref<1x16xf32, #tpu.memory_space<vmem>>, vector<1x16xf32>
    %4 = vector.extract_strided_slice %1 {offsets = [0, 0], sizes = [384, 8], strides = [1, 1]} : vector<456x8xf32> to vector<384x8xf32>
    %5 = vector.extract_strided_slice %1 {offsets = [1, 0], sizes = [384, 8], strides = [1, 1]} : vector<456x8xf32> to vector<384x8xf32>
    %6 = vector.extract_strided_slice %1 {offsets = [2, 0], sizes = [384, 8], strides = [1, 1]} : vector<456x8xf32> to vector<384x8xf32>
    %7 = vector.extract_strided_slice %1 {offsets = [24, 0], sizes = [384, 8], strides = [1, 1]} : vector<456x8xf32> to vector<384x8xf32>
    %8 = vector.extract_strided_slice %1 {offsets = [25, 0], sizes = [384, 8], strides = [1, 1]} : vector<456x8xf32> to vector<384x8xf32>
    %9 = vector.extract_strided_slice %1 {offsets = [26, 0], sizes = [384, 8], strides = [1, 1]} : vector<456x8xf32> to vector<384x8xf32>
    %10 = vector.extract_strided_slice %1 {offsets = [48, 0], sizes = [384, 8], strides = [1, 1]} : vector<456x8xf32> to vector<384x8xf32>
    %11 = vector.extract_strided_slice %1 {offsets = [49, 0], sizes = [384, 8], strides = [1, 1]} : vector<456x8xf32> to vector<384x8xf32>
    %12 = vector.extract_strided_slice %1 {offsets = [50, 0], sizes = [384, 8], strides = [1, 1]} : vector<456x8xf32> to vector<384x8xf32>
    %13 = tpu.concatenate %4, %5, %6, %7, %8, %9, %10, %11, %12 in 1 : vector<384x8xf32>, vector<384x8xf32>, vector<384x8xf32>, vector<384x8xf32>, vector<384x8xf32>, vector<384x8xf32>, vector<384x8xf32>, vector<384x8xf32>, vector<384x8xf32> -> vector<384x72xf32>
    %14 = arith.truncf %13 : vector<384x72xf32> to vector<384x72xbf16>
    %cst = arith.constant dense<0.000000e+00> : vector<384x16xf32>
    %15 = tpu.matmul %14, %2, %cst {dimension_numbers = #tpu.dot_dimension_numbers<[1], [0], [0], [1], [0, 0, 1, 1], [], []>} : vector<384x72xbf16>, vector<72x16xbf16>, vector<384x16xf32> -> vector<384x16xf32>
    %16 = vector.broadcast %3 : vector<1x16xf32> to vector<384x16xf32>
    %17 = arith.addf %15, %16 : vector<384x16xf32>
    %cst_6 = arith.constant 0.000000e+00 : f32
    %18 = vector.broadcast %cst_6 : f32 to vector<384x16xf32>
    %19 = arith.maximumf %17, %18 : vector<384x16xf32>
    %cst_7 = arith.constant 0.000000e+00 : f32
    %20 = vector.broadcast %cst_7 : f32 to vector<176x16xf32>
    %c0_8 = arith.constant 0 : index
    %c0_9 = arith.constant 0 : index
    %21 = vector.load %arg18[%c0_8, %c0_9] : memref<176x16xf32, #tpu.memory_space<vmem>>, vector<176x16xf32>
    tpu.vector_store %arg18[%c0_8, %c0_9], %20 {strides = array<i32>} : memref<176x16xf32, #tpu.memory_space<vmem>>, vector<176x16xf32>,
    %c0_10 = arith.constant 0 : index
    %c0_11 = arith.constant 0 : index
    %22 = vector.load %arg8[%c0_10, %c0_11] : memref<16x24xf32, #tpu.memory_space<vmem>>, vector<16x24xf32>
    %23 = vector.extract_strided_slice %19 {offsets = [0, 0], sizes = [24, 16], strides = [1, 1]} : vector<384x16xf32> to vector<24x16xf32>
    %24 = vector.extract_strided_slice %19 {offsets = [24, 0], sizes = [24, 16], strides = [1, 1]} : vector<384x16xf32> to vector<24x16xf32>
    %25 = arith.maximumf %23, %24 : vector<24x16xf32>
    %cst_12 = arith.constant dense<0.000000e+00> : vector<16x16xf32>
    %26 = tpu.matmul %22, %25, %cst_12 {dimension_numbers = #tpu.dot_dimension_numbers<[1], [0], [0], [1], [0, 0, 1, 1], [], []>} : vector<16x24xf32>, vector<24x16xf32>, vector<16x16xf32> -> vector<16x16xf32>
    %27 = vector.extract_strided_slice %26 {offsets = [0, 0], sizes = [8, 16], strides = [1, 1]} : vector<16x16xf32> to vector<8x16xf32>
    %28 = vector.extract_strided_slice %26 {offsets = [8, 0], sizes = [8, 16], strides = [1, 1]} : vector<16x16xf32> to vector<8x16xf32>
    %29 = arith.maximumf %27, %28 : vector<8x16xf32>
    %c17 = arith.constant 17 : index
    %c0_13 = arith.constant 0 : index
    %30 = vector.load %arg18[%c17, %c0_13] : memref<176x16xf32, #tpu.memory_space<vmem>>, vector<8x16xf32>
    tpu.vector_store %arg18[%c17, %c0_13], %29 {strides = array<i32>} : memref<176x16xf32, #tpu.memory_space<vmem>>, vector<8x16xf32>,
    %31 = vector.extract_strided_slice %19 {offsets = [48, 0], sizes = [24, 16], strides = [1, 1]} : vector<384x16xf32> to vector<24x16xf32>
    %32 = vector.extract_strided_slice %19 {offsets = [72, 0], sizes = [24, 16], strides = [1, 1]} : vector<384x16xf32> to vector<24x16xf32>
    %33 = arith.maximumf %31, %32 : vector<24x16xf32>
    %cst_14 = arith.constant dense<0.000000e+00> : vector<16x16xf32>
    %34 = tpu.matmul %22, %33, %cst_14 {dimension_numbers = #tpu.dot_dimension_numbers<[1], [0], [0], [1], [0, 0, 1, 1], [], []>} : vector<16x24xf32>, vector<24x16xf32>, vector<16x16xf32> -> vector<16x16xf32>
    %35 = vector.extract_strided_slice %34 {offsets = [0, 0], sizes = [8, 16], strides = [1, 1]} : vector<16x16xf32> to vector<8x16xf32>
    %36 = vector.extract_strided_slice %34 {offsets = [8, 0], sizes = [8, 16], strides = [1, 1]} : vector<16x16xf32> to vector<8x16xf32>
    %37 = arith.maximumf %35, %36 : vector<8x16xf32>
    %c33 = arith.constant 33 : index
    %c0_15 = arith.constant 0 : index
    %38 = vector.load %arg18[%c33, %c0_15] : memref<176x16xf32, #tpu.memory_space<vmem>>, vector<8x16xf32>
    tpu.vector_store %arg18[%c33, %c0_15], %37 {strides = array<i32>} : memref<176x16xf32, #tpu.memory_space<vmem>>, vector<8x16xf32>,
    %39 = vector.extract_strided_slice %19 {offsets = [96, 0], sizes = [24, 16], strides = [1, 1]} : vector<384x16xf32> to vector<24x16xf32>
    %40 = vector.extract_strided_slice %19 {offsets = [120, 0], sizes = [24, 16], strides = [1, 1]} : vector<384x16xf32> to vector<24x16xf32>
    %41 = arith.maximumf %39, %40 : vector<24x16xf32>
    %cst_16 = arith.constant dense<0.000000e+00> : vector<16x16xf32>
    %42 = tpu.matmul %22, %41, %cst_16 {dimension_numbers = #tpu.dot_dimension_numbers<[1], [0], [0], [1], [0, 0, 1, 1], [], []>} : vector<16x24xf32>, vector<24x16xf32>, vector<16x16xf32> -> vector<16x16xf32>
    %43 = vector.extract_strided_slice %42 {offsets = [0, 0], sizes = [8, 16], strides = [1, 1]} : vector<16x16xf32> to vector<8x16xf32>
    %44 = vector.extract_strided_slice %42 {offsets = [8, 0], sizes = [8, 16], strides = [1, 1]} : vector<16x16xf32> to vector<8x16xf32>
    %45 = arith.maximumf %43, %44 : vector<8x16xf32>
    %c49 = arith.constant 49 : index
    %c0_17 = arith.constant 0 : index
    %46 = vector.load %arg18[%c49, %c0_17] : memref<176x16xf32, #tpu.memory_space<vmem>>, vector<8x16xf32>
    tpu.vector_store %arg18[%c49, %c0_17], %45 {strides = array<i32>} : memref<176x16xf32, #tpu.memory_space<vmem>>, vector<8x16xf32>,
    %47 = vector.extract_strided_slice %19 {offsets = [144, 0], sizes = [24, 16], strides = [1, 1]} : vector<384x16xf32> to vector<24x16xf32>
    %48 = vector.extract_strided_slice %19 {offsets = [168, 0], sizes = [24, 16], strides = [1, 1]} : vector<384x16xf32> to vector<24x16xf32>
    %49 = arith.maximumf %47, %48 : vector<24x16xf32>
    %cst_18 = arith.constant dense<0.000000e+00> : vector<16x16xf32>
    %50 = tpu.matmul %22, %49, %cst_18 {dimension_numbers = #tpu.dot_dimension_numbers<[1], [0], [0], [1], [0, 0, 1, 1], [], []>} : vector<16x24xf32>, vector<24x16xf32>, vector<16x16xf32> -> vector<16x16xf32>
    %51 = vector.extract_strided_slice %50 {offsets = [0, 0], sizes = [8, 16], strides = [1, 1]} : vector<16x16xf32> to vector<8x16xf32>
    %52 = vector.extract_strided_slice %50 {offsets = [8, 0], sizes = [8, 16], strides = [1, 1]} : vector<16x16xf32> to vector<8x16xf32>
    %53 = arith.maximumf %51, %52 : vector<8x16xf32>
    %c65 = arith.constant 65 : index
    %c0_19 = arith.constant 0 : index
    %54 = vector.load %arg18[%c65, %c0_19] : memref<176x16xf32, #tpu.memory_space<vmem>>, vector<8x16xf32>
    tpu.vector_store %arg18[%c65, %c0_19], %53 {strides = array<i32>} : memref<176x16xf32, #tpu.memory_space<vmem>>, vector<8x16xf32>,
    %55 = vector.extract_strided_slice %19 {offsets = [192, 0], sizes = [24, 16], strides = [1, 1]} : vector<384x16xf32> to vector<24x16xf32>
    %56 = vector.extract_strided_slice %19 {offsets = [216, 0], sizes = [24, 16], strides = [1, 1]} : vector<384x16xf32> to vector<24x16xf32>
    %57 = arith.maximumf %55, %56 : vector<24x16xf32>
    %cst_20 = arith.constant dense<0.000000e+00> : vector<16x16xf32>
    %58 = tpu.matmul %22, %57, %cst_20 {dimension_numbers = #tpu.dot_dimension_numbers<[1], [0], [0], [1], [0, 0, 1, 1], [], []>} : vector<16x24xf32>, vector<24x16xf32>, vector<16x16xf32> -> vector<16x16xf32>
    %59 = vector.extract_strided_slice %58 {offsets = [0, 0], sizes = [8, 16], strides = [1, 1]} : vector<16x16xf32> to vector<8x16xf32>
    %60 = vector.extract_strided_slice %58 {offsets = [8, 0], sizes = [8, 16], strides = [1, 1]} : vector<16x16xf32> to vector<8x16xf32>
    %61 = arith.maximumf %59, %60 : vector<8x16xf32>
    %c81 = arith.constant 81 : index
    %c0_21 = arith.constant 0 : index
    %62 = vector.load %arg18[%c81, %c0_21] : memref<176x16xf32, #tpu.memory_space<vmem>>, vector<8x16xf32>
    tpu.vector_store %arg18[%c81, %c0_21], %61 {strides = array<i32>} : memref<176x16xf32, #tpu.memory_space<vmem>>, vector<8x16xf32>,
    %63 = vector.extract_strided_slice %19 {offsets = [240, 0], sizes = [24, 16], strides = [1, 1]} : vector<384x16xf32> to vector<24x16xf32>
    %64 = vector.extract_strided_slice %19 {offsets = [264, 0], sizes = [24, 16], strides = [1, 1]} : vector<384x16xf32> to vector<24x16xf32>
    %65 = arith.maximumf %63, %64 : vector<24x16xf32>
    %cst_22 = arith.constant dense<0.000000e+00> : vector<16x16xf32>
    %66 = tpu.matmul %22, %65, %cst_22 {dimension_numbers = #tpu.dot_dimension_numbers<[1], [0], [0], [1], [0, 0, 1, 1], [], []>} : vector<16x24xf32>, vector<24x16xf32>, vector<16x16xf32> -> vector<16x16xf32>
    %67 = vector.extract_strided_slice %66 {offsets = [0, 0], sizes = [8, 16], strides = [1, 1]} : vector<16x16xf32> to vector<8x16xf32>
    %68 = vector.extract_strided_slice %66 {offsets = [8, 0], sizes = [8, 16], strides = [1, 1]} : vector<16x16xf32> to vector<8x16xf32>
    %69 = arith.maximumf %67, %68 : vector<8x16xf32>
    %c97 = arith.constant 97 : index
    %c0_23 = arith.constant 0 : index
    %70 = vector.load %arg18[%c97, %c0_23] : memref<176x16xf32, #tpu.memory_space<vmem>>, vector<8x16xf32>
    tpu.vector_store %arg18[%c97, %c0_23], %69 {strides = array<i32>} : memref<176x16xf32, #tpu.memory_space<vmem>>, vector<8x16xf32>,
    %71 = vector.extract_strided_slice %19 {offsets = [288, 0], sizes = [24, 16], strides = [1, 1]} : vector<384x16xf32> to vector<24x16xf32>
    %72 = vector.extract_strided_slice %19 {offsets = [312, 0], sizes = [24, 16], strides = [1, 1]} : vector<384x16xf32> to vector<24x16xf32>
    %73 = arith.maximumf %71, %72 : vector<24x16xf32>
    %cst_24 = arith.constant dense<0.000000e+00> : vector<16x16xf32>
    %74 = tpu.matmul %22, %73, %cst_24 {dimension_numbers = #tpu.dot_dimension_numbers<[1], [0], [0], [1], [0, 0, 1, 1], [], []>} : vector<16x24xf32>, vector<24x16xf32>, vector<16x16xf32> -> vector<16x16xf32>
    %75 = vector.extract_strided_slice %74 {offsets = [0, 0], sizes = [8, 16], strides = [1, 1]} : vector<16x16xf32> to vector<8x16xf32>
    %76 = vector.extract_strided_slice %74 {offsets = [8, 0], sizes = [8, 16], strides = [1, 1]} : vector<16x16xf32> to vector<8x16xf32>
    %77 = arith.maximumf %75, %76 : vector<8x16xf32>
    %c113 = arith.constant 113 : index
    %c0_25 = arith.constant 0 : index
    %78 = vector.load %arg18[%c113, %c0_25] : memref<176x16xf32, #tpu.memory_space<vmem>>, vector<8x16xf32>
    tpu.vector_store %arg18[%c113, %c0_25], %77 {strides = array<i32>} : memref<176x16xf32, #tpu.memory_space<vmem>>, vector<8x16xf32>,
    %79 = vector.extract_strided_slice %19 {offsets = [336, 0], sizes = [24, 16], strides = [1, 1]} : vector<384x16xf32> to vector<24x16xf32>
    %80 = vector.extract_strided_slice %19 {offsets = [360, 0], sizes = [24, 16], strides = [1, 1]} : vector<384x16xf32> to vector<24x16xf32>
    %81 = arith.maximumf %79, %80 : vector<24x16xf32>
    %cst_26 = arith.constant dense<0.000000e+00> : vector<16x16xf32>
    %82 = tpu.matmul %22, %81, %cst_26 {dimension_numbers = #tpu.dot_dimension_numbers<[1], [0], [0], [1], [0, 0, 1, 1], [], []>} : vector<16x24xf32>, vector<24x16xf32>, vector<16x16xf32> -> vector<16x16xf32>
    %83 = vector.extract_strided_slice %82 {offsets = [0, 0], sizes = [8, 16], strides = [1, 1]} : vector<16x16xf32> to vector<8x16xf32>
    %84 = vector.extract_strided_slice %82 {offsets = [8, 0], sizes = [8, 16], strides = [1, 1]} : vector<16x16xf32> to vector<8x16xf32>
    %85 = arith.maximumf %83, %84 : vector<8x16xf32>
    %c129 = arith.constant 129 : index
    %c0_27 = arith.constant 0 : index
    %86 = vector.load %arg18[%c129, %c0_27] : memref<176x16xf32, #tpu.memory_space<vmem>>, vector<8x16xf32>
    tpu.vector_store %arg18[%c129, %c0_27], %85 {strides = array<i32>} : memref<176x16xf32, #tpu.memory_space<vmem>>, vector<8x16xf32>,
    %c0_28 = arith.constant 0 : index
    %c0_29 = arith.constant 0 : index
    %87 = vector.load %arg18[%c0_28, %c0_29] : memref<176x16xf32, #tpu.memory_space<vmem>>, vector<176x16xf32>
    %c0_30 = arith.constant 0 : index
    %c0_31 = arith.constant 0 : index
    %88 = vector.load %arg4[%c0_30, %c0_31] : memref<144x32xbf16, #tpu.memory_space<vmem>>, vector<144x32xbf16>
    %c0_32 = arith.constant 0 : index
    %c0_33 = arith.constant 0 : index
    %89 = vector.load %arg5[%c0_32, %c0_33] : memref<1x32xf32, #tpu.memory_space<vmem>>, vector<1x32xf32>
    %90 = vector.extract_strided_slice %87 {offsets = [0, 0], sizes = [128, 16], strides = [1, 1]} : vector<176x16xf32> to vector<128x16xf32>
    %91 = vector.extract_strided_slice %87 {offsets = [1, 0], sizes = [128, 16], strides = [1, 1]} : vector<176x16xf32> to vector<128x16xf32>
    %92 = vector.extract_strided_slice %87 {offsets = [2, 0], sizes = [128, 16], strides = [1, 1]} : vector<176x16xf32> to vector<128x16xf32>
    %93 = vector.extract_strided_slice %87 {offsets = [16, 0], sizes = [128, 16], strides = [1, 1]} : vector<176x16xf32> to vector<128x16xf32>
    %94 = vector.extract_strided_slice %87 {offsets = [17, 0], sizes = [128, 16], strides = [1, 1]} : vector<176x16xf32> to vector<128x16xf32>
    %95 = vector.extract_strided_slice %87 {offsets = [18, 0], sizes = [128, 16], strides = [1, 1]} : vector<176x16xf32> to vector<128x16xf32>
    %96 = vector.extract_strided_slice %87 {offsets = [32, 0], sizes = [128, 16], strides = [1, 1]} : vector<176x16xf32> to vector<128x16xf32>
    %97 = vector.extract_strided_slice %87 {offsets = [33, 0], sizes = [128, 16], strides = [1, 1]} : vector<176x16xf32> to vector<128x16xf32>
    %98 = vector.extract_strided_slice %87 {offsets = [34, 0], sizes = [128, 16], strides = [1, 1]} : vector<176x16xf32> to vector<128x16xf32>
    %99 = tpu.concatenate %90, %91, %92, %93, %94, %95, %96, %97, %98 in 1 : vector<128x16xf32>, vector<128x16xf32>, vector<128x16xf32>, vector<128x16xf32>, vector<128x16xf32>, vector<128x16xf32>, vector<128x16xf32>, vector<128x16xf32>, vector<128x16xf32> -> vector<128x144xf32>
    %100 = arith.truncf %99 : vector<128x144xf32> to vector<128x144xbf16>
    %cst_34 = arith.constant dense<0.000000e+00> : vector<128x32xf32>
    %101 = tpu.matmul %100, %88, %cst_34 {dimension_numbers = #tpu.dot_dimension_numbers<[1], [0], [0], [1], [0, 0, 1, 1], [], []>} : vector<128x144xbf16>, vector<144x32xbf16>, vector<128x32xf32> -> vector<128x32xf32>
    %102 = vector.broadcast %89 : vector<1x32xf32> to vector<128x32xf32>
    %103 = arith.addf %101, %102 : vector<128x32xf32>
    %cst_35 = arith.constant 0.000000e+00 : f32
    %104 = vector.broadcast %cst_35 : f32 to vector<128x32xf32>
    %105 = arith.maximumf %103, %104 : vector<128x32xf32>
    %cst_36 = arith.constant 0.000000e+00 : f32
    %106 = vector.broadcast %cst_36 : f32 to vector<56x32xf32>
    %c0_37 = arith.constant 0 : index
    %c0_38 = arith.constant 0 : index
    %107 = vector.load %arg19[%c0_37, %c0_38] : memref<56x32xf32, #tpu.memory_space<vmem>>, vector<56x32xf32>
    tpu.vector_store %arg19[%c0_37, %c0_38], %106 {strides = array<i32>} : memref<56x32xf32, #tpu.memory_space<vmem>>, vector<56x32xf32>,
    %c0_39 = arith.constant 0 : index
    %c0_40 = arith.constant 0 : index
    %108 = vector.load %arg9[%c0_39, %c0_40] : memref<8x16xf32, #tpu.memory_space<vmem>>, vector<8x16xf32>
    %109 = vector.extract_strided_slice %105 {offsets = [0, 0], sizes = [16, 32], strides = [1, 1]} : vector<128x32xf32> to vector<16x32xf32>
    %110 = vector.extract_strided_slice %105 {offsets = [16, 0], sizes = [16, 32], strides = [1, 1]} : vector<128x32xf32> to vector<16x32xf32>
    %111 = arith.maximumf %109, %110 : vector<16x32xf32>
    %cst_41 = arith.constant dense<0.000000e+00> : vector<8x32xf32>
    %112 = tpu.matmul %108, %111, %cst_41 {dimension_numbers = #tpu.dot_dimension_numbers<[1], [0], [0], [1], [0, 0, 1, 1], [], []>} : vector<8x16xf32>, vector<16x32xf32>, vector<8x32xf32> -> vector<8x32xf32>
    %113 = vector.extract_strided_slice %112 {offsets = [0, 0], sizes = [4, 32], strides = [1, 1]} : vector<8x32xf32> to vector<4x32xf32>
    %114 = vector.extract_strided_slice %112 {offsets = [4, 0], sizes = [4, 32], strides = [1, 1]} : vector<8x32xf32> to vector<4x32xf32>
    %115 = arith.maximumf %113, %114 : vector<4x32xf32>
    %c9 = arith.constant 9 : index
    %c0_42 = arith.constant 0 : index
    %116 = vector.load %arg19[%c9, %c0_42] : memref<56x32xf32, #tpu.memory_space<vmem>>, vector<4x32xf32>
    tpu.vector_store %arg19[%c9, %c0_42], %115 {strides = array<i32>} : memref<56x32xf32, #tpu.memory_space<vmem>>, vector<4x32xf32>,
    %117 = vector.extract_strided_slice %105 {offsets = [32, 0], sizes = [16, 32], strides = [1, 1]} : vector<128x32xf32> to vector<16x32xf32>
    %118 = vector.extract_strided_slice %105 {offsets = [48, 0], sizes = [16, 32], strides = [1, 1]} : vector<128x32xf32> to vector<16x32xf32>
    %119 = arith.maximumf %117, %118 : vector<16x32xf32>
    %cst_43 = arith.constant dense<0.000000e+00> : vector<8x32xf32>
    %120 = tpu.matmul %108, %119, %cst_43 {dimension_numbers = #tpu.dot_dimension_numbers<[1], [0], [0], [1], [0, 0, 1, 1], [], []>} : vector<8x16xf32>, vector<16x32xf32>, vector<8x32xf32> -> vector<8x32xf32>
    %121 = vector.extract_strided_slice %120 {offsets = [0, 0], sizes = [4, 32], strides = [1, 1]} : vector<8x32xf32> to vector<4x32xf32>
    %122 = vector.extract_strided_slice %120 {offsets = [4, 0], sizes = [4, 32], strides = [1, 1]} : vector<8x32xf32> to vector<4x32xf32>
    %123 = arith.maximumf %121, %122 : vector<4x32xf32>
    %c17_44 = arith.constant 17 : index
    %c0_45 = arith.constant 0 : index
    %124 = vector.load %arg19[%c17_44, %c0_45] : memref<56x32xf32, #tpu.memory_space<vmem>>, vector<4x32xf32>
    tpu.vector_store %arg19[%c17_44, %c0_45], %123 {strides = array<i32>} : memref<56x32xf32, #tpu.memory_space<vmem>>, vector<4x32xf32>,
    %125 = vector.extract_strided_slice %105 {offsets = [64, 0], sizes = [16, 32], strides = [1, 1]} : vector<128x32xf32> to vector<16x32xf32>
    %126 = vector.extract_strided_slice %105 {offsets = [80, 0], sizes = [16, 32], strides = [1, 1]} : vector<128x32xf32> to vector<16x32xf32>
    %127 = arith.maximumf %125, %126 : vector<16x32xf32>
    %cst_46 = arith.constant dense<0.000000e+00> : vector<8x32xf32>
    %128 = tpu.matmul %108, %127, %cst_46 {dimension_numbers = #tpu.dot_dimension_numbers<[1], [0], [0], [1], [0, 0, 1, 1], [], []>} : vector<8x16xf32>, vector<16x32xf32>, vector<8x32xf32> -> vector<8x32xf32>
    %129 = vector.extract_strided_slice %128 {offsets = [0, 0], sizes = [4, 32], strides = [1, 1]} : vector<8x32xf32> to vector<4x32xf32>
    %130 = vector.extract_strided_slice %128 {offsets = [4, 0], sizes = [4, 32], strides = [1, 1]} : vector<8x32xf32> to vector<4x32xf32>
    %131 = arith.maximumf %129, %130 : vector<4x32xf32>
    %c25 = arith.constant 25 : index
    %c0_47 = arith.constant 0 : index
    %132 = vector.load %arg19[%c25, %c0_47] : memref<56x32xf32, #tpu.memory_space<vmem>>, vector<4x32xf32>
    tpu.vector_store %arg19[%c25, %c0_47], %131 {strides = array<i32>} : memref<56x32xf32, #tpu.memory_space<vmem>>, vector<4x32xf32>,
    %133 = vector.extract_strided_slice %105 {offsets = [96, 0], sizes = [16, 32], strides = [1, 1]} : vector<128x32xf32> to vector<16x32xf32>
    %134 = vector.extract_strided_slice %105 {offsets = [112, 0], sizes = [16, 32], strides = [1, 1]} : vector<128x32xf32> to vector<16x32xf32>
    %135 = arith.maximumf %133, %134 : vector<16x32xf32>
    %cst_48 = arith.constant dense<0.000000e+00> : vector<8x32xf32>
    %136 = tpu.matmul %108, %135, %cst_48 {dimension_numbers = #tpu.dot_dimension_numbers<[1], [0], [0], [1], [0, 0, 1, 1], [], []>} : vector<8x16xf32>, vector<16x32xf32>, vector<8x32xf32> -> vector<8x32xf32>
    %137 = vector.extract_strided_slice %136 {offsets = [0, 0], sizes = [4, 32], strides = [1, 1]} : vector<8x32xf32> to vector<4x32xf32>
    %138 = vector.extract_strided_slice %136 {offsets = [4, 0], sizes = [4, 32], strides = [1, 1]} : vector<8x32xf32> to vector<4x32xf32>
    %139 = arith.maximumf %137, %138 : vector<4x32xf32>
    %c33_49 = arith.constant 33 : index
    %c0_50 = arith.constant 0 : index
    %140 = vector.load %arg19[%c33_49, %c0_50] : memref<56x32xf32, #tpu.memory_space<vmem>>, vector<4x32xf32>
    tpu.vector_store %arg19[%c33_49, %c0_50], %139 {strides = array<i32>} : memref<56x32xf32, #tpu.memory_space<vmem>>, vector<4x32xf32>,
    %c0_51 = arith.constant 0 : index
    %c0_52 = arith.constant 0 : index
    %141 = vector.load %arg19[%c0_51, %c0_52] : memref<56x32xf32, #tpu.memory_space<vmem>>, vector<56x32xf32>
    %c0_53 = arith.constant 0 : index
    %c0_54 = arith.constant 0 : index
    %142 = vector.load %arg6[%c0_53, %c0_54] : memref<288x64xbf16, #tpu.memory_space<vmem>>, vector<288x64xbf16>
    %c0_55 = arith.constant 0 : index
    %c0_56 = arith.constant 0 : index
    %143 = vector.load %arg7[%c0_55, %c0_56] : memref<1x64xf32, #tpu.memory_space<vmem>>, vector<1x64xf32>
    %144 = vector.extract_strided_slice %141 {offsets = [0, 0], sizes = [32, 32], strides = [1, 1]} : vector<56x32xf32> to vector<32x32xf32>
    %145 = vector.extract_strided_slice %141 {offsets = [1, 0], sizes = [32, 32], strides = [1, 1]} : vector<56x32xf32> to vector<32x32xf32>
    %146 = vector.extract_strided_slice %141 {offsets = [2, 0], sizes = [32, 32], strides = [1, 1]} : vector<56x32xf32> to vector<32x32xf32>
    %147 = vector.extract_strided_slice %141 {offsets = [8, 0], sizes = [32, 32], strides = [1, 1]} : vector<56x32xf32> to vector<32x32xf32>
    %148 = vector.extract_strided_slice %141 {offsets = [9, 0], sizes = [32, 32], strides = [1, 1]} : vector<56x32xf32> to vector<32x32xf32>
    %149 = vector.extract_strided_slice %141 {offsets = [10, 0], sizes = [32, 32], strides = [1, 1]} : vector<56x32xf32> to vector<32x32xf32>
    %150 = vector.extract_strided_slice %141 {offsets = [16, 0], sizes = [32, 32], strides = [1, 1]} : vector<56x32xf32> to vector<32x32xf32>
    %151 = vector.extract_strided_slice %141 {offsets = [17, 0], sizes = [32, 32], strides = [1, 1]} : vector<56x32xf32> to vector<32x32xf32>
    %152 = vector.extract_strided_slice %141 {offsets = [18, 0], sizes = [32, 32], strides = [1, 1]} : vector<56x32xf32> to vector<32x32xf32>
    %153 = tpu.concatenate %144, %145, %146, %147, %148, %149, %150, %151, %152 in 1 : vector<32x32xf32>, vector<32x32xf32>, vector<32x32xf32>, vector<32x32xf32>, vector<32x32xf32>, vector<32x32xf32>, vector<32x32xf32>, vector<32x32xf32>, vector<32x32xf32> -> vector<32x288xf32>
    %154 = arith.truncf %153 : vector<32x288xf32> to vector<32x288xbf16>
    %cst_57 = arith.constant dense<0.000000e+00> : vector<32x64xf32>
    %155 = tpu.matmul %154, %142, %cst_57 {dimension_numbers = #tpu.dot_dimension_numbers<[1], [0], [0], [1], [0, 0, 1, 1], [], []>} : vector<32x288xbf16>, vector<288x64xbf16>, vector<32x64xf32> -> vector<32x64xf32>
    %156 = vector.broadcast %143 : vector<1x64xf32> to vector<32x64xf32>
    %157 = arith.addf %155, %156 : vector<32x64xf32>
    %cst_58 = arith.constant 0.000000e+00 : f32
    %158 = vector.broadcast %cst_58 : f32 to vector<32x64xf32>
    %159 = arith.maximumf %157, %158 : vector<32x64xf32>
    %c0_59 = arith.constant 0 : index
    %c0_60 = arith.constant 0 : index
    %160 = vector.load %arg10[%c0_59, %c0_60] : memref<4x8xf32, #tpu.memory_space<vmem>>, vector<4x8xf32>
    %161 = vector.extract_strided_slice %159 {offsets = [0, 0], sizes = [8, 64], strides = [1, 1]} : vector<32x64xf32> to vector<8x64xf32>
    %162 = vector.extract_strided_slice %159 {offsets = [8, 0], sizes = [8, 64], strides = [1, 1]} : vector<32x64xf32> to vector<8x64xf32>
    %163 = arith.maximumf %161, %162 : vector<8x64xf32>
    %cst_61 = arith.constant dense<0.000000e+00> : vector<4x64xf32>
    %164 = tpu.matmul %160, %163, %cst_61 {dimension_numbers = #tpu.dot_dimension_numbers<[1], [0], [0], [1], [0, 0, 1, 1], [], []>} : vector<4x8xf32>, vector<8x64xf32>, vector<4x64xf32> -> vector<4x64xf32>
    %165 = vector.extract_strided_slice %164 {offsets = [0, 0], sizes = [2, 64], strides = [1, 1]} : vector<4x64xf32> to vector<2x64xf32>
    %166 = vector.extract_strided_slice %164 {offsets = [2, 0], sizes = [2, 64], strides = [1, 1]} : vector<4x64xf32> to vector<2x64xf32>
    %167 = arith.maximumf %165, %166 : vector<2x64xf32>
    %c0_62 = arith.constant 0 : index
    %c0_63 = arith.constant 0 : index
    %168 = vector.load %arg20[%c0_62, %c0_63] : memref<4x64xf32, #tpu.memory_space<vmem>>, vector<2x64xf32>
    tpu.vector_store %arg20[%c0_62, %c0_63], %167 {strides = array<i32>} : memref<4x64xf32, #tpu.memory_space<vmem>>, vector<2x64xf32>,
    %169 = vector.extract_strided_slice %159 {offsets = [16, 0], sizes = [8, 64], strides = [1, 1]} : vector<32x64xf32> to vector<8x64xf32>
    %170 = vector.extract_strided_slice %159 {offsets = [24, 0], sizes = [8, 64], strides = [1, 1]} : vector<32x64xf32> to vector<8x64xf32>
    %171 = arith.maximumf %169, %170 : vector<8x64xf32>
    %cst_64 = arith.constant dense<0.000000e+00> : vector<4x64xf32>
    %172 = tpu.matmul %160, %171, %cst_64 {dimension_numbers = #tpu.dot_dimension_numbers<[1], [0], [0], [1], [0, 0, 1, 1], [], []>} : vector<4x8xf32>, vector<8x64xf32>, vector<4x64xf32> -> vector<4x64xf32>
    %173 = vector.extract_strided_slice %172 {offsets = [0, 0], sizes = [2, 64], strides = [1, 1]} : vector<4x64xf32> to vector<2x64xf32>
    %174 = vector.extract_strided_slice %172 {offsets = [2, 0], sizes = [2, 64], strides = [1, 1]} : vector<4x64xf32> to vector<2x64xf32>
    %175 = arith.maximumf %173, %174 : vector<2x64xf32>
    %c2 = arith.constant 2 : index
    %c0_65 = arith.constant 0 : index
    %176 = vector.load %arg20[%c2, %c0_65] : memref<4x64xf32, #tpu.memory_space<vmem>>, vector<2x64xf32>
    tpu.vector_store %arg20[%c2, %c0_65], %175 {strides = array<i32>} : memref<4x64xf32, #tpu.memory_space<vmem>>, vector<2x64xf32>,
    %c0_66 = arith.constant 0 : index
    %c0_67 = arith.constant 0 : index
    %177 = vector.load %arg20[%c0_66, %c0_67] : memref<4x64xf32, #tpu.memory_space<vmem>>, vector<4x64xf32>
    %178 = arith.truncf %177 : vector<4x64xf32> to vector<4x64xbf16>
    %c0_68 = arith.constant 0 : index
    %c0_69 = arith.constant 0 : index
    %179 = vector.load %arg11[%c0_68, %c0_69] : memref<64x128xbf16, #tpu.memory_space<vmem>>, vector<64x128xbf16>
    %cst_70 = arith.constant dense<0.000000e+00> : vector<4x128xf32>
    %180 = tpu.matmul %178, %179, %cst_70 {dimension_numbers = #tpu.dot_dimension_numbers<[1], [0], [0], [1], [0, 0, 1, 1], [], []>} : vector<4x64xbf16>, vector<64x128xbf16>, vector<4x128xf32> -> vector<4x128xf32>
    %c0_71 = arith.constant 0 : index
    %c0_72 = arith.constant 0 : index
    %181 = vector.load %arg12[%c0_71, %c0_72] : memref<1x128xf32, #tpu.memory_space<vmem>>, vector<1x128xf32>
    %182 = vector.broadcast %181 : vector<1x128xf32> to vector<4x128xf32>
    %183 = arith.addf %180, %182 : vector<4x128xf32>
    %cst_73 = arith.constant 0.000000e+00 : f32
    %184 = vector.broadcast %cst_73 : f32 to vector<4x128xf32>
    %185 = arith.maximumf %183, %184 : vector<4x128xf32>
    %186 = arith.truncf %185 : vector<4x128xf32> to vector<4x128xbf16>
    %c0_74 = arith.constant 0 : index
    %c0_75 = arith.constant 0 : index
    %187 = vector.load %arg13[%c0_74, %c0_75] : memref<128x256xbf16, #tpu.memory_space<vmem>>, vector<128x256xbf16>
    %cst_76 = arith.constant dense<0.000000e+00> : vector<4x256xf32>
    %188 = tpu.matmul %186, %187, %cst_76 {dimension_numbers = #tpu.dot_dimension_numbers<[1], [0], [0], [1], [0, 0, 1, 1], [], []>} : vector<4x128xbf16>, vector<128x256xbf16>, vector<4x256xf32> -> vector<4x256xf32>
    %c0_77 = arith.constant 0 : index
    %c0_78 = arith.constant 0 : index
    %189 = vector.load %arg14[%c0_77, %c0_78] : memref<1x256xf32, #tpu.memory_space<vmem>>, vector<1x256xf32>
    %190 = vector.broadcast %189 : vector<1x256xf32> to vector<4x256xf32>
    %191 = arith.addf %188, %190 : vector<4x256xf32>
    %cst_79 = arith.constant 0.000000e+00 : f32
    %192 = vector.broadcast %cst_79 : f32 to vector<4x256xf32>
    %193 = arith.maximumf %191, %192 : vector<4x256xf32>
    %194 = arith.truncf %193 : vector<4x256xf32> to vector<4x256xbf16>
    %c0_80 = arith.constant 0 : index
    %c0_81 = arith.constant 0 : index
    %195 = vector.load %arg15[%c0_80, %c0_81] : memref<256x256xbf16, #tpu.memory_space<vmem>>, vector<256x256xbf16>
    %cst_82 = arith.constant dense<0.000000e+00> : vector<4x256xf32>
    %196 = tpu.matmul %194, %195, %cst_82 {dimension_numbers = #tpu.dot_dimension_numbers<[1], [0], [0], [1], [0, 0, 1, 1], [], []>} : vector<4x256xbf16>, vector<256x256xbf16>, vector<4x256xf32> -> vector<4x256xf32>
    %c0_83 = arith.constant 0 : index
    %c0_84 = arith.constant 0 : index
    %197 = vector.load %arg16[%c0_83, %c0_84] : memref<1x256xf32, #tpu.memory_space<vmem>>, vector<1x256xf32>
    %198 = vector.broadcast %197 : vector<1x256xf32> to vector<4x256xf32>
    %199 = arith.addf %196, %198 : vector<4x256xf32>
    %c0_85 = arith.constant 0 : index
    %c0_86 = arith.constant 0 : index
    %c0_87 = arith.constant 0 : index
    %200 = vector.load %arg17[%c0_85, %c0_86, %c0_87] : memref<1x4x256xf32, #tpu.memory_space<vmem>>, vector<1x4x256xf32>
    %201 = vector.shape_cast %200 : vector<1x4x256xf32> to vector<4x256xf32>
    %202 = vector.shape_cast %199 : vector<4x256xf32> to vector<1x4x256xf32>
    tpu.vector_store %arg17[%c0_85, %c0_86, %c0_87], %202 {strides = array<i32>} : memref<1x4x256xf32, #tpu.memory_space<vmem>>, vector<1x4x256xf32>,
    return
  }
  func.func @transform_0(%arg0: i32) -> (i32, i32, i32) {
    %c0_i32 = arith.constant 0 : i32
    %c0_i32_0 = arith.constant 0 : i32
    %c0_i32_1 = arith.constant 0 : i32
    return %arg0, %c0_i32, %c0_i32_0 : i32, i32, i32
  }
  func.func @transform_1(%arg0: i32) -> (i32, i32) {
    %c0_i32 = arith.constant 0 : i32
    %c0_i32_0 = arith.constant 0 : i32
    %c0_i32_1 = arith.constant 0 : i32
    return %c0_i32, %c0_i32_0 : i32, i32
  }
  func.func @transform_2(%arg0: i32) -> (i32, i32) {
    %c0_i32 = arith.constant 0 : i32
    %c0_i32_0 = arith.constant 0 : i32
    %c0_i32_1 = arith.constant 0 : i32
    return %c0_i32, %c0_i32_0 : i32, i32
  }
  func.func @transform_3(%arg0: i32) -> (i32, i32) {
    %c0_i32 = arith.constant 0 : i32
    %c0_i32_0 = arith.constant 0 : i32
    %c0_i32_1 = arith.constant 0 : i32
    return %c0_i32, %c0_i32_0 : i32, i32
  }
  func.func @transform_4(%arg0: i32) -> (i32, i32) {
    %c0_i32 = arith.constant 0 : i32
    %c0_i32_0 = arith.constant 0 : i32
    %c0_i32_1 = arith.constant 0 : i32
    return %c0_i32, %c0_i32_0 : i32, i32
  }
  func.func @transform_5(%arg0: i32) -> (i32, i32) {
    %c0_i32 = arith.constant 0 : i32
    %c0_i32_0 = arith.constant 0 : i32
    %c0_i32_1 = arith.constant 0 : i32
    return %c0_i32, %c0_i32_0 : i32, i32
  }
  func.func @transform_6(%arg0: i32) -> (i32, i32) {
    %c0_i32 = arith.constant 0 : i32
    %c0_i32_0 = arith.constant 0 : i32
    %c0_i32_1 = arith.constant 0 : i32
    return %c0_i32, %c0_i32_0 : i32, i32
  }
  func.func @transform_7(%arg0: i32) -> (i32, i32) {
    %c0_i32 = arith.constant 0 : i32
    %c0_i32_0 = arith.constant 0 : i32
    %c0_i32_1 = arith.constant 0 : i32
    return %c0_i32, %c0_i32_0 : i32, i32
  }
  func.func @transform_8(%arg0: i32) -> (i32, i32) {
    %c0_i32 = arith.constant 0 : i32
    %c0_i32_0 = arith.constant 0 : i32
    %c0_i32_1 = arith.constant 0 : i32
    return %c0_i32, %c0_i32_0 : i32, i32
  }
  func.func @transform_9(%arg0: i32) -> (i32, i32) {
    %c0_i32 = arith.constant 0 : i32
    %c0_i32_0 = arith.constant 0 : i32
    %c0_i32_1 = arith.constant 0 : i32
    return %c0_i32, %c0_i32_0 : i32, i32
  }
  func.func @transform_10(%arg0: i32) -> (i32, i32) {
    %c0_i32 = arith.constant 0 : i32
    %c0_i32_0 = arith.constant 0 : i32
    %c0_i32_1 = arith.constant 0 : i32
    return %c0_i32, %c0_i32_0 : i32, i32
  }
  func.func @transform_11(%arg0: i32) -> (i32, i32) {
    %c0_i32 = arith.constant 0 : i32
    %c0_i32_0 = arith.constant 0 : i32
    %c0_i32_1 = arith.constant 0 : i32
    return %c0_i32, %c0_i32_0 : i32, i32
  }
  func.func @transform_12(%arg0: i32) -> (i32, i32) {
    %c0_i32 = arith.constant 0 : i32
    %c0_i32_0 = arith.constant 0 : i32
    %c0_i32_1 = arith.constant 0 : i32
    return %c0_i32, %c0_i32_0 : i32, i32
  }
  func.func @transform_13(%arg0: i32) -> (i32, i32) {
    %c0_i32 = arith.constant 0 : i32
    %c0_i32_0 = arith.constant 0 : i32
    %c0_i32_1 = arith.constant 0 : i32
    return %c0_i32, %c0_i32_0 : i32, i32
  }
  func.func @transform_14(%arg0: i32) -> (i32, i32) {
    %c0_i32 = arith.constant 0 : i32
    %c0_i32_0 = arith.constant 0 : i32
    %c0_i32_1 = arith.constant 0 : i32
    return %c0_i32, %c0_i32_0 : i32, i32
  }
  func.func @transform_15(%arg0: i32) -> (i32, i32) {
    %c0_i32 = arith.constant 0 : i32
    %c0_i32_0 = arith.constant 0 : i32
    %c0_i32_1 = arith.constant 0 : i32
    return %c0_i32, %c0_i32_0 : i32, i32
  }
  func.func @transform_16(%arg0: i32) -> (i32, i32, i32) {
    %c0_i32 = arith.constant 0 : i32
    %c0_i32_0 = arith.constant 0 : i32
    %c0_i32_1 = arith.constant 0 : i32
    return %arg0, %c0_i32, %c0_i32_0 : i32, i32, i32
  }
}

</mosaic_0001>

<llo_original>
// kernel: tile.28
$region0: #{tile.28}
  #allocation0 [shape = 's32[1]{0}', space=sflag, size = 0x4, scoped, tag = 'scoped memory for tile.28']
  %s0 = inlined_call_operand.vmem [shape: f32[4], index: 0, kind: input, shape index: {}]
  %s1 = inlined_call_operand.vmem [shape: f32[64,4], index: 1, kind: output, shape index: {}]
  // Predicated region
  $region2: #{tile.28} parent=0 // pred_check
    _
  $region3: #{tile.28} parent=0 // pred_check_branch
    %3 = sbr.rel (0) target = $region5
  $region4: #{tile.28} parent=0 // pred_region
    _
  $region5: #{tile.28} parent=0 // pred_fallthru
    _
  %v4 = vld [vmem:[%s0] ss:$0 sm:$0xff]
  %5 = vst [vmem:[%s1] sm:$0xff] %v4
  %s6 = scalar_lea.vmem %s1, 8
  %7 = vst [vmem:[%s6] sm:$0xff] %v4
  %s8 = scalar_lea.vmem %s1, 16
  %9 = vst [vmem:[%s8] sm:$0xff] %v4
  %s10 = scalar_lea.vmem %s1, 24
  %11 = vst [vmem:[%s10] sm:$0xff] %v4
  %s12 = scalar_lea.vmem %s1, 32
  %13 = vst [vmem:[%s12] sm:$0xff] %v4
  %s14 = scalar_lea.vmem %s1, 40
  %15 = vst [vmem:[%s14] sm:$0xff] %v4
  %s16 = scalar_lea.vmem %s1, 48
  %17 = vst [vmem:[%s16] sm:$0xff] %v4
  %s18 = scalar_lea.vmem %s1, 56
  %19 = vst [vmem:[%s18] sm:$0xff] %v4

// kernel: tile.23
$region0: #{tile.23}
  #allocation0 [shape = 's32[1]{0}', space=sflag, size = 0x4, scoped, tag = 'scoped memory for tile.23']
  %s0 = inlined_call_operand.vmem [shape: f32[16], index: 0, kind: input, shape index: {}]
  %s1 = inlined_call_operand.vmem [shape: f32[16,16], index: 1, kind: output, shape index: {}]
  // Predicated region
  $region2: #{tile.23} parent=0 // pred_check
    _
  $region3: #{tile.23} parent=0 // pred_check_branch
    %3 = sbr.rel (0) target = $region5
  $region4: #{tile.23} parent=0 // pred_region
    _
  $region5: #{tile.23} parent=0 // pred_fallthru
    _
  %v4 = vld [vmem:[%s0] ss:$0 sm:$0xff]
  %5 = vst [vmem:[%s1] sm:$0xff] %v4
  %s6 = scalar_lea.vmem %s1, 8
  %7 = vst [vmem:[%s6] sm:$0xff] %v4

// kernel: tile.29
$region0: #{tile.29}
  %s0 = inlined_call_operand.vmem [shape: f32[64,4], index: 0, kind: input, shape index: {}]
  %s1 = inlined_call_operand.vmem [shape: f32[1,256], index: 1, kind: output, shape index: {}]
  $region1: #{tile.29} parent=0
    #allocation0 [shape = 'u8[8192]{0}', space=vmem, size = 0x2000, scoped, tag = 'scoped mem for output reshape']
    %v2 = vld [vmem:[%s0] sm:$0x1]
    %s3 = scalar_lea.vmem %s0, 31
    %v4 = vld [vmem:[%s3] sm:$0x2]
    %vm5 = vcmask 1041409
    %v6 = vsel %vm5, %v4, %v2
    %vm7 = vcmask 31744
    %8 = vst.msk [vmem:[#allocation0] ss:$8 sm:$0x3] %vm7, %v6
    %s9 = scalar_lea.vmem %s0, 31
    %v10 = vld [vmem:[%s9] sm:$0x1]
    %s11 = scalar_lea.vmem %s0, 62
    %v12 = vld [vmem:[%s11] sm:$0x2]
    %vm13 = vcmask 1041409
    %v14 = vsel %vm13, %v12, %v10
    %15 = vrot.lane.b32.xlu0 %v14, 124
    %v16 = vpop.permute.xlu0 %15
    %vm17 = vcmask 1048544
    %18 = vst.msk [vmem:[#allocation0] ss:$8 sm:$0x3] %vm17, %v16
    %s19 = scalar_lea.vmem %s0, 30
    %v20 = vld [vmem:[%s19] sm:$0x1]
    %s21 = scalar_lea.vmem %s0, 61
    %v22 = vld [vmem:[%s21] sm:$0x2]
    %vm23 = vcmask 1041409
    %v24 = vsel %vm23, %v22, %v20
    %25 = vrot.lane.b32.xlu0 %v24, 120
    %v26 = vpop.permute.xlu0 %25
    %vm27 = vcmask 1015744
    %28 = vst.msk [vmem:[#allocation0] ss:$8 sm:$0x3] %vm27, %v26
    %s29 = scalar_lea.vmem %s0, 29
    %v30 = vld [vmem:[%s29] sm:$0x1]
    %s31 = scalar_lea.vmem %s0, 60
    %v32 = vld [vmem:[%s31] sm:$0x2]
    %vm33 = vcmask 1041409
    %v34 = vsel %vm33, %v32, %v30
    %35 = vrot.lane.b32.xlu0 %v34, 116
    %v36 = vpop.permute.xlu0 %35
    %vm37 = vcmask 982944
    %38 = vst.msk [vmem:[#allocation0] ss:$8 sm:$0x3] %vm37, %v36
    %s39 = scalar_lea.vmem %s0, 28
    %v40 = vld [vmem:[%s39] sm:$0x1]
    %s41 = scalar_lea.vmem %s0, 59
    %v42 = vld [vmem:[%s41] sm:$0x2]
    %vm43 = vcmask 1041409
    %v44 = vsel %vm43, %v42, %v40
    %45 = vrot.lane.b32.xlu0 %v44, 112
    %v46 = vpop.permute.xlu0 %45
    %vm47 = vcmask 950144
    %48 = vst.msk [vmem:[#allocation0] ss:$8 sm:$0x3] %vm47, %v46
    %s49 = scalar_lea.vmem %s0, 27
    %v50 = vld [vmem:[%s49] sm:$0x1]
    %s51 = scalar_lea.vmem %s0, 58
    %v52 = vld [vmem:[%s51] sm:$0x2]
    %vm53 = vcmask 1041409
    %v54 = vsel %vm53, %v52, %v50
    %55 = vrot.lane.b32.xlu0 %v54, 108
    %v56 = vpop.permute.xlu0 %55
    %vm57 = vcmask 917344
    %58 = vst.msk [vmem:[#allocation0] ss:$8 sm:$0x3] %vm57, %v56
    %s59 = scalar_lea.vmem %s0, 26
    %v60 = vld [vmem:[%s59] sm:$0x1]
    %s61 = scalar_lea.vmem %s0, 57
    %v62 = vld [vmem:[%s61] sm:$0x2]
    %vm63 = vcmask 1041409
    %v64 = vsel %vm63, %v62, %v60
    %65 = vrot.lane.b32.xlu0 %v64, 104
    %v66 = vpop.permute.xlu0 %65
    %vm67 = vcmask 884544
    %68 = vst.msk [vmem:[#allocation0] ss:$8 sm:$0x3] %vm67, %v66
    %s69 = scalar_lea.vmem %s0, 25
    %v70 = vld [vmem:[%s69] sm:$0x1]
    %s71 = scalar_lea.vmem %s0, 56
    %v72 = vld [vmem:[%s71] sm:$0x2]
    %vm73 = vcmask 1041409
    %v74 = vsel %vm73, %v72, %v70
    %75 = vrot.lane.b32.xlu0 %v74, 100
    %v76 = vpop.permute.xlu0 %75
    %vm77 = vcmask 851744
    %78 = vst.msk [vmem:[#allocation0] ss:$8 sm:$0x3] %vm77, %v76
    %s79 = scalar_lea.vmem %s0, 24
    %v80 = vld [vmem:[%s79] sm:$0x1]
    %s81 = scalar_lea.vmem %s0, 55
    %v82 = vld [vmem:[%s81] sm:$0x2]
    %vm83 = vcmask 1041409
    %v84 = vsel %vm83, %v82, %v80
    %85 = vrot.lane.b32.xlu0 %v84, 96
    %v86 = vpop.permute.xlu0 %85
    %vm87 = vcmask 818944
    %88 = vst.msk [vmem:[#allocation0] ss:$8 sm:$0x3] %vm87, %v86
    %s89 = scalar_lea.vmem %s0, 23
    %v90 = vld [vmem:[%s89] sm:$0x1]
    %s91 = scalar_lea.vmem %s0, 54
    %v92 = vld [vmem:[%s91] sm:$0x2]
    %vm93 = vcmask 1041409
    %v94 = vsel %vm93, %v92, %v90
    %95 = vrot.lane.b32.xlu0 %v94, 92
    %v96 = vpop.permute.xlu0 %95
    %vm97 = vcmask 786144
    %98 = vst.msk [vmem:[#allocation0] ss:$8 sm:$0x3] %vm97, %v96
    %s99 = scalar_lea.vmem %s0, 22
    %v100 = vld [vmem:[%s99] sm:$0x1]
    %s101 = scalar_lea.vmem %s0, 53
    %v102 = vld [vmem:[%s101] sm:$0x2]
    %vm103 = vcmask 1041409
    %v104 = vsel %vm103, %v102, %v100
    %105 = vrot.lane.b32.xlu0 %v104, 88
    %v106 = vpop.permute.xlu0 %105
    %vm107 = vcmask 753344
    %108 = vst.msk [vmem:[#allocation0] ss:$8 sm:$0x3] %vm107, %v106
    %s109 = scalar_lea.vmem %s0, 21
    %v110 = vld [vmem:[%s109] sm:$0x1]
    %s111 = scalar_lea.vmem %s0, 52
    %v112 = vld [vmem:[%s111] sm:$0x2]
    %vm113 = vcmask 1041409
    %v114 = vsel %vm113, %v112, %v110
    %115 = vrot.lane.b32.xlu0 %v114, 84
    %v116 = vpop.permute.xlu0 %115
    %vm117 = vcmask 720544
    %118 = vst.msk [vmem:[#allocation0] ss:$8 sm:$0x3] %vm117, %v116
    %s119 = scalar_lea.vmem %s0, 20
    %v120 = vld [vmem:[%s119] sm:$0x1]
    %s121 = scalar_lea.vmem %s0, 51
    %v122 = vld [vmem:[%s121] sm:$0x2]
    %vm123 = vcmask 1041409
    %v124 = vsel %vm123, %v122, %v120
    %125 = vrot.lane.b32.xlu0 %v124, 80
    %v126 = vpop.permute.xlu0 %125
    %vm127 = vcmask 687744
    %128 = vst.msk [vmem:[#allocation0] ss:$8 sm:$0x3] %vm127, %v126
    %s129 = scalar_lea.vmem %s0, 19
    %v130 = vld [vmem:[%s129] sm:$0x1]
    %s131 = scalar_lea.vmem %s0, 50
    %v132 = vld [vmem:[%s131] sm:$0x2]
    %vm133 = vcmask 1041409
    %v134 = vsel %vm133, %v132, %v130
    %135 = vrot.lane.b32.xlu0 %v134, 76
    %v136 = vpop.permute.xlu0 %135
    %vm137 = vcmask 654944
    %138 = vst.msk [vmem:[#allocation0] ss:$8 sm:$0x3] %vm137, %v136
    %s139 = scalar_lea.vmem %s0, 18
    %v140 = vld [vmem:[%s139] sm:$0x1]
    %s141 = scalar_lea.vmem %s0, 49
    %v142 = vld [vmem:[%s141] sm:$0x2]
    %vm143 = vcmask 1041409
    %v144 = vsel %vm143, %v142, %v140
    %145 = vrot.lane.b32.xlu0 %v144, 72
    %v146 = vpop.permute.xlu0 %145
    %vm147 = vcmask 622144
    %148 = vst.msk [vmem:[#allocation0] ss:$8 sm:$0x3] %vm147, %v146
    %s149 = scalar_lea.vmem %s0, 17
    %v150 = vld [vmem:[%s149] sm:$0x1]
    %s151 = scalar_lea.vmem %s0, 48
    %v152 = vld [vmem:[%s151] sm:$0x2]
    %vm153 = vcmask 1041409
    %v154 = vsel %vm153, %v152, %v150
    %155 = vrot.lane.b32.xlu0 %v154, 68
    %v156 = vpop.permute.xlu0 %155
    %vm157 = vcmask 589344
    %158 = vst.msk [vmem:[#allocation0] ss:$8 sm:$0x3] %vm157, %v156
    %s159 = scalar_lea.vmem %s0, 16
    %v160 = vld [vmem:[%s159] sm:$0x1]
    %s161 = scalar_lea.vmem %s0, 47
    %v162 = vld [vmem:[%s161] sm:$0x2]
    %vm163 = vcmask 1041409
    %v164 = vsel %vm163, %v162, %v160
    %165 = vrot.lane.b32.xlu0 %v164, 64
    %v166 = vpop.permute.xlu0 %165
    %vm167 = vcmask 556544
    %168 = vst.msk [vmem:[#allocation0] ss:$8 sm:$0x3] %vm167, %v166
    %s169 = scalar_lea.vmem %s0, 15
    %v170 = vld [vmem:[%s169] sm:$0x1]
    %s171 = scalar_lea.vmem %s0, 46
    %v172 = vld [vmem:[%s171] sm:$0x2]
    %vm173 = vcmask 1041409
    %v174 = vsel %vm173, %v172, %v170
    %175 = vrot.lane.b32.xlu0 %v174, 60
    %v176 = vpop.permute.xlu0 %175
    %vm177 = vcmask 523744
    %178 = vst.msk [vmem:[#allocation0] ss:$8 sm:$0x3] %vm177, %v176
    %s179 = scalar_lea.vmem %s0, 14
    %v180 = vld [vmem:[%s179] sm:$0x1]
    %s181 = scalar_lea.vmem %s0, 45
    %v182 = vld [vmem:[%s181] sm:$0x2]
    %vm183 = vcmask 1041409
    %v184 = vsel %vm183, %v182, %v180
    %185 = vrot.lane.b32.xlu0 %v184, 56
    %v186 = vpop.permute.xlu0 %185
    %vm187 = vcmask 490944
    %188 = vst.msk [vmem:[#allocation0] ss:$8 sm:$0x3] %vm187, %v186
    %s189 = scalar_lea.vmem %s0, 13
    %v190 = vld [vmem:[%s189] sm:$0x1]
    %s191 = scalar_lea.vmem %s0, 44
    %v192 = vld [vmem:[%s191] sm:$0x2]
    %vm193 = vcmask 1041409
    %v194 = vsel %vm193, %v192, %v190
    %195 = vrot.lane.b32.xlu0 %v194, 52
    %v196 = vpop.permute.xlu0 %195
    %vm197 = vcmask 458144
    %198 = vst.msk [vmem:[#allocation0] ss:$8 sm:$0x3] %vm197, %v196
    %s199 = scalar_lea.vmem %s0, 12
    %v200 = vld [vmem:[%s199] sm:$0x1]
    %s201 = scalar_lea.vmem %s0, 43
    %v202 = vld [vmem:[%s201] sm:$0x2]
    %vm203 = vcmask 1041409
    %v204 = vsel %vm203, %v202, %v200
    %205 = vrot.lane.b32.xlu0 %v204, 48
    %v206 = vpop.permute.xlu0 %205
    %vm207 = vcmask 425344
    %208 = vst.msk [vmem:[#allocation0] ss:$8 sm:$0x3] %vm207, %v206
    %s209 = scalar_lea.vmem %s0, 11
    %v210 = vld [vmem:[%s209] sm:$0x1]
    %s211 = scalar_lea.vmem %s0, 42
    %v212 = vld [vmem:[%s211] sm:$0x2]
    %vm213 = vcmask 1041409
    %v214 = vsel %vm213, %v212, %v210
    %215 = vrot.lane.b32.xlu0 %v214, 44
    %v216 = vpop.permute.xlu0 %215
    %vm217 = vcmask 392544
    %218 = vst.msk [vmem:[#allocation0] ss:$8 sm:$0x3] %vm217, %v216
    %s219 = scalar_lea.vmem %s0, 10
    %v220 = vld [vmem:[%s219] sm:$0x1]
    %s221 = scalar_lea.vmem %s0, 41
    %v222 = vld [vmem:[%s221] sm:$0x2]
    %vm223 = vcmask 1041409
    %v224 = vsel %vm223, %v222, %v220
    %225 = vrot.lane.b32.xlu0 %v224, 40
    %v226 = vpop.permute.xlu0 %225
    %vm227 = vcmask 359744
    %228 = vst.msk [vmem:[#allocation0] ss:$8 sm:$0x3] %vm227, %v226
    %s229 = scalar_lea.vmem %s0, 9
    %v230 = vld [vmem:[%s229] sm:$0x1]
    %s231 = scalar_lea.vmem %s0, 40
    %v232 = vld [vmem:[%s231] sm:$0x2]
    %vm233 = vcmask 1041409
    %v234 = vsel %vm233, %v232, %v230
    %235 = vrot.lane.b32.xlu0 %v234, 36
    %v236 = vpop.permute.xlu0 %235
    %vm237 = vcmask 326944
    %238 = vst.msk [vmem:[#allocation0] ss:$8 sm:$0x3] %vm237, %v236
    %s239 = scalar_lea.vmem %s0, 8
    %v240 = vld [vmem:[%s239] sm:$0x1]
    %s241 = scalar_lea.vmem %s0, 39
    %v242 = vld [vmem:[%s241] sm:$0x2]
    %vm243 = vcmask 1041409
    %v244 = vsel %vm243, %v242, %v240
    %245 = vrot.lane.b32.xlu0 %v244, 32
    %v246 = vpop.permute.xlu0 %245
    %vm247 = vcmask 294144
    %248 = vst.msk [vmem:[#allocation0] ss:$8 sm:$0x3] %vm247, %v246
    %s249 = scalar_lea.vmem %s0, 7
    %v250 = vld [vmem:[%s249] sm:$0x1]
    %s251 = scalar_lea.vmem %s0, 38
    %v252 = vld [vmem:[%s251] sm:$0x2]
    %vm253 = vcmask 1041409
    %v254 = vsel %vm253, %v252, %v250
    %255 = vrot.lane.b32.xlu0 %v254, 28
    %v256 = vpop.permute.xlu0 %255
    %vm257 = vcmask 261344
    %258 = vst.msk [vmem:[#allocation0] ss:$8 sm:$0x3] %vm257, %v256
    %s259 = scalar_lea.vmem %s0, 6
    %v260 = vld [vmem:[%s259] sm:$0x1]
    %s261 = scalar_lea.vmem %s0, 37
    %v262 = vld [vmem:[%s261] sm:$0x2]
    %vm263 = vcmask 1041409
    %v264 = vsel %vm263, %v262, %v260
    %265 = vrot.lane.b32.xlu0 %v264, 24
    %v266 = vpop.permute.xlu0 %265
    %vm267 = vcmask 228544
    %268 = vst.msk [vmem:[#allocation0] ss:$8 sm:$0x3] %vm267, %v266
    %s269 = scalar_lea.vmem %s0, 5
    %v270 = vld [vmem:[%s269] sm:$0x1]
    %s271 = scalar_lea.vmem %s0, 36
    %v272 = vld [vmem:[%s271] sm:$0x2]
    %vm273 = vcmask 1041409
    %v274 = vsel %vm273, %v272, %v270
    %275 = vrot.lane.b32.xlu0 %v274, 20
    %v276 = vpop.permute.xlu0 %275
    %vm277 = vcmask 195744
    %278 = vst.msk [vmem:[#allocation0] ss:$8 sm:$0x3] %vm277, %v276
    %s279 = scalar_lea.vmem %s0, 4
    %v280 = vld [vmem:[%s279] sm:$0x1]
    %s281 = scalar_lea.vmem %s0, 35
    %v282 = vld [vmem:[%s281] sm:$0x2]
    %vm283 = vcmask 1041409
    %v284 = vsel %vm283, %v282, %v280
    %285 = vrot.lane.b32.xlu0 %v284, 16
    %v286 = vpop.permute.xlu0 %285
    %vm287 = vcmask 162944
    %288 = vst.msk [vmem:[#allocation0] ss:$8 sm:$0x3] %vm287, %v286
    %s289 = scalar_lea.vmem %s0, 3
    %v290 = vld [vmem:[%s289] sm:$0x1]
    %s291 = scalar_lea.vmem %s0, 34
    %v292 = vld [vmem:[%s291] sm:$0x2]
    %vm293 = vcmask 1041409
    %v294 = vsel %vm293, %v292, %v290
    %295 = vrot.lane.b32.xlu0 %v294, 12
    %v296 = vpop.permute.xlu0 %295
    %vm297 = vcmask 130144
    %298 = vst.msk [vmem:[#allocation0] ss:$8 sm:$0x3] %vm297, %v296
    %s299 = scalar_lea.vmem %s0, 2
    %v300 = vld [vmem:[%s299] sm:$0x1]
    %s301 = scalar_lea.vmem %s0, 33
    %v302 = vld [vmem:[%s301] sm:$0x2]
    %vm303 = vcmask 1041409
    %v304 = vsel %vm303, %v302, %v300
    %305 = vrot.lane.b32.xlu0 %v304, 8
    %v306 = vpop.permute.xlu0 %305
    %vm307 = vcmask 97344
    %308 = vst.msk [vmem:[#allocation0] ss:$8 sm:$0x3] %vm307, %v306
    %s309 = scalar_lea.vmem %s0, 1
    %v310 = vld [vmem:[%s309] sm:$0x1]
    %s311 = scalar_lea.vmem %s0, 32
    %v312 = vld [vmem:[%s311] sm:$0x2]
    %vm313 = vcmask 1041409
    %v314 = vsel %vm313, %v312, %v310
    %315 = vrot.lane.b32.xlu0 %v314, 4
    %v316 = vpop.permute.xlu0 %315
    %vm317 = vcmask 64544
    %318 = vst.msk [vmem:[#allocation0] ss:$8 sm:$0x3] %vm317, %v316
    %s320 = ssub.s32 2, 1
    %v321 = vld [vmem:[#allocation0] sm:%s320]
    %s323 = ssub.s32 2, 1
    %324 = vst [vmem:[%s1] sm:%s323] %v321
    %s325 = scalar_lea.vmem [#allocation0], 8
    %v326 = vld [vmem:[%s325] sm:%s320]
    %s328 = ssub.s32 2, 1
    %s329 = scalar_lea.vmem %s1, 1
    %330 = vst [vmem:[%s329] sm:%s328] %v326

// kernel: tile.24
$region0: #{tile.24}
  %s0 = inlined_call_operand.vmem [shape: f32[16,16], index: 0, kind: input, shape index: {}]
  %s1 = inlined_call_operand.vmem [shape: f32[1,256], index: 1, kind: output, shape index: {}]
  $region1: #{tile.24} parent=0
    #allocation0 [shape = 'u8[8192]{0}', space=vmem, size = 0x2000, scoped, tag = 'scoped mem for output reshape']
    %s2 = smov 3
    %v3 = vld [vmem:[%s0] ss:$8 sm:%s2]
    %vm4 = vcmask 130048
    %5 = vst.msk [vmem:[#allocation0] ss:$8 sm:$0x3] %vm4, %v3
    %s6 = scalar_lea.vmem %s0, 7
    %s7 = smov 3
    %v8 = vld [vmem:[%s6] ss:$8 sm:%s7]
    %9 = vrot.lane.b32.xlu0 %v8, 112
    %v10 = vpop.permute.xlu0 %9
    %vm11 = vcmask 1048448
    %12 = vst.msk [vmem:[#allocation0] ss:$8 sm:$0x3] %vm11, %v10
    %s13 = scalar_lea.vmem %s0, 6
    %s14 = smov 3
    %v15 = vld [vmem:[%s13] ss:$8 sm:%s14]
    %16 = vrot.lane.b32.xlu0 %v15, 96
    %v17 = vpop.permute.xlu0 %16
    %vm18 = vcmask 917248
    %19 = vst.msk [vmem:[#allocation0] ss:$8 sm:$0x3] %vm18, %v17
    %s20 = scalar_lea.vmem %s0, 5
    %s21 = smov 3
    %v22 = vld [vmem:[%s20] ss:$8 sm:%s21]
    %23 = vrot.lane.b32.xlu0 %v22, 80
    %v24 = vpop.permute.xlu0 %23
    %vm25 = vcmask 786048
    %26 = vst.msk [vmem:[#allocation0] ss:$8 sm:$0x3] %vm25, %v24
    %s27 = scalar_lea.vmem %s0, 4
    %s28 = smov 3
    %v29 = vld [vmem:[%s27] ss:$8 sm:%s28]
    %30 = vrot.lane.b32.xlu0 %v29, 64
    %v31 = vpop.permute.xlu0 %30
    %vm32 = vcmask 654848
    %33 = vst.msk [vmem:[#allocation0] ss:$8 sm:$0x3] %vm32, %v31
    %s34 = scalar_lea.vmem %s0, 3
    %s35 = smov 3
    %v36 = vld [vmem:[%s34] ss:$8 sm:%s35]
    %37 = vrot.lane.b32.xlu0 %v36, 48
    %v38 = vpop.permute.xlu0 %37
    %vm39 = vcmask 523648
    %40 = vst.msk [vmem:[#allocation0] ss:$8 sm:$0x3] %vm39, %v38
    %s41 = scalar_lea.vmem %s0, 2
    %s42 = smov 3
    %v43 = vld [vmem:[%s41] ss:$8 sm:%s42]
    %44 = vrot.lane.b32.xlu0 %v43, 32
    %v45 = vpop.permute.xlu0 %44
    %vm46 = vcmask 392448
    %47 = vst.msk [vmem:[#allocation0] ss:$8 sm:$0x3] %vm46, %v45
    %s48 = scalar_lea.vmem %s0, 1
    %s49 = smov 3
    %v50 = vld [vmem:[%s48] ss:$8 sm:%s49]
    %51 = vrot.lane.b32.xlu0 %v50, 16
    %v52 = vpop.permute.xlu0 %51
    %vm53 = vcmask 261248
    %54 = vst.msk [vmem:[#allocation0] ss:$8 sm:$0x3] %vm53, %v52
    %s56 = ssub.s32 2, 1
    %v57 = vld [vmem:[#allocation0] sm:%s56]
    %s59 = ssub.s32 2, 1
    %60 = vst [vmem:[%s1] sm:%s59] %v57
    %s61 = scalar_lea.vmem [#allocation0], 8
    %v62 = vld [vmem:[%s61] sm:%s56]
    %s64 = ssub.s32 2, 1
    %s65 = scalar_lea.vmem %s1, 1
    %66 = vst [vmem:[%s65] sm:%s64] %v62

// kernel: tile.18
$region0: #{tile.18}
  #allocation0 [shape = 's32[1]{0}', space=sflag, size = 0x4, scoped, tag = 'scoped memory for tile.18']
  %s0 = inlined_call_operand.vmem [shape: f32[32], index: 0, kind: input, shape index: {}]
  %s1 = inlined_call_operand.vmem [shape: f32[4,32], index: 1, kind: output, shape index: {}]
  // Predicated region
  $region2: #{tile.18} parent=0 // pred_check
    _
  $region3: #{tile.18} parent=0 // pred_check_branch
    %3 = sbr.rel (0) target = $region5
  $region4: #{tile.18} parent=0 // pred_region
    _
  $region5: #{tile.18} parent=0 // pred_fallthru
    _
  %v4 = vld [vmem:[%s0] ss:$0 sm:$0xff]
  %5 = vst [vmem:[%s1] sm:$0xf] %v4

// kernel: tile.19
$region0: #{tile.19}
  %s0 = inlined_call_operand.vmem [shape: f32[4,32], index: 0, kind: input, shape index: {}]
  %s1 = inlined_call_operand.vmem [shape: f32[1,128], index: 1, kind: output, shape index: {}]
  $region1: #{tile.19} parent=0
    #allocation0 [shape = 'u8[4096]{0}', space=vmem, size = 0x1000, scoped, tag = 'scoped mem for output reshape']
    #allocation1 [shape = 'u8[4096]{0}', space=vmem, size = 0x1000, scoped, tag = 'scoped mem for input reshape']
    %s3 = ssub.s32 16, 1
    %v4 = vld [vmem:[%s0] sm:%s3]
    %5 = vst [vmem:[#allocation1] sm:%s3] %v4
    %v6 = vld [vmem:[#allocation1] sm:$0x1]
    %vm7 = vcmask 261120
    %8 = vst.msk [vmem:[#allocation0] sm:$0x1] %vm7, %v6
    %s9 = scalar_lea.vmem [#allocation1], 3
    %v10 = vld [vmem:[%s9] sm:$0x1]
    %11 = vrot.lane.b32.xlu0 %v10, 96
    %v12 = vpop.permute.xlu0 %11
    %vm13 = vcmask 1048320
    %14 = vst.msk [vmem:[#allocation0] sm:$0x1] %vm13, %v12
    %s15 = scalar_lea.vmem [#allocation1], 2
    %v16 = vld [vmem:[%s15] sm:$0x1]
    %17 = vrot.lane.b32.xlu0 %v16, 64
    %v18 = vpop.permute.xlu0 %17
    %vm19 = vcmask 785920
    %20 = vst.msk [vmem:[#allocation0] sm:$0x1] %vm19, %v18
    %s21 = scalar_lea.vmem [#allocation1], 1
    %v22 = vld [vmem:[%s21] sm:$0x1]
    %23 = vrot.lane.b32.xlu0 %v22, 32
    %v24 = vpop.permute.xlu0 %23
    %vm25 = vcmask 523520
    %26 = vst.msk [vmem:[#allocation0] sm:$0x1] %vm25, %v24
    %s28 = ssub.s32 2, 1
    %v29 = vld [vmem:[#allocation0] sm:%s28]
    %s31 = ssub.s32 2, 1
    %32 = vst [vmem:[%s1] sm:%s31] %v29

// kernel: convnet_forward.1
$region0: #{convnet_forward.1}
  #allocation0 [shape = 'u32[]', space=smem, size = 0x4, offset = 0x4, fixed_abs, tag = 'smem constant byte address 0x4 - core index']
  #allocation1 [shape = 'u32[72,128]{1,0:T(1,128)}', space=vmem, size = 0x9000, scoped, tag = 'internal scratch']
  #allocation2 [shape = 'f32[176,16]{1,0:T(8,128)}', space=vmem, size = 0x16000, scoped, tag = 'scratch operand']
  #allocation3 [shape = 'f32[56,32]{1,0:T(8,128)}', space=vmem, size = 0x7000, scoped, tag = 'scratch operand']
  #allocation4 [shape = 'f32[4,64]{1,0:T(4,128)}', space=vmem, size = 0x800, scoped, tag = 'scratch operand']
  %s0 = inlined_call_operand.vmem [shape: f32[2,456,8], index: 0, kind: input, shape index: {}]
  %s1 = inlined_call_operand.vmem [shape: bf16[72,16], index: 1, kind: input, shape index: {}]
  %s2 = inlined_call_operand.vmem [shape: f32[1,16], index: 2, kind: input, shape index: {}]
  %s3 = inlined_call_operand.vmem [shape: bf16[144,32], index: 3, kind: input, shape index: {}]
  %s4 = inlined_call_operand.vmem [shape: f32[1,32], index: 4, kind: input, shape index: {}]
  %s5 = inlined_call_operand.vmem [shape: bf16[288,64], index: 5, kind: input, shape index: {}]
  %s6 = inlined_call_operand.vmem [shape: f32[1,64], index: 6, kind: input, shape index: {}]
  %s7 = inlined_call_operand.vmem [shape: f32[16,24], index: 7, kind: input, shape index: {}]
  %s8 = inlined_call_operand.vmem [shape: f32[8,16], index: 8, kind: input, shape index: {}]
  %s9 = inlined_call_operand.vmem [shape: f32[4,8], index: 9, kind: input, shape index: {}]
  %s10 = inlined_call_operand.vmem [shape: bf16[64,128], index: 10, kind: input, shape index: {}]
  %s11 = inlined_call_operand.vmem [shape: f32[1,128], index: 11, kind: input, shape index: {}]
  %s12 = inlined_call_operand.vmem [shape: bf16[128,256], index: 12, kind: input, shape index: {}]
  %s13 = inlined_call_operand.vmem [shape: f32[1,256], index: 13, kind: input, shape index: {}]
  %s14 = inlined_call_operand.vmem [shape: bf16[256,256], index: 14, kind: input, shape index: {}]
  %s15 = inlined_call_operand.vmem [shape: f32[1,256], index: 15, kind: input, shape index: {}]
  %s16 = inlined_call_operand.vmem [shape: f32[2,4,256], index: 16, kind: output, shape index: {}]
  %s17 = sld [smem:[#allocation0]]
  $region97: #{convnet_forward.1} parent=0
    _
  %s19 = ssub.s32 1, %s17
  %s20 = scalar_select 0, %s19, %s17
  loop: start=0, step=1, limit=4
  $region2: #{convnet_forward.1} parent=0 // loop_pre_header
    _
  $region3: #{convnet_forward.1} parent=0 // loop_header
    %s22 = sphi 0, %s26
    %p23 = scmp.ge.s32.totalorder %s22, 4
    %s32 = sphi 0, %s34
    %s35 = sphi 0, %s32
    %s36 = sphi 0, %s35
    %s52 = sphi 0, %s36
    %s56 = sphi 0, %s56
    %s58 = sphi 0, %s56
    %s59 = sphi 0, %s58
    %s73 = sphi 0, %s59
    %s77 = sphi 0, %s77
    %s79 = sphi 0, %s77
    %s80 = sphi 0, %s79
    %s94 = sphi 0, %s80
    %s98 = sphi 0, %s98
    %s100 = sphi 0, %s98
    %s101 = sphi 0, %s100
    %s115 = sphi 0, %s101
    %s119 = sphi 0, %s119
    %s121 = sphi 0, %s119
    %s122 = sphi 0, %s121
    %s136 = sphi 0, %s122
    %s140 = sphi 0, %s140
    %s142 = sphi 0, %s140
    %s143 = sphi 0, %s142
    %s157 = sphi 0, %s143
    %s161 = sphi 0, %s161
    %s163 = sphi 0, %s161
    %s164 = sphi 0, %s163
    %s178 = sphi 0, %s164
    %s182 = sphi 0, %s182
    %s184 = sphi 0, %s182
    %s185 = sphi 0, %s184
    %s199 = sphi 0, %s185
    %s203 = sphi 0, %s203
    %s205 = sphi 0, %s203
    %s206 = sphi 0, %s205
    %s220 = sphi 0, %s206
    %s224 = sphi 0, %s224
    %s226 = sphi 0, %s224
    %s227 = sphi 0, %s226
    %s241 = sphi 0, %s227
    %s245 = sphi 0, %s245
    %s247 = sphi 0, %s245
    %s248 = sphi 0, %s247
    %s262 = sphi 0, %s248
    %s266 = sphi 0, %s266
    %s268 = sphi 0, %s266
    %s269 = sphi 0, %s268
    %s283 = sphi 0, %s269
    %s287 = sphi 0, %s287
    %s289 = sphi 0, %s287
    %s290 = sphi 0, %s289
    %s304 = sphi 0, %s290
    %s308 = sphi 0, %s308
    %s310 = sphi 0, %s308
    %s311 = sphi 0, %s310
    %s325 = sphi 0, %s311
    %s329 = sphi 0, %s329
    %s331 = sphi 0, %s329
    %s332 = sphi 0, %s331
    %s346 = sphi 0, %s332
    %s350 = sphi 0, %s350
    %s352 = sphi 0, %s350
    %s353 = sphi 0, %s352
    %s367 = sphi 0, %s353
    %s373 = sphi 0, %s375
    %s376 = sphi 0, %s373
    %s377 = sphi 0, %s376
    %s393 = sphi 0, %s377
  $region4: #{convnet_forward.1} parent=0 // loop_header_branch
    %25 = sbr.rel (%p23) target = $region8
  $region5: #{convnet_forward.1} parent=0 // loop_body
    %s27 = ssub.s32 %s22, 1
    %s28 = ssub.s32 %s22, 2
    %s29 = sadd.s32 %s22, 1
    %s30 = ssub.s32 %s22, %s29
    %p31 = scmp.eq.s32.totalorder %s30, 0
    %s33 = sadd.s32 %s32, 1
    %s34 = scalar_select %p31, %s32, %s33
    %p37 = pneg %p31
    %p38 = scmp.eq.s32.totalorder %s22, 1
    %p39 = por %p37, %p38
    %p40 = scmp.ne.s32.totalorder %s32, %s35
    %p41 = scmp.eq.s32.totalorder %s22, 0
    %p42 = por %p40, %p41
    %p43 = scmp.ne.s32.totalorder %s32, %s35
    %p44 = scmp.eq.s32.totalorder %s27, 1
    %p45 = por %p43, %p44
    %p46 = scmp.ne.s32.totalorder %s35, %s36
    %p47 = scmp.eq.s32.totalorder %s27, 0
    %p48 = por %p46, %p47
    %p49 = scmp.ne.s32.totalorder %s35, %s36
    %p50 = scmp.eq.s32.totalorder %s28, 1
    %p51 = por %p49, %p50
    %p53 = scmp.ne.s32.totalorder %s36, %s52
    %p54 = scmp.eq.s32.totalorder %s28, 0
    %p55 = por %p53, %p54
    %s57 = sadd.s32 %s56, 1
    %p60 = scmp.eq.s32.totalorder %s22, 1
    %p61 = scmp.ne.s32.totalorder %s56, %s58
    %p62 = scmp.eq.s32.totalorder %s22, 0
    %p63 = por %p61, %p62
    %p64 = scmp.ne.s32.totalorder %s56, %s58
    %p65 = scmp.eq.s32.totalorder %s27, 1
    %p66 = por %p64, %p65
    %p67 = scmp.ne.s32.totalorder %s58, %s59
    %p68 = scmp.eq.s32.totalorder %s27, 0
    %p69 = por %p67, %p68
    %p70 = scmp.ne.s32.totalorder %s58, %s59
    %p71 = scmp.eq.s32.totalorder %s28, 1
    %p72 = por %p70, %p71
    %p74 = scmp.ne.s32.totalorder %s59, %s73
    %p75 = scmp.eq.s32.totalorder %s28, 0
    %p76 = por %p74, %p75
    %s78 = sadd.s32 %s77, 1
    %p81 = scmp.eq.s32.totalorder %s22, 1
    %p82 = scmp.ne.s32.totalorder %s77, %s79
    %p83 = scmp.eq.s32.totalorder %s22, 0
    %p84 = por %p82, %p83
    %p85 = scmp.ne.s32.totalorder %s77, %s79
    %p86 = scmp.eq.s32.totalorder %s27, 1
    %p87 = por %p85, %p86
    %p88 = scmp.ne.s32.totalorder %s79, %s80
    %p89 = scmp.eq.s32.totalorder %s27, 0
    %p90 = por %p88, %p89
    %p91 = scmp.ne.s32.totalorder %s79, %s80
    %p92 = scmp.eq.s32.totalorder %s28, 1
    %p93 = por %p91, %p92
    %p95 = scmp.ne.s32.totalorder %s80, %s94
    %p96 = scmp.eq.s32.totalorder %s28, 0
    %p97 = por %p95, %p96
    %s99 = sadd.s32 %s98, 1
    %p102 = scmp.eq.s32.totalorder %s22, 1
    %p103 = scmp.ne.s32.totalorder %s98, %s100
    %p104 = scmp.eq.s32.totalorder %s22, 0
    %p105 = por %p103, %p104
    %p106 = scmp.ne.s32.totalorder %s98, %s100
    %p107 = scmp.eq.s32.totalorder %s27, 1
    %p108 = por %p106, %p107
    %p109 = scmp.ne.s32.totalorder %s100, %s101
    %p110 = scmp.eq.s32.totalorder %s27, 0
    %p111 = por %p109, %p110
    %p112 = scmp.ne.s32.totalorder %s100, %s101
    %p113 = scmp.eq.s32.totalorder %s28, 1
    %p114 = por %p112, %p113
    %p116 = scmp.ne.s32.totalorder %s101, %s115
    %p117 = scmp.eq.s32.totalorder %s28, 0
    %p118 = por %p116, %p117
    %s120 = sadd.s32 %s119, 1
    %p123 = scmp.eq.s32.totalorder %s22, 1
    %p124 = scmp.ne.s32.totalorder %s119, %s121
    %p125 = scmp.eq.s32.totalorder %s22, 0
    %p126 = por %p124, %p125
    %p127 = scmp.ne.s32.totalorder %s119, %s121
    %p128 = scmp.eq.s32.totalorder %s27, 1
    %p129 = por %p127, %p128
    %p130 = scmp.ne.s32.totalorder %s121, %s122
    %p131 = scmp.eq.s32.totalorder %s27, 0
    %p132 = por %p130, %p131
    %p133 = scmp.ne.s32.totalorder %s121, %s122
    %p134 = scmp.eq.s32.totalorder %s28, 1
    %p135 = por %p133, %p134
    %p137 = scmp.ne.s32.totalorder %s122, %s136
    %p138 = scmp.eq.s32.totalorder %s28, 0
    %p139 = por %p137, %p138
    %s141 = sadd.s32 %s140, 1
    %p144 = scmp.eq.s32.totalorder %s22, 1
    %p145 = scmp.ne.s32.totalorder %s140, %s142
    %p146 = scmp.eq.s32.totalorder %s22, 0
    %p147 = por %p145, %p146
    %p148 = scmp.ne.s32.totalorder %s140, %s142
    %p149 = scmp.eq.s32.totalorder %s27, 1
    %p150 = por %p148, %p149
    %p151 = scmp.ne.s32.totalorder %s142, %s143
    %p152 = scmp.eq.s32.totalorder %s27, 0
    %p153 = por %p151, %p152
    %p154 = scmp.ne.s32.totalorder %s142, %s143
    %p155 = scmp.eq.s32.totalorder %s28, 1
    %p156 = por %p154, %p155
    %p158 = scmp.ne.s32.totalorder %s143, %s157
    %p159 = scmp.eq.s32.totalorder %s28, 0
    %p160 = por %p158, %p159
    %s162 = sadd.s32 %s161, 1
    %p165 = scmp.eq.s32.totalorder %s22, 1
    %p166 = scmp.ne.s32.totalorder %s161, %s163
    %p167 = scmp.eq.s32.totalorder %s22, 0
    %p168 = por %p166, %p167
    %p169 = scmp.ne.s32.totalorder %s161, %s163
    %p170 = scmp.eq.s32.totalorder %s27, 1
    %p171 = por %p169, %p170
    %p172 = scmp.ne.s32.totalorder %s163, %s164
    %p173 = scmp.eq.s32.totalorder %s27, 0
    %p174 = por %p172, %p173
    %p175 = scmp.ne.s32.totalorder %s163, %s164
    %p176 = scmp.eq.s32.totalorder %s28, 1
    %p177 = por %p175, %p176
    %p179 = scmp.ne.s32.totalorder %s164, %s178
    %p180 = scmp.eq.s32.totalorder %s28, 0
    %p181 = por %p179, %p180
    %s183 = sadd.s32 %s182, 1
    %p186 = scmp.eq.s32.totalorder %s22, 1
    %p187 = scmp.ne.s32.totalorder %s182, %s184
    %p188 = scmp.eq.s32.totalorder %s22, 0
    %p189 = por %p187, %p188
    %p190 = scmp.ne.s32.totalorder %s182, %s184
    %p191 = scmp.eq.s32.totalorder %s27, 1
    %p192 = por %p190, %p191
    %p193 = scmp.ne.s32.totalorder %s184, %s185
    %p194 = scmp.eq.s32.totalorder %s27, 0
    %p195 = por %p193, %p194
    %p196 = scmp.ne.s32.totalorder %s184, %s185
    %p197 = scmp.eq.s32.totalorder %s28, 1
    %p198 = por %p196, %p197
    %p200 = scmp.ne.s32.totalorder %s185, %s199
    %p201 = scmp.eq.s32.totalorder %s28, 0
    %p202 = por %p200, %p201
    %s204 = sadd.s32 %s203, 1
    %p207 = scmp.eq.s32.totalorder %s22, 1
    %p208 = scmp.ne.s32.totalorder %s203, %s205
    %p209 = scmp.eq.s32.totalorder %s22, 0
    %p210 = por %p208, %p209
    %p211 = scmp.ne.s32.totalorder %s203, %s205
    %p212 = scmp.eq.s32.totalorder %s27, 1
    %p213 = por %p211, %p212
    %p214 = scmp.ne.s32.totalorder %s205, %s206
    %p215 = scmp.eq.s32.totalorder %s27, 0
    %p216 = por %p214, %p215
    %p217 = scmp.ne.s32.totalorder %s205, %s206
    %p218 = scmp.eq.s32.totalorder %s28, 1
    %p219 = por %p217, %p218
    %p221 = scmp.ne.s32.totalorder %s206, %s220
    %p222 = scmp.eq.s32.totalorder %s28, 0
    %p223 = por %p221, %p222
    %s225 = sadd.s32 %s224, 1
    %p228 = scmp.eq.s32.totalorder %s22, 1
    %p229 = scmp.ne.s32.totalorder %s224, %s226
    %p230 = scmp.eq.s32.totalorder %s22, 0
    %p231 = por %p229, %p230
    %p232 = scmp.ne.s32.totalorder %s224, %s226
    %p233 = scmp.eq.s32.totalorder %s27, 1
    %p234 = por %p232, %p233
    %p235 = scmp.ne.s32.totalorder %s226, %s227
    %p236 = scmp.eq.s32.totalorder %s27, 0
    %p237 = por %p235, %p236
    %p238 = scmp.ne.s32.totalorder %s226, %s227
    %p239 = scmp.eq.s32.totalorder %s28, 1
    %p240 = por %p238, %p239
    %p242 = scmp.ne.s32.totalorder %s227, %s241
    %p243 = scmp.eq.s32.totalorder %s28, 0
    %p244 = por %p242, %p243
    %s246 = sadd.s32 %s245, 1
    %p249 = scmp.eq.s32.totalorder %s22, 1
    %p250 = scmp.ne.s32.totalorder %s245, %s247
    %p251 = scmp.eq.s32.totalorder %s22, 0
    %p252 = por %p250, %p251
    %p253 = scmp.ne.s32.totalorder %s245, %s247
    %p254 = scmp.eq.s32.totalorder %s27, 1
    %p255 = por %p253, %p254
    %p256 = scmp.ne.s32.totalorder %s247, %s248
    %p257 = scmp.eq.s32.totalorder %s27, 0
    %p258 = por %p256, %p257
    %p259 = scmp.ne.s32.totalorder %s247, %s248
    %p260 = scmp.eq.s32.totalorder %s28, 1
    %p261 = por %p259, %p260
    %p263 = scmp.ne.s32.totalorder %s248, %s262
    %p264 = scmp.eq.s32.totalorder %s28, 0
    %p265 = por %p263, %p264
    %s267 = sadd.s32 %s266, 1
    %p270 = scmp.eq.s32.totalorder %s22, 1
    %p271 = scmp.ne.s32.totalorder %s266, %s268
    %p272 = scmp.eq.s32.totalorder %s22, 0
    %p273 = por %p271, %p272
    %p274 = scmp.ne.s32.totalorder %s266, %s268
    %p275 = scmp.eq.s32.totalorder %s27, 1
    %p276 = por %p274, %p275
    %p277 = scmp.ne.s32.totalorder %s268, %s269
    %p278 = scmp.eq.s32.totalorder %s27, 0
    %p279 = por %p277, %p278
    %p280 = scmp.ne.s32.totalorder %s268, %s269
    %p281 = scmp.eq.s32.totalorder %s28, 1
    %p282 = por %p280, %p281
    %p284 = scmp.ne.s32.totalorder %s269, %s283
    %p285 = scmp.eq.s32.totalorder %s28, 0
    %p286 = por %p284, %p285
    %s288 = sadd.s32 %s287, 1
    %p291 = scmp.eq.s32.totalorder %s22, 1
    %p292 = scmp.ne.s32.totalorder %s287, %s289
    %p293 = scmp.eq.s32.totalorder %s22, 0
    %p294 = por %p292, %p293
    %p295 = scmp.ne.s32.totalorder %s287, %s289
    %p296 = scmp.eq.s32.totalorder %s27, 1
    %p297 = por %p295, %p296
    %p298 = scmp.ne.s32.totalorder %s289, %s290
    %p299 = scmp.eq.s32.totalorder %s27, 0
    %p300 = por %p298, %p299
    %p301 = scmp.ne.s32.totalorder %s289, %s290
    %p302 = scmp.eq.s32.totalorder %s28, 1
    %p303 = por %p301, %p302
    %p305 = scmp.ne.s32.totalorder %s290, %s304
    %p306 = scmp.eq.s32.totalorder %s28, 0
    %p307 = por %p305, %p306
    %s309 = sadd.s32 %s308, 1
    %p312 = scmp.eq.s32.totalorder %s22, 1
    %p313 = scmp.ne.s32.totalorder %s308, %s310
    %p314 = scmp.eq.s32.totalorder %s22, 0
    %p315 = por %p313, %p314
    %p316 = scmp.ne.s32.totalorder %s308, %s310
    %p317 = scmp.eq.s32.totalorder %s27, 1
    %p318 = por %p316, %p317
    %p319 = scmp.ne.s32.totalorder %s310, %s311
    %p320 = scmp.eq.s32.totalorder %s27, 0
    %p321 = por %p319, %p320
    %p322 = scmp.ne.s32.totalorder %s310, %s311
    %p323 = scmp.eq.s32.totalorder %s28, 1
    %p324 = por %p322, %p323
    %p326 = scmp.ne.s32.totalorder %s311, %s325
    %p327 = scmp.eq.s32.totalorder %s28, 0
    %p328 = por %p326, %p327
    %s330 = sadd.s32 %s329, 1
    %p333 = scmp.eq.s32.totalorder %s22, 1
    %p334 = scmp.ne.s32.totalorder %s329, %s331
    %p335 = scmp.eq.s32.totalorder %s22, 0
    %p336 = por %p334, %p335
    %p337 = scmp.ne.s32.totalorder %s329, %s331
    %p338 = scmp.eq.s32.totalorder %s27, 1
    %p339 = por %p337, %p338
    %p340 = scmp.ne.s32.totalorder %s331, %s332
    %p341 = scmp.eq.s32.totalorder %s27, 0
    %p342 = por %p340, %p341
    %p343 = scmp.ne.s32.totalorder %s331, %s332
    %p344 = scmp.eq.s32.totalorder %s28, 1
    %p345 = por %p343, %p344
    %p347 = scmp.ne.s32.totalorder %s332, %s346
    %p348 = scmp.eq.s32.totalorder %s28, 0
    %p349 = por %p347, %p348
    %s351 = sadd.s32 %s350, 1
    %p354 = scmp.eq.s32.totalorder %s22, 1
    %p355 = scmp.ne.s32.totalorder %s350, %s352
    %p356 = scmp.eq.s32.totalorder %s22, 0
    %p357 = por %p355, %p356
    %p358 = scmp.ne.s32.totalorder %s350, %s352
    %p359 = scmp.eq.s32.totalorder %s27, 1
    %p360 = por %p358, %p359
    %p361 = scmp.ne.s32.totalorder %s352, %s353
    %p362 = scmp.eq.s32.totalorder %s27, 0
    %p363 = por %p361, %p362
    %p364 = scmp.ne.s32.totalorder %s352, %s353
    %p365 = scmp.eq.s32.totalorder %s28, 1
    %p366 = por %p364, %p365
    %p368 = scmp.ne.s32.totalorder %s353, %s367
    %p369 = scmp.eq.s32.totalorder %s28, 0
    %p370 = por %p368, %p369
    %s371 = ssub.s32 %s22, %s29
    %p372 = scmp.eq.s32.totalorder %s371, 0
    %s374 = sadd.s32 %s373, 1
    %s375 = scalar_select %p372, %s373, %s374
    %p378 = pneg %p372
    %p379 = scmp.eq.s32.totalorder %s22, 1
    %p380 = por %p378, %p379
    %p381 = scmp.ne.s32.totalorder %s373, %s376
    %p382 = scmp.eq.s32.totalorder %s22, 0
    %p383 = por %p381, %p382
    %p384 = scmp.ne.s32.totalorder %s373, %s376
    %p385 = scmp.eq.s32.totalorder %s27, 1
    %p386 = por %p384, %p385
    %p387 = scmp.ne.s32.totalorder %s376, %s377
    %p388 = scmp.eq.s32.totalorder %s27, 0
    %p389 = por %p387, %p388
    %p390 = scmp.ne.s32.totalorder %s376, %s377
    %p391 = scmp.eq.s32.totalorder %s28, 1
    %p392 = por %p390, %p391
    %p394 = scmp.ne.s32.totalorder %s377, %s393
    %p395 = scmp.eq.s32.totalorder %s28, 0
    %p396 = por %p394, %p395
    %p397 = scmp.le.s32.totalorder 1, %s22
    %p398 = scmp.lt.s32.totalorder %s22, 3
    %p399 = pnand %p397, %p398
    %p400 = pneg %p399
    // Predicated region
    $region9: #{convnet_forward.1} parent=5 // pred_check
      _
    $region10: #{convnet_forward.1} parent=5 // pred_check_branch
      %402 = sbr.rel (%p399) target = $region12
    $region11: #{convnet_forward.1} parent=5 // pred_region
      %s403 = ssub.s32 %s22, 1
      // Predicated region
      $region13: #{convnet_forward.1} parent=11 // pred_check
        %p404 = pneg %p69
      $region14: #{convnet_forward.1} parent=11 // pred_check_branch
        %406 = sbr.rel (%p404) target = $region16
      $region15: #{convnet_forward.1} parent=11 // pred_region
        _
      $region16: #{convnet_forward.1} parent=11 // pred_fallthru
        _
      // Predicated region
      $region17: #{convnet_forward.1} parent=11 // pred_check
        %p407 = pneg %p90
      $region18: #{convnet_forward.1} parent=11 // pred_check_branch
        %409 = sbr.rel (%p407) target = $region20
      $region19: #{convnet_forward.1} parent=11 // pred_region
        _
      $region20: #{convnet_forward.1} parent=11 // pred_fallthru
        _
      // Predicated region
      $region21: #{convnet_forward.1} parent=11 // pred_check
        %p410 = pneg %p111
      $region22: #{convnet_forward.1} parent=11 // pred_check_branch
        %412 = sbr.rel (%p410) target = $region24
      $region23: #{convnet_forward.1} parent=11 // pred_region
        _
      $region24: #{convnet_forward.1} parent=11 // pred_fallthru
        _
      // Predicated region
      $region25: #{convnet_forward.1} parent=11 // pred_check
        %p413 = pneg %p132
      $region26: #{convnet_forward.1} parent=11 // pred_check_branch
        %415 = sbr.rel (%p413) target = $region28
      $region27: #{convnet_forward.1} parent=11 // pred_region
        _
      $region28: #{convnet_forward.1} parent=11 // pred_fallthru
        _
      // Predicated region
      $region29: #{convnet_forward.1} parent=11 // pred_check
        %p416 = pneg %p153
      $region30: #{convnet_forward.1} parent=11 // pred_check_branch
        %418 = sbr.rel (%p416) target = $region32
      $region31: #{convnet_forward.1} parent=11 // pred_region
        _
      $region32: #{convnet_forward.1} parent=11 // pred_fallthru
        _
      // Predicated region
      $region33: #{convnet_forward.1} parent=11 // pred_check
        %p419 = pneg %p174
      $region34: #{convnet_forward.1} parent=11 // pred_check_branch
        %421 = sbr.rel (%p419) target = $region36
      $region35: #{convnet_forward.1} parent=11 // pred_region
        _
      $region36: #{convnet_forward.1} parent=11 // pred_fallthru
        _
      // Predicated region
      $region37: #{convnet_forward.1} parent=11 // pred_check
        %p422 = pneg %p195
      $region38: #{convnet_forward.1} parent=11 // pred_check_branch
        %424 = sbr.rel (%p422) target = $region40
      $region39: #{convnet_forward.1} parent=11 // pred_region
        _
      $region40: #{convnet_forward.1} parent=11 // pred_fallthru
        _
      // Predicated region
      $region41: #{convnet_forward.1} parent=11 // pred_check
        %p425 = pneg %p216
      $region42: #{convnet_forward.1} parent=11 // pred_check_branch
        %427 = sbr.rel (%p425) target = $region44
      $region43: #{convnet_forward.1} parent=11 // pred_region
        _
      $region44: #{convnet_forward.1} parent=11 // pred_fallthru
        _
      // Predicated region
      $region45: #{convnet_forward.1} parent=11 // pred_check
        %p428 = pneg %p237
      $region46: #{convnet_forward.1} parent=11 // pred_check_branch
        %430 = sbr.rel (%p428) target = $region48
      $region47: #{convnet_forward.1} parent=11 // pred_region
        _
      $region48: #{convnet_forward.1} parent=11 // pred_fallthru
        _
      // Predicated region
      $region49: #{convnet_forward.1} parent=11 // pred_check
        %p431 = pneg %p258
      $region50: #{convnet_forward.1} parent=11 // pred_check_branch
        %433 = sbr.rel (%p431) target = $region52
      $region51: #{convnet_forward.1} parent=11 // pred_region
        _
      $region52: #{convnet_forward.1} parent=11 // pred_fallthru
        _
      // Predicated region
      $region53: #{convnet_forward.1} parent=11 // pred_check
        %p434 = pneg %p279
      $region54: #{convnet_forward.1} parent=11 // pred_check_branch
        %436 = sbr.rel (%p434) target = $region56
      $region55: #{convnet_forward.1} parent=11 // pred_region
        _
      $region56: #{convnet_forward.1} parent=11 // pred_fallthru
        _
      // Predicated region
      $region57: #{convnet_forward.1} parent=11 // pred_check
        %p437 = pneg %p300
      $region58: #{convnet_forward.1} parent=11 // pred_check_branch
        %439 = sbr.rel (%p437) target = $region60
      $region59: #{convnet_forward.1} parent=11 // pred_region
        _
      $region60: #{convnet_forward.1} parent=11 // pred_fallthru
        _
      // Predicated region
      $region61: #{convnet_forward.1} parent=11 // pred_check
        %p440 = pneg %p321
      $region62: #{convnet_forward.1} parent=11 // pred_check_branch
        %442 = sbr.rel (%p440) target = $region64
      $region63: #{convnet_forward.1} parent=11 // pred_region
        _
      $region64: #{convnet_forward.1} parent=11 // pred_fallthru
        _
      // Predicated region
      $region65: #{convnet_forward.1} parent=11 // pred_check
        %p443 = pneg %p342
      $region66: #{convnet_forward.1} parent=11 // pred_check_branch
        %445 = sbr.rel (%p443) target = $region68
      $region67: #{convnet_forward.1} parent=11 // pred_region
        _
      $region68: #{convnet_forward.1} parent=11 // pred_fallthru
        _
      // Predicated region
      $region69: #{convnet_forward.1} parent=11 // pred_check
        %p446 = pneg %p363
      $region70: #{convnet_forward.1} parent=11 // pred_check_branch
        %448 = sbr.rel (%p446) target = $region72
      $region71: #{convnet_forward.1} parent=11 // pred_region
        _
      $region72: #{convnet_forward.1} parent=11 // pred_fallthru
        _
    $region12: #{convnet_forward.1} parent=5 // pred_fallthru
      _
    %p449 = scmp.lt.s32.totalorder %s22, 2
    // Predicated region
    $region73: #{convnet_forward.1} parent=5 // pred_check
      %p450 = pneg %p449
    $region74: #{convnet_forward.1} parent=5 // pred_check_branch
      %452 = sbr.rel (%p450) target = $region76
    $region75: #{convnet_forward.1} parent=5 // pred_region
      // Predicated region
      $region77: #{convnet_forward.1} parent=75 // pred_check
        %p453 = pneg %p42
      $region78: #{convnet_forward.1} parent=75 // pred_check_branch
        %455 = sbr.rel (%p453) target = $region80
      $region79: #{convnet_forward.1} parent=75 // pred_region
        %p456 = scmp.lt.s32.totalorder %s22, 1
        %s457 = scalar_select %p456, %s22, 1
        %s458 = smul.addr %s457, 57
        %s459 = smul.addr %s458, 8
        %s460 = scalar_lea.vmem %s0, %s459
      $region80: #{convnet_forward.1} parent=75 // pred_fallthru
        _
    $region76: #{convnet_forward.1} parent=5 // pred_fallthru
      _
    %p461 = scmp.le.s32.totalorder 1, %s22
    %p462 = scmp.lt.s32.totalorder %s22, 3
    %p463 = pnand %p461, %p462
    %p464 = pneg %p463
    // Predicated region
    $region81: #{convnet_forward.1} parent=5 // pred_check
      _
    $region82: #{convnet_forward.1} parent=5 // pred_check_branch
      %466 = sbr.rel (%p463) target = $region84
    $region83: #{convnet_forward.1} parent=5 // pred_region
      %s467 = ssub.s32 %s22, 1
      %p468 = scmp.lt.s32.totalorder %s27, 1
      %s469 = scalar_select %p468, %s27, 1
      %s470 = smul.addr %s469, 57
      %s471 = smul.addr %s470, 8
      %s472 = scalar_lea.vmem %s0, %s471
      %p473 = pneg %p48
      %p474 = pneg %p45
      %p475 = pneg %p69
      %p476 = pneg %p66
      %p477 = pneg %p90
      %p478 = pneg %p87
      %p479 = pneg %p111
      %p480 = pneg %p108
      %p481 = pneg %p132
      %p482 = pneg %p129
      %p483 = pneg %p153
      %p484 = pneg %p150
      %p485 = pneg %p174
      %p486 = pneg %p171
      %p487 = pneg %p195
      %p488 = pneg %p192
      %p489 = pneg %p216
      %p490 = pneg %p213
      %p491 = pneg %p237
      %p492 = pneg %p234
      %p493 = pneg %p258
      %p494 = pneg %p255
      %p495 = pneg %p279
      %p496 = pneg %p276
      %p497 = pneg %p300
      %p498 = pneg %p297
      %p499 = pneg %p321
      %p500 = pneg %p318
      %p501 = pneg %p342
      %p502 = pneg %p339
      %p503 = pneg %p363
      %p504 = pneg %p360
      %p505 = pneg %p389
      %p506 = pneg %p386
      %p507 = scmp.lt.s32.totalorder %s27, 1
      %s508 = scalar_select %p507, %s27, 1
      %s509 = smul.addr %s508, 2
      %s510 = smul.addr %s509, 4
      %s511 = scalar_lea.vmem %s16, %s510
      %p512 = scmp.lt.s32.totalorder %s27, 1
      %s513 = scalar_select %p512, %s27, 1
      %s514 = smul.addr %s513, 57
      %s515 = smul.addr %s514, 8
      %s516 = scalar_lea.vmem %s0, %s515
      %p517 = scmp.lt.s32.totalorder %s27, 1
      %s518 = scalar_select %p517, %s27, 1
      %s519 = smul.addr %s518, 2
      %s520 = smul.addr %s519, 4
      %s521 = scalar_lea.vmem %s16, %s520
      %v523 = vld [vmem:[%s516] sm:$0xff]
      %v524 = vld [vmem:[%s516 + $0x8] sm:$0xff]
      %v525 = vld [vmem:[%s516 + $0x10] sm:$0xff]
      %v526 = vld [vmem:[%s516 + $0x18] sm:$0xff]
      %v527 = vld [vmem:[%s516 + $0x20] sm:$0xff]
      %v528 = vld [vmem:[%s516 + $0x28] sm:$0xff]
      %v529 = vld [vmem:[%s516 + $0x30] sm:$0xff]
      %v530 = vld [vmem:[%s516 + $0x38] sm:$0xff]
      %v531 = vld [vmem:[%s516 + $0x40] sm:$0xff]
      %v532 = vld [vmem:[%s516 + $0x48] sm:$0xff]
      %v533 = vld [vmem:[%s516 + $0x50] sm:$0xff]
      %v534 = vld [vmem:[%s516 + $0x58] sm:$0xff]
      %v535 = vld [vmem:[%s516 + $0x60] sm:$0xff]
      %v536 = vld [vmem:[%s516 + $0x68] sm:$0xff]
      %v537 = vld [vmem:[%s516 + $0x70] sm:$0xff]
      %v538 = vld [vmem:[%s516 + $0x78] sm:$0xff]
      %v539 = vld [vmem:[%s516 + $0x80] sm:$0xff]
      %v540 = vld [vmem:[%s516 + $0x88] sm:$0xff]
      %v541 = vld [vmem:[%s516 + $0x90] sm:$0xff]
      %v542 = vld [vmem:[%s516 + $0x98] sm:$0xff]
      %v543 = vld [vmem:[%s516 + $0xa0] sm:$0xff]
      %v544 = vld [vmem:[%s516 + $0xa8] sm:$0xff]
      %v545 = vld [vmem:[%s516 + $0xb0] sm:$0xff]
      %v546 = vld [vmem:[%s516 + $0xb8] sm:$0xff]
      %v547 = vld [vmem:[%s516 + $0xc0] sm:$0xff]
      %v548 = vld [vmem:[%s516 + $0xc8] sm:$0xff]
      %v549 = vld [vmem:[%s516 + $0xd0] sm:$0xff]
      %v550 = vld [vmem:[%s516 + $0xd8] sm:$0xff]
      %v551 = vld [vmem:[%s516 + $0xe0] sm:$0xff]
      %v552 = vld [vmem:[%s516 + $0xe8] sm:$0xff]
      %v553 = vld [vmem:[%s516 + $0xf0] sm:$0xff]
      %v554 = vld [vmem:[%s516 + $0xf8] sm:$0xff]
      %v555 = vld [vmem:[%s516 + $0x100] sm:$0xff]
      %v556 = vld [vmem:[%s516 + $0x108] sm:$0xff]
      %v557 = vld [vmem:[%s516 + $0x110] sm:$0xff]
      %v558 = vld [vmem:[%s516 + $0x118] sm:$0xff]
      %v559 = vld [vmem:[%s516 + $0x120] sm:$0xff]
      %v560 = vld [vmem:[%s516 + $0x128] sm:$0xff]
      %v561 = vld [vmem:[%s516 + $0x130] sm:$0xff]
      %v562 = vld [vmem:[%s516 + $0x138] sm:$0xff]
      %v563 = vld [vmem:[%s516 + $0x140] sm:$0xff]
      %v564 = vld [vmem:[%s516 + $0x148] sm:$0xff]
      %v565 = vld [vmem:[%s516 + $0x150] sm:$0xff]
      %v566 = vld [vmem:[%s516 + $0x158] sm:$0xff]
      %v567 = vld [vmem:[%s516 + $0x160] sm:$0xff]
      %v568 = vld [vmem:[%s516 + $0x168] sm:$0xff]
      %v569 = vld [vmem:[%s516 + $0x170] sm:$0xff]
      %v570 = vld [vmem:[%s516 + $0x178] sm:$0xff]
      %v571 = vld [vmem:[%s516 + $0x180] sm:$0xff]
      %v572 = vld [vmem:[%s516 + $0x188] sm:$0xff]
      %v573 = vld [vmem:[%s516 + $0x190] sm:$0xff]
      %v574 = vld [vmem:[%s516 + $0x198] sm:$0xff]
      %v575 = vld [vmem:[%s516 + $0x1a0] sm:$0xff]
      %v576 = vld [vmem:[%s516 + $0x1a8] sm:$0xff]
      %v577 = vld [vmem:[%s516 + $0x1b0] sm:$0xff]
      %v578 = vld [vmem:[%s1] sm:$0xf]
      %v579 = vld [vmem:[%s1 + $0x4] sm:$0xf]
      %v580 = vld [vmem:[%s1 + $0x8] sm:$0xf]
      %v581 = vld [vmem:[%s1 + $0xc] sm:$0xf]
      %v582 = vld [vmem:[%s1 + $0x10] sm:$0xf]
      %v583 = vld [vmem:[%s1 + $0x14] sm:$0xf]
      %v584 = vld [vmem:[%s1 + $0x18] sm:$0xf]
      %v585 = vld [vmem:[%s1 + $0x1c] sm:$0xf]
      %v586 = vld [vmem:[%s1 + $0x20] sm:$0xf]
      %v587 = vld [vmem:[%s2] sm:$0x1]
      %vm637 = vcmask 1046528
      %v638 = vrot.slane %v523, 1
      %v639 = vrot.slane %v524, 1
      %v640 = vsel %vm637, %v638, %v639
      %v641 = vrot.slane %v525, 1
      %v642 = vsel %vm637, %v639, %v641
      %v643 = vrot.slane %v526, 1
      %v644 = vsel %vm637, %v641, %v643
      %v645 = vrot.slane %v527, 1
      %v646 = vsel %vm637, %v643, %v645
      %v647 = vrot.slane %v528, 1
      %v648 = vsel %vm637, %v645, %v647
      %v649 = vrot.slane %v529, 1
      %v650 = vsel %vm637, %v647, %v649
      %v651 = vrot.slane %v530, 1
      %v652 = vsel %vm637, %v649, %v651
      %v653 = vrot.slane %v531, 1
      %v654 = vsel %vm637, %v651, %v653
      %v655 = vrot.slane %v532, 1
      %v656 = vsel %vm637, %v653, %v655
      %v657 = vrot.slane %v533, 1
      %v658 = vsel %vm637, %v655, %v657
      %v659 = vrot.slane %v534, 1
      %v660 = vsel %vm637, %v657, %v659
      %v661 = vrot.slane %v535, 1
      %v662 = vsel %vm637, %v659, %v661
      %v663 = vrot.slane %v536, 1
      %v664 = vsel %vm637, %v661, %v663
      %v665 = vrot.slane %v537, 1
      %v666 = vsel %vm637, %v663, %v665
      %v667 = vrot.slane %v538, 1
      %v668 = vsel %vm637, %v665, %v667
      %v669 = vrot.slane %v539, 1
      %v670 = vsel %vm637, %v667, %v669
      %v671 = vrot.slane %v540, 1
      %v672 = vsel %vm637, %v669, %v671
      %v673 = vrot.slane %v541, 1
      %v674 = vsel %vm637, %v671, %v673
      %v675 = vrot.slane %v542, 1
      %v676 = vsel %vm637, %v673, %v675
      %v677 = vrot.slane %v543, 1
      %v678 = vsel %vm637, %v675, %v677
      %v679 = vrot.slane %v544, 1
      %v680 = vsel %vm637, %v677, %v679
      %v681 = vrot.slane %v545, 1
      %v682 = vsel %vm637, %v679, %v681
      %v683 = vrot.slane %v546, 1
      %v684 = vsel %vm637, %v681, %v683
      %v685 = vrot.slane %v547, 1
      %v686 = vsel %vm637, %v683, %v685
      %v687 = vrot.slane %v548, 1
      %v688 = vsel %vm637, %v685, %v687
      %v689 = vrot.slane %v549, 1
      %v690 = vsel %vm637, %v687, %v689
      %v691 = vrot.slane %v550, 1
      %v692 = vsel %vm637, %v689, %v691
      %v693 = vrot.slane %v551, 1
      %v694 = vsel %vm637, %v691, %v693
      %v695 = vrot.slane %v552, 1
      %v696 = vsel %vm637, %v693, %v695
      %v697 = vrot.slane %v553, 1
      %v698 = vsel %vm637, %v695, %v697
      %v699 = vrot.slane %v554, 1
      %v700 = vsel %vm637, %v697, %v699
      %v701 = vrot.slane %v555, 1
      %v702 = vsel %vm637, %v699, %v701
      %v703 = vrot.slane %v556, 1
      %v704 = vsel %vm637, %v701, %v703
      %v705 = vrot.slane %v557, 1
      %v706 = vsel %vm637, %v703, %v705
      %v707 = vrot.slane %v558, 1
      %v708 = vsel %vm637, %v705, %v707
      %v709 = vrot.slane %v559, 1
      %v710 = vsel %vm637, %v707, %v709
      %v711 = vrot.slane %v560, 1
      %v712 = vsel %vm637, %v709, %v711
      %v713 = vrot.slane %v561, 1
      %v714 = vsel %vm637, %v711, %v713
      %v715 = vrot.slane %v562, 1
      %v716 = vsel %vm637, %v713, %v715
      %v717 = vrot.slane %v563, 1
      %v718 = vsel %vm637, %v715, %v717
      %v719 = vrot.slane %v564, 1
      %v720 = vsel %vm637, %v717, %v719
      %v721 = vrot.slane %v565, 1
      %v722 = vsel %vm637, %v719, %v721
      %v723 = vrot.slane %v566, 1
      %v724 = vsel %vm637, %v721, %v723
      %v725 = vrot.slane %v567, 1
      %v726 = vsel %vm637, %v723, %v725
      %v727 = vrot.slane %v568, 1
      %v728 = vsel %vm637, %v725, %v727
      %v729 = vrot.slane %v569, 1
      %v730 = vsel %vm637, %v727, %v729
      %v731 = vrot.slane %v570, 1
      %v732 = vsel %vm637, %v729, %v731
      %v733 = vrot.slane %v571, 1
      %v734 = vsel %vm637, %v731, %v733
      %735 = vrot.lane.b32.xlu0 %v640, 8
      %v736 = vpop.permute.xlu0 %735
      %737 = vrot.lane.b32.xlu0 %v642, 8
      %v738 = vpop.permute.xlu0 %737
      %739 = vrot.lane.b32.xlu0 %v644, 8
      %v740 = vpop.permute.xlu0 %739
      %741 = vrot.lane.b32.xlu0 %v646, 8
      %v742 = vpop.permute.xlu0 %741
      %743 = vrot.lane.b32.xlu0 %v648, 8
      %v744 = vpop.permute.xlu0 %743
      %745 = vrot.lane.b32.xlu0 %v650, 8
      %v746 = vpop.permute.xlu0 %745
      %747 = vrot.lane.b32.xlu0 %v652, 8
      %v748 = vpop.permute.xlu0 %747
      %749 = vrot.lane.b32.xlu0 %v654, 8
      %v750 = vpop.permute.xlu0 %749
      %751 = vrot.lane.b32.xlu0 %v656, 8
      %v752 = vpop.permute.xlu0 %751
      %753 = vrot.lane.b32.xlu0 %v658, 8
      %v754 = vpop.permute.xlu0 %753
      %755 = vrot.lane.b32.xlu0 %v660, 8
      %v756 = vpop.permute.xlu0 %755
      %757 = vrot.lane.b32.xlu0 %v662, 8
      %v758 = vpop.permute.xlu0 %757
      %759 = vrot.lane.b32.xlu0 %v664, 8
      %v760 = vpop.permute.xlu0 %759
      %761 = vrot.lane.b32.xlu0 %v666, 8
      %v762 = vpop.permute.xlu0 %761
      %763 = vrot.lane.b32.xlu0 %v668, 8
      %v764 = vpop.permute.xlu0 %763
      %765 = vrot.lane.b32.xlu0 %v670, 8
      %v766 = vpop.permute.xlu0 %765
      %767 = vrot.lane.b32.xlu0 %v672, 8
      %v768 = vpop.permute.xlu0 %767
      %769 = vrot.lane.b32.xlu0 %v674, 8
      %v770 = vpop.permute.xlu0 %769
      %771 = vrot.lane.b32.xlu0 %v676, 8
      %v772 = vpop.permute.xlu0 %771
      %773 = vrot.lane.b32.xlu0 %v678, 8
      %v774 = vpop.permute.xlu0 %773
      %775 = vrot.lane.b32.xlu0 %v680, 8
      %v776 = vpop.permute.xlu0 %775
      %777 = vrot.lane.b32.xlu0 %v682, 8
      %v778 = vpop.permute.xlu0 %777
      %779 = vrot.lane.b32.xlu0 %v684, 8
      %v780 = vpop.permute.xlu0 %779
      %781 = vrot.lane.b32.xlu0 %v686, 8
      %v782 = vpop.permute.xlu0 %781
      %783 = vrot.lane.b32.xlu0 %v688, 8
      %v784 = vpop.permute.xlu0 %783
      %785 = vrot.lane.b32.xlu0 %v690, 8
      %v786 = vpop.permute.xlu0 %785
      %787 = vrot.lane.b32.xlu0 %v692, 8
      %v788 = vpop.permute.xlu0 %787
      %789 = vrot.lane.b32.xlu0 %v694, 8
      %v790 = vpop.permute.xlu0 %789
      %791 = vrot.lane.b32.xlu0 %v696, 8
      %v792 = vpop.permute.xlu0 %791
      %793 = vrot.lane.b32.xlu0 %v698, 8
      %v794 = vpop.permute.xlu0 %793
      %795 = vrot.lane.b32.xlu0 %v700, 8
      %v796 = vpop.permute.xlu0 %795
      %797 = vrot.lane.b32.xlu0 %v702, 8
      %v798 = vpop.permute.xlu0 %797
      %799 = vrot.lane.b32.xlu0 %v704, 8
      %v800 = vpop.permute.xlu0 %799
      %801 = vrot.lane.b32.xlu0 %v706, 8
      %v802 = vpop.permute.xlu0 %801
      %803 = vrot.lane.b32.xlu0 %v708, 8
      %v804 = vpop.permute.xlu0 %803
      %805 = vrot.lane.b32.xlu0 %v710, 8
      %v806 = vpop.permute.xlu0 %805
      %807 = vrot.lane.b32.xlu0 %v712, 8
      %v808 = vpop.permute.xlu0 %807
      %809 = vrot.lane.b32.xlu0 %v714, 8
      %v810 = vpop.permute.xlu0 %809
      %811 = vrot.lane.b32.xlu0 %v716, 8
      %v812 = vpop.permute.xlu0 %811
      %813 = vrot.lane.b32.xlu0 %v718, 8
      %v814 = vpop.permute.xlu0 %813
      %815 = vrot.lane.b32.xlu0 %v720, 8
      %v816 = vpop.permute.xlu0 %815
      %817 = vrot.lane.b32.xlu0 %v722, 8
      %v818 = vpop.permute.xlu0 %817
      %819 = vrot.lane.b32.xlu0 %v724, 8
      %v820 = vpop.permute.xlu0 %819
      %821 = vrot.lane.b32.xlu0 %v726, 8
      %v822 = vpop.permute.xlu0 %821
      %823 = vrot.lane.b32.xlu0 %v728, 8
      %v824 = vpop.permute.xlu0 %823
      %825 = vrot.lane.b32.xlu0 %v730, 8
      %v826 = vpop.permute.xlu0 %825
      %827 = vrot.lane.b32.xlu0 %v732, 8
      %v828 = vpop.permute.xlu0 %827
      %829 = vrot.lane.b32.xlu0 %v734, 8
      %v830 = vpop.permute.xlu0 %829
      %vm879 = vcmask 1045504
      %v880 = vrot.slane %v523, 2
      %v881 = vrot.slane %v524, 2
      %v882 = vsel %vm879, %v880, %v881
      %v883 = vrot.slane %v525, 2
      %v884 = vsel %vm879, %v881, %v883
      %v885 = vrot.slane %v526, 2
      %v886 = vsel %vm879, %v883, %v885
      %v887 = vrot.slane %v527, 2
      %v888 = vsel %vm879, %v885, %v887
      %v889 = vrot.slane %v528, 2
      %v890 = vsel %vm879, %v887, %v889
      %v891 = vrot.slane %v529, 2
      %v892 = vsel %vm879, %v889, %v891
      %v893 = vrot.slane %v530, 2
      %v894 = vsel %vm879, %v891, %v893
      %v895 = vrot.slane %v531, 2
      %v896 = vsel %vm879, %v893, %v895
      %v897 = vrot.slane %v532, 2
      %v898 = vsel %vm879, %v895, %v897
      %v899 = vrot.slane %v533, 2
      %v900 = vsel %vm879, %v897, %v899
      %v901 = vrot.slane %v534, 2
      %v902 = vsel %vm879, %v899, %v901
      %v903 = vrot.slane %v535, 2
      %v904 = vsel %vm879, %v901, %v903
      %v905 = vrot.slane %v536, 2
      %v906 = vsel %vm879, %v903, %v905
      %v907 = vrot.slane %v537, 2
      %v908 = vsel %vm879, %v905, %v907
      %v909 = vrot.slane %v538, 2
      %v910 = vsel %vm879, %v907, %v909
      %v911 = vrot.slane %v539, 2
      %v912 = vsel %vm879, %v909, %v911
      %v913 = vrot.slane %v540, 2
      %v914 = vsel %vm879, %v911, %v913
      %v915 = vrot.slane %v541, 2
      %v916 = vsel %vm879, %v913, %v915
      %v917 = vrot.slane %v542, 2
      %v918 = vsel %vm879, %v915, %v917
      %v919 = vrot.slane %v543, 2
      %v920 = vsel %vm879, %v917, %v919
      %v921 = vrot.slane %v544, 2
      %v922 = vsel %vm879, %v919, %v921
      %v923 = vrot.slane %v545, 2
      %v924 = vsel %vm879, %v921, %v923
      %v925 = vrot.slane %v546, 2
      %v926 = vsel %vm879, %v923, %v925
      %v927 = vrot.slane %v547, 2
      %v928 = vsel %vm879, %v925, %v927
      %v929 = vrot.slane %v548, 2
      %v930 = vsel %vm879, %v927, %v929
      %v931 = vrot.slane %v549, 2
      %v932 = vsel %vm879, %v929, %v931
      %v933 = vrot.slane %v550, 2
      %v934 = vsel %vm879, %v931, %v933
      %v935 = vrot.slane %v551, 2
      %v936 = vsel %vm879, %v933, %v935
      %v937 = vrot.slane %v552, 2
      %v938 = vsel %vm879, %v935, %v937
      %v939 = vrot.slane %v553, 2
      %v940 = vsel %vm879, %v937, %v939
      %v941 = vrot.slane %v554, 2
      %v942 = vsel %vm879, %v939, %v941
      %v943 = vrot.slane %v555, 2
      %v944 = vsel %vm879, %v941, %v943
      %v945 = vrot.slane %v556, 2
      %v946 = vsel %vm879, %v943, %v945
      %v947 = vrot.slane %v557, 2
      %v948 = vsel %vm879, %v945, %v947
      %v949 = vrot.slane %v558, 2
      %v950 = vsel %vm879, %v947, %v949
      %v951 = vrot.slane %v559, 2
      %v952 = vsel %vm879, %v949, %v951
      %v953 = vrot.slane %v560, 2
      %v954 = vsel %vm879, %v951, %v953
      %v955 = vrot.slane %v561, 2
      %v956 = vsel %vm879, %v953, %v955
      %v957 = vrot.slane %v562, 2
      %v958 = vsel %vm879, %v955, %v957
      %v959 = vrot.slane %v563, 2
      %v960 = vsel %vm879, %v957, %v959
      %v961 = vrot.slane %v564, 2
      %v962 = vsel %vm879, %v959, %v961
      %v963 = vrot.slane %v565, 2
      %v964 = vsel %vm879, %v961, %v963
      %v965 = vrot.slane %v566, 2
      %v966 = vsel %vm879, %v963, %v965
      %v967 = vrot.slane %v567, 2
      %v968 = vsel %vm879, %v965, %v967
      %v969 = vrot.slane %v568, 2
      %v970 = vsel %vm879, %v967, %v969
      %v971 = vrot.slane %v569, 2
      %v972 = vsel %vm879, %v969, %v971
      %v973 = vrot.slane %v570, 2
      %v974 = vsel %vm879, %v971, %v973
      %v975 = vrot.slane %v571, 2
      %v976 = vsel %vm879, %v973, %v975
      %977 = vrot.lane.b32.xlu0 %v882, 16
      %v978 = vpop.permute.xlu0 %977
      %979 = vrot.lane.b32.xlu0 %v884, 16
      %v980 = vpop.permute.xlu0 %979
      %981 = vrot.lane.b32.xlu0 %v886, 16
      %v982 = vpop.permute.xlu0 %981
      %983 = vrot.lane.b32.xlu0 %v888, 16
      %v984 = vpop.permute.xlu0 %983
      %985 = vrot.lane.b32.xlu0 %v890, 16
      %v986 = vpop.permute.xlu0 %985
      %987 = vrot.lane.b32.xlu0 %v892, 16
      %v988 = vpop.permute.xlu0 %987
      %989 = vrot.lane.b32.xlu0 %v894, 16
      %v990 = vpop.permute.xlu0 %989
      %991 = vrot.lane.b32.xlu0 %v896, 16
      %v992 = vpop.permute.xlu0 %991
      %993 = vrot.lane.b32.xlu0 %v898, 16
      %v994 = vpop.permute.xlu0 %993
      %995 = vrot.lane.b32.xlu0 %v900, 16
      %v996 = vpop.permute.xlu0 %995
      %997 = vrot.lane.b32.xlu0 %v902, 16
      %v998 = vpop.permute.xlu0 %997
      %999 = vrot.lane.b32.xlu0 %v904, 16
      %v1000 = vpop.permute.xlu0 %999
      %1001 = vrot.lane.b32.xlu0 %v906, 16
      %v1002 = vpop.permute.xlu0 %1001
      %1003 = vrot.lane.b32.xlu0 %v908, 16
      %v1004 = vpop.permute.xlu0 %1003
      %1005 = vrot.lane.b32.xlu0 %v910, 16
      %v1006 = vpop.permute.xlu0 %1005
      %1007 = vrot.lane.b32.xlu0 %v912, 16
      %v1008 = vpop.permute.xlu0 %1007
      %1009 = vrot.lane.b32.xlu0 %v914, 16
      %v1010 = vpop.permute.xlu0 %1009
      %1011 = vrot.lane.b32.xlu0 %v916, 16
      %v1012 = vpop.permute.xlu0 %1011
      %1013 = vrot.lane.b32.xlu0 %v918, 16
      %v1014 = vpop.permute.xlu0 %1013
      %1015 = vrot.lane.b32.xlu0 %v920, 16
      %v1016 = vpop.permute.xlu0 %1015
      %1017 = vrot.lane.b32.xlu0 %v922, 16
      %v1018 = vpop.permute.xlu0 %1017
      %1019 = vrot.lane.b32.xlu0 %v924, 16
      %v1020 = vpop.permute.xlu0 %1019
      %1021 = vrot.lane.b32.xlu0 %v926, 16
      %v1022 = vpop.permute.xlu0 %1021
      %1023 = vrot.lane.b32.xlu0 %v928, 16
      %v1024 = vpop.permute.xlu0 %1023
      %1025 = vrot.lane.b32.xlu0 %v930, 16
      %v1026 = vpop.permute.xlu0 %1025
      %1027 = vrot.lane.b32.xlu0 %v932, 16
      %v1028 = vpop.permute.xlu0 %1027
      %1029 = vrot.lane.b32.xlu0 %v934, 16
      %v1030 = vpop.permute.xlu0 %1029
      %1031 = vrot.lane.b32.xlu0 %v936, 16
      %v1032 = vpop.permute.xlu0 %1031
      %1033 = vrot.lane.b32.xlu0 %v938, 16
      %v1034 = vpop.permute.xlu0 %1033
      %1035 = vrot.lane.b32.xlu0 %v940, 16
      %v1036 = vpop.permute.xlu0 %1035
      %1037 = vrot.lane.b32.xlu0 %v942, 16
      %v1038 = vpop.permute.xlu0 %1037
      %1039 = vrot.lane.b32.xlu0 %v944, 16
      %v1040 = vpop.permute.xlu0 %1039
      %1041 = vrot.lane.b32.xlu0 %v946, 16
      %v1042 = vpop.permute.xlu0 %1041
      %1043 = vrot.lane.b32.xlu0 %v948, 16
      %v1044 = vpop.permute.xlu0 %1043
      %1045 = vrot.lane.b32.xlu0 %v950, 16
      %v1046 = vpop.permute.xlu0 %1045
      %1047 = vrot.lane.b32.xlu0 %v952, 16
      %v1048 = vpop.permute.xlu0 %1047
      %1049 = vrot.lane.b32.xlu0 %v954, 16
      %v1050 = vpop.permute.xlu0 %1049
      %1051 = vrot.lane.b32.xlu0 %v956, 16
      %v1052 = vpop.permute.xlu0 %1051
      %1053 = vrot.lane.b32.xlu0 %v958, 16
      %v1054 = vpop.permute.xlu0 %1053
      %1055 = vrot.lane.b32.xlu0 %v960, 16
      %v1056 = vpop.permute.xlu0 %1055
      %1057 = vrot.lane.b32.xlu0 %v962, 16
      %v1058 = vpop.permute.xlu0 %1057
      %1059 = vrot.lane.b32.xlu0 %v964, 16
      %v1060 = vpop.permute.xlu0 %1059
      %1061 = vrot.lane.b32.xlu0 %v966, 16
      %v1062 = vpop.permute.xlu0 %1061
      %1063 = vrot.lane.b32.xlu0 %v968, 16
      %v1064 = vpop.permute.xlu0 %1063
      %1065 = vrot.lane.b32.xlu0 %v970, 16
      %v1066 = vpop.permute.xlu0 %1065
      %1067 = vrot.lane.b32.xlu0 %v972, 16
      %v1068 = vpop.permute.xlu0 %1067
      %1069 = vrot.lane.b32.xlu0 %v974, 16
      %v1070 = vpop.permute.xlu0 %1069
      %1071 = vrot.lane.b32.xlu0 %v976, 16
      %v1072 = vpop.permute.xlu0 %1071
      %1123 = vrot.lane.b32.xlu0 %v526, 24
      %v1124 = vpop.permute.xlu0 %1123
      %1125 = vrot.lane.b32.xlu0 %v527, 24
      %v1126 = vpop.permute.xlu0 %1125
      %1127 = vrot.lane.b32.xlu0 %v528, 24
      %v1128 = vpop.permute.xlu0 %1127
      %1129 = vrot.lane.b32.xlu0 %v529, 24
      %v1130 = vpop.permute.xlu0 %1129
      %1131 = vrot.lane.b32.xlu0 %v530, 24
      %v1132 = vpop.permute.xlu0 %1131
      %1133 = vrot.lane.b32.xlu0 %v531, 24
      %v1134 = vpop.permute.xlu0 %1133
      %1135 = vrot.lane.b32.xlu0 %v532, 24
      %v1136 = vpop.permute.xlu0 %1135
      %1137 = vrot.lane.b32.xlu0 %v533, 24
      %v1138 = vpop.permute.xlu0 %1137
      %1139 = vrot.lane.b32.xlu0 %v534, 24
      %v1140 = vpop.permute.xlu0 %1139
      %1141 = vrot.lane.b32.xlu0 %v535, 24
      %v1142 = vpop.permute.xlu0 %1141
      %1143 = vrot.lane.b32.xlu0 %v536, 24
      %v1144 = vpop.permute.xlu0 %1143
      %1145 = vrot.lane.b32.xlu0 %v537, 24
      %v1146 = vpop.permute.xlu0 %1145
      %1147 = vrot.lane.b32.xlu0 %v538, 24
      %v1148 = vpop.permute.xlu0 %1147
      %1149 = vrot.lane.b32.xlu0 %v539, 24
      %v1150 = vpop.permute.xlu0 %1149
      %1151 = vrot.lane.b32.xlu0 %v540, 24
      %v1152 = vpop.permute.xlu0 %1151
      %1153 = vrot.lane.b32.xlu0 %v541, 24
      %v1154 = vpop.permute.xlu0 %1153
      %1155 = vrot.lane.b32.xlu0 %v542, 24
      %v1156 = vpop.permute.xlu0 %1155
      %1157 = vrot.lane.b32.xlu0 %v543, 24
      %v1158 = vpop.permute.xlu0 %1157
      %1159 = vrot.lane.b32.xlu0 %v544, 24
      %v1160 = vpop.permute.xlu0 %1159
      %1161 = vrot.lane.b32.xlu0 %v545, 24
      %v1162 = vpop.permute.xlu0 %1161
      %1163 = vrot.lane.b32.xlu0 %v546, 24
      %v1164 = vpop.permute.xlu0 %1163
      %1165 = vrot.lane.b32.xlu0 %v547, 24
      %v1166 = vpop.permute.xlu0 %1165
      %1167 = vrot.lane.b32.xlu0 %v548, 24
      %v1168 = vpop.permute.xlu0 %1167
      %1169 = vrot.lane.b32.xlu0 %v549, 24
      %v1170 = vpop.permute.xlu0 %1169
      %1171 = vrot.lane.b32.xlu0 %v550, 24
      %v1172 = vpop.permute.xlu0 %1171
      %1173 = vrot.lane.b32.xlu0 %v551, 24
      %v1174 = vpop.permute.xlu0 %1173
      %1175 = vrot.lane.b32.xlu0 %v552, 24
      %v1176 = vpop.permute.xlu0 %1175
      %1177 = vrot.lane.b32.xlu0 %v553, 24
      %v1178 = vpop.permute.xlu0 %1177
      %1179 = vrot.lane.b32.xlu0 %v554, 24
      %v1180 = vpop.permute.xlu0 %1179
      %1181 = vrot.lane.b32.xlu0 %v555, 24
      %v1182 = vpop.permute.xlu0 %1181
      %1183 = vrot.lane.b32.xlu0 %v556, 24
      %v1184 = vpop.permute.xlu0 %1183
      %1185 = vrot.lane.b32.xlu0 %v557, 24
      %v1186 = vpop.permute.xlu0 %1185
      %1187 = vrot.lane.b32.xlu0 %v558, 24
      %v1188 = vpop.permute.xlu0 %1187
      %1189 = vrot.lane.b32.xlu0 %v559, 24
      %v1190 = vpop.permute.xlu0 %1189
      %1191 = vrot.lane.b32.xlu0 %v560, 24
      %v1192 = vpop.permute.xlu0 %1191
      %1193 = vrot.lane.b32.xlu0 %v561, 24
      %v1194 = vpop.permute.xlu0 %1193
      %1195 = vrot.lane.b32.xlu0 %v562, 24
      %v1196 = vpop.permute.xlu0 %1195
      %1197 = vrot.lane.b32.xlu0 %v563, 24
      %v1198 = vpop.permute.xlu0 %1197
      %1199 = vrot.lane.b32.xlu0 %v564, 24
      %v1200 = vpop.permute.xlu0 %1199
      %1201 = vrot.lane.b32.xlu0 %v565, 24
      %v1202 = vpop.permute.xlu0 %1201
      %1203 = vrot.lane.b32.xlu0 %v566, 24
      %v1204 = vpop.permute.xlu0 %1203
      %1205 = vrot.lane.b32.xlu0 %v567, 24
      %v1206 = vpop.permute.xlu0 %1205
      %1207 = vrot.lane.b32.xlu0 %v568, 24
      %v1208 = vpop.permute.xlu0 %1207
      %1209 = vrot.lane.b32.xlu0 %v569, 24
      %v1210 = vpop.permute.xlu0 %1209
      %1211 = vrot.lane.b32.xlu0 %v570, 24
      %v1212 = vpop.permute.xlu0 %1211
      %1213 = vrot.lane.b32.xlu0 %v571, 24
      %v1214 = vpop.permute.xlu0 %1213
      %1215 = vrot.lane.b32.xlu0 %v572, 24
      %v1216 = vpop.permute.xlu0 %1215
      %1217 = vrot.lane.b32.xlu0 %v573, 24
      %v1218 = vpop.permute.xlu0 %1217
      %v1268 = vrot.slane %v572, 1
      %v1269 = vsel %vm637, %v733, %v1268
      %v1270 = vrot.slane %v573, 1
      %v1271 = vsel %vm637, %v1268, %v1270
      %v1272 = vrot.slane %v574, 1
      %v1273 = vsel %vm637, %v1270, %v1272
      %1274 = vrot.lane.b32.xlu0 %v646, 32
      %v1275 = vpop.permute.xlu0 %1274
      %1276 = vrot.lane.b32.xlu0 %v648, 32
      %v1277 = vpop.permute.xlu0 %1276
      %1278 = vrot.lane.b32.xlu0 %v650, 32
      %v1279 = vpop.permute.xlu0 %1278
      %1280 = vrot.lane.b32.xlu0 %v652, 32
      %v1281 = vpop.permute.xlu0 %1280
      %1282 = vrot.lane.b32.xlu0 %v654, 32
      %v1283 = vpop.permute.xlu0 %1282
      %1284 = vrot.lane.b32.xlu0 %v656, 32
      %v1285 = vpop.permute.xlu0 %1284
      %1286 = vrot.lane.b32.xlu0 %v658, 32
      %v1287 = vpop.permute.xlu0 %1286
      %1288 = vrot.lane.b32.xlu0 %v660, 32
      %v1289 = vpop.permute.xlu0 %1288
      %1290 = vrot.lane.b32.xlu0 %v662, 32
      %v1291 = vpop.permute.xlu0 %1290
      %1292 = vrot.lane.b32.xlu0 %v664, 32
      %v1293 = vpop.permute.xlu0 %1292
      %1294 = vrot.lane.b32.xlu0 %v666, 32
      %v1295 = vpop.permute.xlu0 %1294
      %1296 = vrot.lane.b32.xlu0 %v668, 32
      %v1297 = vpop.permute.xlu0 %1296
      %1298 = vrot.lane.b32.xlu0 %v670, 32
      %v1299 = vpop.permute.xlu0 %1298
      %1300 = vrot.lane.b32.xlu0 %v672, 32
      %v1301 = vpop.permute.xlu0 %1300
      %1302 = vrot.lane.b32.xlu0 %v674, 32
      %v1303 = vpop.permute.xlu0 %1302
      %1304 = vrot.lane.b32.xlu0 %v676, 32
      %v1305 = vpop.permute.xlu0 %1304
      %1306 = vrot.lane.b32.xlu0 %v678, 32
      %v1307 = vpop.permute.xlu0 %1306
      %1308 = vrot.lane.b32.xlu0 %v680, 32
      %v1309 = vpop.permute.xlu0 %1308
      %1310 = vrot.lane.b32.xlu0 %v682, 32
      %v1311 = vpop.permute.xlu0 %1310
      %1312 = vrot.lane.b32.xlu0 %v684, 32
      %v1313 = vpop.permute.xlu0 %1312
      %1314 = vrot.lane.b32.xlu0 %v686, 32
      %v1315 = vpop.permute.xlu0 %1314
      %1316 = vrot.lane.b32.xlu0 %v688, 32
      %v1317 = vpop.permute.xlu0 %1316
      %1318 = vrot.lane.b32.xlu0 %v690, 32
      %v1319 = vpop.permute.xlu0 %1318
      %1320 = vrot.lane.b32.xlu0 %v692, 32
      %v1321 = vpop.permute.xlu0 %1320
      %1322 = vrot.lane.b32.xlu0 %v694, 32
      %v1323 = vpop.permute.xlu0 %1322
      %1324 = vrot.lane.b32.xlu0 %v696, 32
      %v1325 = vpop.permute.xlu0 %1324
      %1326 = vrot.lane.b32.xlu0 %v698, 32
      %v1327 = vpop.permute.xlu0 %1326
      %1328 = vrot.lane.b32.xlu0 %v700, 32
      %v1329 = vpop.permute.xlu0 %1328
      %1330 = vrot.lane.b32.xlu0 %v702, 32
      %v1331 = vpop.permute.xlu0 %1330
      %1332 = vrot.lane.b32.xlu0 %v704, 32
      %v1333 = vpop.permute.xlu0 %1332
      %1334 = vrot.lane.b32.xlu0 %v706, 32
      %v1335 = vpop.permute.xlu0 %1334
      %1336 = vrot.lane.b32.xlu0 %v708, 32
      %v1337 = vpop.permute.xlu0 %1336
      %1338 = vrot.lane.b32.xlu0 %v710, 32
      %v1339 = vpop.permute.xlu0 %1338
      %1340 = vrot.lane.b32.xlu0 %v712, 32
      %v1341 = vpop.permute.xlu0 %1340
      %1342 = vrot.lane.b32.xlu0 %v714, 32
      %v1343 = vpop.permute.xlu0 %1342
      %1344 = vrot.lane.b32.xlu0 %v716, 32
      %v1345 = vpop.permute.xlu0 %1344
      %1346 = vrot.lane.b32.xlu0 %v718, 32
      %v1347 = vpop.permute.xlu0 %1346
      %1348 = vrot.lane.b32.xlu0 %v720, 32
      %v1349 = vpop.permute.xlu0 %1348
      %1350 = vrot.lane.b32.xlu0 %v722, 32
      %v1351 = vpop.permute.xlu0 %1350
      %1352 = vrot.lane.b32.xlu0 %v724, 32
      %v1353 = vpop.permute.xlu0 %1352
      %1354 = vrot.lane.b32.xlu0 %v726, 32
      %v1355 = vpop.permute.xlu0 %1354
      %1356 = vrot.lane.b32.xlu0 %v728, 32
      %v1357 = vpop.permute.xlu0 %1356
      %1358 = vrot.lane.b32.xlu0 %v730, 32
      %v1359 = vpop.permute.xlu0 %1358
      %1360 = vrot.lane.b32.xlu0 %v732, 32
      %v1361 = vpop.permute.xlu0 %1360
      %1362 = vrot.lane.b32.xlu0 %v734, 32
      %v1363 = vpop.permute.xlu0 %1362
      %1364 = vrot.lane.b32.xlu0 %v1269, 32
      %v1365 = vpop.permute.xlu0 %1364
      %1366 = vrot.lane.b32.xlu0 %v1271, 32
      %v1367 = vpop.permute.xlu0 %1366
      %1368 = vrot.lane.b32.xlu0 %v1273, 32
      %v1369 = vpop.permute.xlu0 %1368
      %v1418 = vrot.slane %v572, 2
      %v1419 = vsel %vm879, %v975, %v1418
      %v1420 = vrot.slane %v573, 2
      %v1421 = vsel %vm879, %v1418, %v1420
      %v1422 = vrot.slane %v574, 2
      %v1423 = vsel %vm879, %v1420, %v1422
      %1424 = vrot.lane.b32.xlu0 %v888, 40
      %v1425 = vpop.permute.xlu0 %1424
      %1426 = vrot.lane.b32.xlu0 %v890, 40
      %v1427 = vpop.permute.xlu0 %1426
      %1428 = vrot.lane.b32.xlu0 %v892, 40
      %v1429 = vpop.permute.xlu0 %1428
      %1430 = vrot.lane.b32.xlu0 %v894, 40
      %v1431 = vpop.permute.xlu0 %1430
      %1432 = vrot.lane.b32.xlu0 %v896, 40
      %v1433 = vpop.permute.xlu0 %1432
      %1434 = vrot.lane.b32.xlu0 %v898, 40
      %v1435 = vpop.permute.xlu0 %1434
      %1436 = vrot.lane.b32.xlu0 %v900, 40
      %v1437 = vpop.permute.xlu0 %1436
      %1438 = vrot.lane.b32.xlu0 %v902, 40
      %v1439 = vpop.permute.xlu0 %1438
      %1440 = vrot.lane.b32.xlu0 %v904, 40
      %v1441 = vpop.permute.xlu0 %1440
      %1442 = vrot.lane.b32.xlu0 %v906, 40
      %v1443 = vpop.permute.xlu0 %1442
      %1444 = vrot.lane.b32.xlu0 %v908, 40
      %v1445 = vpop.permute.xlu0 %1444
      %1446 = vrot.lane.b32.xlu0 %v910, 40
      %v1447 = vpop.permute.xlu0 %1446
      %1448 = vrot.lane.b32.xlu0 %v912, 40
      %v1449 = vpop.permute.xlu0 %1448
      %1450 = vrot.lane.b32.xlu0 %v914, 40
      %v1451 = vpop.permute.xlu0 %1450
      %1452 = vrot.lane.b32.xlu0 %v916, 40
      %v1453 = vpop.permute.xlu0 %1452
      %1454 = vrot.lane.b32.xlu0 %v918, 40
      %v1455 = vpop.permute.xlu0 %1454
      %1456 = vrot.lane.b32.xlu0 %v920, 40
      %v1457 = vpop.permute.xlu0 %1456
      %1458 = vrot.lane.b32.xlu0 %v922, 40
      %v1459 = vpop.permute.xlu0 %1458
      %1460 = vrot.lane.b32.xlu0 %v924, 40
      %v1461 = vpop.permute.xlu0 %1460
      %1462 = vrot.lane.b32.xlu0 %v926, 40
      %v1463 = vpop.permute.xlu0 %1462
      %1464 = vrot.lane.b32.xlu0 %v928, 40
      %v1465 = vpop.permute.xlu0 %1464
      %1466 = vrot.lane.b32.xlu0 %v930, 40
      %v1467 = vpop.permute.xlu0 %1466
      %1468 = vrot.lane.b32.xlu0 %v932, 40
      %v1469 = vpop.permute.xlu0 %1468
      %1470 = vrot.lane.b32.xlu0 %v934, 40
      %v1471 = vpop.permute.xlu0 %1470
      %1472 = vrot.lane.b32.xlu0 %v936, 40
      %v1473 = vpop.permute.xlu0 %1472
      %1474 = vrot.lane.b32.xlu0 %v938, 40
      %v1475 = vpop.permute.xlu0 %1474
      %1476 = vrot.lane.b32.xlu0 %v940, 40
      %v1477 = vpop.permute.xlu0 %1476
      %1478 = vrot.lane.b32.xlu0 %v942, 40
      %v1479 = vpop.permute.xlu0 %1478
      %1480 = vrot.lane.b32.xlu0 %v944, 40
      %v1481 = vpop.permute.xlu0 %1480
      %1482 = vrot.lane.b32.xlu0 %v946, 40
      %v1483 = vpop.permute.xlu0 %1482
      %1484 = vrot.lane.b32.xlu0 %v948, 40
      %v1485 = vpop.permute.xlu0 %1484
      %1486 = vrot.lane.b32.xlu0 %v950, 40
      %v1487 = vpop.permute.xlu0 %1486
      %1488 = vrot.lane.b32.xlu0 %v952, 40
      %v1489 = vpop.permute.xlu0 %1488
      %1490 = vrot.lane.b32.xlu0 %v954, 40
      %v1491 = vpop.permute.xlu0 %1490
      %1492 = vrot.lane.b32.xlu0 %v956, 40
      %v1493 = vpop.permute.xlu0 %1492
      %1494 = vrot.lane.b32.xlu0 %v958, 40
      %v1495 = vpop.permute.xlu0 %1494
      %1496 = vrot.lane.b32.xlu0 %v960, 40
      %v1497 = vpop.permute.xlu0 %1496
      %1498 = vrot.lane.b32.xlu0 %v962, 40
      %v1499 = vpop.permute.xlu0 %1498
      %1500 = vrot.lane.b32.xlu0 %v964, 40
      %v1501 = vpop.permute.xlu0 %1500
      %1502 = vrot.lane.b32.xlu0 %v966, 40
      %v1503 = vpop.permute.xlu0 %1502
      %1504 = vrot.lane.b32.xlu0 %v968, 40
      %v1505 = vpop.permute.xlu0 %1504
      %1506 = vrot.lane.b32.xlu0 %v970, 40
      %v1507 = vpop.permute.xlu0 %1506
      %1508 = vrot.lane.b32.xlu0 %v972, 40
      %v1509 = vpop.permute.xlu0 %1508
      %1510 = vrot.lane.b32.xlu0 %v974, 40
      %v1511 = vpop.permute.xlu0 %1510
      %1512 = vrot.lane.b32.xlu0 %v976, 40
      %v1513 = vpop.permute.xlu0 %1512
      %1514 = vrot.lane.b32.xlu0 %v1419, 40
      %v1515 = vpop.permute.xlu0 %1514
      %1516 = vrot.lane.b32.xlu0 %v1421, 40
      %v1517 = vpop.permute.xlu0 %1516
      %1518 = vrot.lane.b32.xlu0 %v1423, 40
      %v1519 = vpop.permute.xlu0 %1518
      %1570 = vrot.lane.b32.xlu0 %v529, 48
      %v1571 = vpop.permute.xlu0 %1570
      %1572 = vrot.lane.b32.xlu0 %v530, 48
      %v1573 = vpop.permute.xlu0 %1572
      %1574 = vrot.lane.b32.xlu0 %v531, 48
      %v1575 = vpop.permute.xlu0 %1574
      %1576 = vrot.lane.b32.xlu0 %v532, 48
      %v1577 = vpop.permute.xlu0 %1576
      %1578 = vrot.lane.b32.xlu0 %v533, 48
      %v1579 = vpop.permute.xlu0 %1578
      %1580 = vrot.lane.b32.xlu0 %v534, 48
      %v1581 = vpop.permute.xlu0 %1580
      %1582 = vrot.lane.b32.xlu0 %v535, 48
      %v1583 = vpop.permute.xlu0 %1582
      %1584 = vrot.lane.b32.xlu0 %v536, 48
      %v1585 = vpop.permute.xlu0 %1584
      %1586 = vrot.lane.b32.xlu0 %v537, 48
      %v1587 = vpop.permute.xlu0 %1586
      %1588 = vrot.lane.b32.xlu0 %v538, 48
      %v1589 = vpop.permute.xlu0 %1588
      %1590 = vrot.lane.b32.xlu0 %v539, 48
      %v1591 = vpop.permute.xlu0 %1590
      %1592 = vrot.lane.b32.xlu0 %v540, 48
      %v1593 = vpop.permute.xlu0 %1592
      %1594 = vrot.lane.b32.xlu0 %v541, 48
      %v1595 = vpop.permute.xlu0 %1594
      %1596 = vrot.lane.b32.xlu0 %v542, 48
      %v1597 = vpop.permute.xlu0 %1596
      %1598 = vrot.lane.b32.xlu0 %v543, 48
      %v1599 = vpop.permute.xlu0 %1598
      %1600 = vrot.lane.b32.xlu0 %v544, 48
      %v1601 = vpop.permute.xlu0 %1600
      %1602 = vrot.lane.b32.xlu0 %v545, 48
      %v1603 = vpop.permute.xlu0 %1602
      %1604 = vrot.lane.b32.xlu0 %v546, 48
      %v1605 = vpop.permute.xlu0 %1604
      %1606 = vrot.lane.b32.xlu0 %v547, 48
      %v1607 = vpop.permute.xlu0 %1606
      %1608 = vrot.lane.b32.xlu0 %v548, 48
      %v1609 = vpop.permute.xlu0 %1608
      %1610 = vrot.lane.b32.xlu0 %v549, 48
      %v1611 = vpop.permute.xlu0 %1610
      %1612 = vrot.lane.b32.xlu0 %v550, 48
      %v1613 = vpop.permute.xlu0 %1612
      %1614 = vrot.lane.b32.xlu0 %v551, 48
      %v1615 = vpop.permute.xlu0 %1614
      %1616 = vrot.lane.b32.xlu0 %v552, 48
      %v1617 = vpop.permute.xlu0 %1616
      %1618 = vrot.lane.b32.xlu0 %v553, 48
      %v1619 = vpop.permute.xlu0 %1618
      %1620 = vrot.lane.b32.xlu0 %v554, 48
      %v1621 = vpop.permute.xlu0 %1620
      %1622 = vrot.lane.b32.xlu0 %v555, 48
      %v1623 = vpop.permute.xlu0 %1622
      %1624 = vrot.lane.b32.xlu0 %v556, 48
      %v1625 = vpop.permute.xlu0 %1624
      %1626 = vrot.lane.b32.xlu0 %v557, 48
      %v1627 = vpop.permute.xlu0 %1626
      %1628 = vrot.lane.b32.xlu0 %v558, 48
      %v1629 = vpop.permute.xlu0 %1628
      %1630 = vrot.lane.b32.xlu0 %v559, 48
      %v1631 = vpop.permute.xlu0 %1630
      %1632 = vrot.lane.b32.xlu0 %v560, 48
      %v1633 = vpop.permute.xlu0 %1632
      %1634 = vrot.lane.b32.xlu0 %v561, 48
      %v1635 = vpop.permute.xlu0 %1634
      %1636 = vrot.lane.b32.xlu0 %v562, 48
      %v1637 = vpop.permute.xlu0 %1636
      %1638 = vrot.lane.b32.xlu0 %v563, 48
      %v1639 = vpop.permute.xlu0 %1638
      %1640 = vrot.lane.b32.xlu0 %v564, 48
      %v1641 = vpop.permute.xlu0 %1640
      %1642 = vrot.lane.b32.xlu0 %v565, 48
      %v1643 = vpop.permute.xlu0 %1642
      %1644 = vrot.lane.b32.xlu0 %v566, 48
      %v1645 = vpop.permute.xlu0 %1644
      %1646 = vrot.lane.b32.xlu0 %v567, 48
      %v1647 = vpop.permute.xlu0 %1646
      %1648 = vrot.lane.b32.xlu0 %v568, 48
      %v1649 = vpop.permute.xlu0 %1648
      %1650 = vrot.lane.b32.xlu0 %v569, 48
      %v1651 = vpop.permute.xlu0 %1650
      %1652 = vrot.lane.b32.xlu0 %v570, 48
      %v1653 = vpop.permute.xlu0 %1652
      %1654 = vrot.lane.b32.xlu0 %v571, 48
      %v1655 = vpop.permute.xlu0 %1654
      %1656 = vrot.lane.b32.xlu0 %v572, 48
      %v1657 = vpop.permute.xlu0 %1656
      %1658 = vrot.lane.b32.xlu0 %v573, 48
      %v1659 = vpop.permute.xlu0 %1658
      %1660 = vrot.lane.b32.xlu0 %v574, 48
      %v1661 = vpop.permute.xlu0 %1660
      %1662 = vrot.lane.b32.xlu0 %v575, 48
      %v1663 = vpop.permute.xlu0 %1662
      %1664 = vrot.lane.b32.xlu0 %v576, 48
      %v1665 = vpop.permute.xlu0 %1664
      %v1715 = vrot.slane %v575, 1
      %v1716 = vsel %vm637, %v1272, %v1715
      %v1717 = vrot.slane %v576, 1
      %v1718 = vsel %vm637, %v1715, %v1717
      %v1719 = vrot.slane %v577, 1
      %v1720 = vsel %vm637, %v1717, %v1719
      %1721 = vrot.lane.b32.xlu0 %v652, 56
      %v1722 = vpop.permute.xlu0 %1721
      %1723 = vrot.lane.b32.xlu0 %v654, 56
      %v1724 = vpop.permute.xlu0 %1723
      %1725 = vrot.lane.b32.xlu0 %v656, 56
      %v1726 = vpop.permute.xlu0 %1725
      %1727 = vrot.lane.b32.xlu0 %v658, 56
      %v1728 = vpop.permute.xlu0 %1727
      %1729 = vrot.lane.b32.xlu0 %v660, 56
      %v1730 = vpop.permute.xlu0 %1729
      %1731 = vrot.lane.b32.xlu0 %v662, 56
      %v1732 = vpop.permute.xlu0 %1731
      %1733 = vrot.lane.b32.xlu0 %v664, 56
      %v1734 = vpop.permute.xlu0 %1733
      %1735 = vrot.lane.b32.xlu0 %v666, 56
      %v1736 = vpop.permute.xlu0 %1735
      %1737 = vrot.lane.b32.xlu0 %v668, 56
      %v1738 = vpop.permute.xlu0 %1737
      %1739 = vrot.lane.b32.xlu0 %v670, 56
      %v1740 = vpop.permute.xlu0 %1739
      %1741 = vrot.lane.b32.xlu0 %v672, 56
      %v1742 = vpop.permute.xlu0 %1741
      %1743 = vrot.lane.b32.xlu0 %v674, 56
      %v1744 = vpop.permute.xlu0 %1743
      %1745 = vrot.lane.b32.xlu0 %v676, 56
      %v1746 = vpop.permute.xlu0 %1745
      %1747 = vrot.lane.b32.xlu0 %v678, 56
      %v1748 = vpop.permute.xlu0 %1747
      %1749 = vrot.lane.b32.xlu0 %v680, 56
      %v1750 = vpop.permute.xlu0 %1749
      %1751 = vrot.lane.b32.xlu0 %v682, 56
      %v1752 = vpop.permute.xlu0 %1751
      %1753 = vrot.lane.b32.xlu0 %v684, 56
      %v1754 = vpop.permute.xlu0 %1753
      %1755 = vrot.lane.b32.xlu0 %v686, 56
      %v1756 = vpop.permute.xlu0 %1755
      %1757 = vrot.lane.b32.xlu0 %v688, 56
      %v1758 = vpop.permute.xlu0 %1757
      %1759 = vrot.lane.b32.xlu0 %v690, 56
      %v1760 = vpop.permute.xlu0 %1759
      %1761 = vrot.lane.b32.xlu0 %v692, 56
      %v1762 = vpop.permute.xlu0 %1761
      %1763 = vrot.lane.b32.xlu0 %v694, 56
      %v1764 = vpop.permute.xlu0 %1763
      %1765 = vrot.lane.b32.xlu0 %v696, 56
      %v1766 = vpop.permute.xlu0 %1765
      %1767 = vrot.lane.b32.xlu0 %v698, 56
      %v1768 = vpop.permute.xlu0 %1767
      %1769 = vrot.lane.b32.xlu0 %v700, 56
      %v1770 = vpop.permute.xlu0 %1769
      %1771 = vrot.lane.b32.xlu0 %v702, 56
      %v1772 = vpop.permute.xlu0 %1771
      %1773 = vrot.lane.b32.xlu0 %v704, 56
      %v1774 = vpop.permute.xlu0 %1773
      %1775 = vrot.lane.b32.xlu0 %v706, 56
      %v1776 = vpop.permute.xlu0 %1775
      %1777 = vrot.lane.b32.xlu0 %v708, 56
      %v1778 = vpop.permute.xlu0 %1777
      %1779 = vrot.lane.b32.xlu0 %v710, 56
      %v1780 = vpop.permute.xlu0 %1779
      %1781 = vrot.lane.b32.xlu0 %v712, 56
      %v1782 = vpop.permute.xlu0 %1781
      %1783 = vrot.lane.b32.xlu0 %v714, 56
      %v1784 = vpop.permute.xlu0 %1783
      %1785 = vrot.lane.b32.xlu0 %v716, 56
      %v1786 = vpop.permute.xlu0 %1785
      %1787 = vrot.lane.b32.xlu0 %v718, 56
      %v1788 = vpop.permute.xlu0 %1787
      %1789 = vrot.lane.b32.xlu0 %v720, 56
      %v1790 = vpop.permute.xlu0 %1789
      %1791 = vrot.lane.b32.xlu0 %v722, 56
      %v1792 = vpop.permute.xlu0 %1791
      %1793 = vrot.lane.b32.xlu0 %v724, 56
      %v1794 = vpop.permute.xlu0 %1793
      %1795 = vrot.lane.b32.xlu0 %v726, 56
      %v1796 = vpop.permute.xlu0 %1795
      %1797 = vrot.lane.b32.xlu0 %v728, 56
      %v1798 = vpop.permute.xlu0 %1797
      %1799 = vrot.lane.b32.xlu0 %v730, 56
      %v1800 = vpop.permute.xlu0 %1799
      %1801 = vrot.lane.b32.xlu0 %v732, 56
      %v1802 = vpop.permute.xlu0 %1801
      %1803 = vrot.lane.b32.xlu0 %v734, 56
      %v1804 = vpop.permute.xlu0 %1803
      %1805 = vrot.lane.b32.xlu0 %v1269, 56
      %v1806 = vpop.permute.xlu0 %1805
      %1807 = vrot.lane.b32.xlu0 %v1271, 56
      %v1808 = vpop.permute.xlu0 %1807
      %1809 = vrot.lane.b32.xlu0 %v1273, 56
      %v1810 = vpop.permute.xlu0 %1809
      %1811 = vrot.lane.b32.xlu0 %v1716, 56
      %v1812 = vpop.permute.xlu0 %1811
      %1813 = vrot.lane.b32.xlu0 %v1718, 56
      %v1814 = vpop.permute.xlu0 %1813
      %1815 = vrot.lane.b32.xlu0 %v1720, 56
      %v1816 = vpop.permute.xlu0 %1815
      %v1865 = vrot.slane %v575, 2
      %v1866 = vsel %vm879, %v1422, %v1865
      %v1867 = vrot.slane %v576, 2
      %v1868 = vsel %vm879, %v1865, %v1867
      %v1869 = vrot.slane %v577, 2
      %v1870 = vsel %vm879, %v1867, %v1869
      %1871 = vrot.lane.b32.xlu0 %v894, 64
      %v1872 = vpop.permute.xlu0 %1871
      %1873 = vrot.lane.b32.xlu0 %v896, 64
      %v1874 = vpop.permute.xlu0 %1873
      %1875 = vrot.lane.b32.xlu0 %v898, 64
      %v1876 = vpop.permute.xlu0 %1875
      %1877 = vrot.lane.b32.xlu0 %v900, 64
      %v1878 = vpop.permute.xlu0 %1877
      %1879 = vrot.lane.b32.xlu0 %v902, 64
      %v1880 = vpop.permute.xlu0 %1879
      %1881 = vrot.lane.b32.xlu0 %v904, 64
      %v1882 = vpop.permute.xlu0 %1881
      %1883 = vrot.lane.b32.xlu0 %v906, 64
      %v1884 = vpop.permute.xlu0 %1883
      %1885 = vrot.lane.b32.xlu0 %v908, 64
      %v1886 = vpop.permute.xlu0 %1885
      %1887 = vrot.lane.b32.xlu0 %v910, 64
      %v1888 = vpop.permute.xlu0 %1887
      %1889 = vrot.lane.b32.xlu0 %v912, 64
      %v1890 = vpop.permute.xlu0 %1889
      %1891 = vrot.lane.b32.xlu0 %v914, 64
      %v1892 = vpop.permute.xlu0 %1891
      %1893 = vrot.lane.b32.xlu0 %v916, 64
      %v1894 = vpop.permute.xlu0 %1893
      %1895 = vrot.lane.b32.xlu0 %v918, 64
      %v1896 = vpop.permute.xlu0 %1895
      %1897 = vrot.lane.b32.xlu0 %v920, 64
      %v1898 = vpop.permute.xlu0 %1897
      %1899 = vrot.lane.b32.xlu0 %v922, 64
      %v1900 = vpop.permute.xlu0 %1899
      %1901 = vrot.lane.b32.xlu0 %v924, 64
      %v1902 = vpop.permute.xlu0 %1901
      %1903 = vrot.lane.b32.xlu0 %v926, 64
      %v1904 = vpop.permute.xlu0 %1903
      %1905 = vrot.lane.b32.xlu0 %v928, 64
      %v1906 = vpop.permute.xlu0 %1905
      %1907 = vrot.lane.b32.xlu0 %v930, 64
      %v1908 = vpop.permute.xlu0 %1907
      %1909 = vrot.lane.b32.xlu0 %v932, 64
      %v1910 = vpop.permute.xlu0 %1909
      %1911 = vrot.lane.b32.xlu0 %v934, 64
      %v1912 = vpop.permute.xlu0 %1911
      %1913 = vrot.lane.b32.xlu0 %v936, 64
      %v1914 = vpop.permute.xlu0 %1913
      %1915 = vrot.lane.b32.xlu0 %v938, 64
      %v1916 = vpop.permute.xlu0 %1915
      %1917 = vrot.lane.b32.xlu0 %v940, 64
      %v1918 = vpop.permute.xlu0 %1917
      %1919 = vrot.lane.b32.xlu0 %v942, 64
      %v1920 = vpop.permute.xlu0 %1919
      %1921 = vrot.lane.b32.xlu0 %v944, 64
      %v1922 = vpop.permute.xlu0 %1921
      %1923 = vrot.lane.b32.xlu0 %v946, 64
      %v1924 = vpop.permute.xlu0 %1923
      %1925 = vrot.lane.b32.xlu0 %v948, 64
      %v1926 = vpop.permute.xlu0 %1925
      %1927 = vrot.lane.b32.xlu0 %v950, 64
      %v1928 = vpop.permute.xlu0 %1927
      %1929 = vrot.lane.b32.xlu0 %v952, 64
      %v1930 = vpop.permute.xlu0 %1929
      %1931 = vrot.lane.b32.xlu0 %v954, 64
      %v1932 = vpop.permute.xlu0 %1931
      %1933 = vrot.lane.b32.xlu0 %v956, 64
      %v1934 = vpop.permute.xlu0 %1933
      %1935 = vrot.lane.b32.xlu0 %v958, 64
      %v1936 = vpop.permute.xlu0 %1935
      %1937 = vrot.lane.b32.xlu0 %v960, 64
      %v1938 = vpop.permute.xlu0 %1937
      %1939 = vrot.lane.b32.xlu0 %v962, 64
      %v1940 = vpop.permute.xlu0 %1939
      %1941 = vrot.lane.b32.xlu0 %v964, 64
      %v1942 = vpop.permute.xlu0 %1941
      %1943 = vrot.lane.b32.xlu0 %v966, 64
      %v1944 = vpop.permute.xlu0 %1943
      %1945 = vrot.lane.b32.xlu0 %v968, 64
      %v1946 = vpop.permute.xlu0 %1945
      %1947 = vrot.lane.b32.xlu0 %v970, 64
      %v1948 = vpop.permute.xlu0 %1947
      %1949 = vrot.lane.b32.xlu0 %v972, 64
      %v1950 = vpop.permute.xlu0 %1949
      %1951 = vrot.lane.b32.xlu0 %v974, 64
      %v1952 = vpop.permute.xlu0 %1951
      %1953 = vrot.lane.b32.xlu0 %v976, 64
      %v1954 = vpop.permute.xlu0 %1953
      %1955 = vrot.lane.b32.xlu0 %v1419, 64
      %v1956 = vpop.permute.xlu0 %1955
      %1957 = vrot.lane.b32.xlu0 %v1421, 64
      %v1958 = vpop.permute.xlu0 %1957
      %1959 = vrot.lane.b32.xlu0 %v1423, 64
      %v1960 = vpop.permute.xlu0 %1959
      %1961 = vrot.lane.b32.xlu0 %v1866, 64
      %v1962 = vpop.permute.xlu0 %1961
      %1963 = vrot.lane.b32.xlu0 %v1868, 64
      %v1964 = vpop.permute.xlu0 %1963
      %1965 = vrot.lane.b32.xlu0 %v1870, 64
      %v1966 = vpop.permute.xlu0 %1965
      %vm2015 = vcmask 64512
      %v2016 = vsel %vm2015, %v523, %v736
      %v2017 = vsel %vm2015, %v524, %v738
      %v2018 = vsel %vm2015, %v525, %v740
      %v2019 = vsel %vm2015, %v526, %v742
      %v2020 = vsel %vm2015, %v527, %v744
      %v2021 = vsel %vm2015, %v528, %v746
      %v2022 = vsel %vm2015, %v529, %v748
      %v2023 = vsel %vm2015, %v530, %v750
      %v2024 = vsel %vm2015, %v531, %v752
      %v2025 = vsel %vm2015, %v532, %v754
      %v2026 = vsel %vm2015, %v533, %v756
      %v2027 = vsel %vm2015, %v534, %v758
      %v2028 = vsel %vm2015, %v535, %v760
      %v2029 = vsel %vm2015, %v536, %v762
      %v2030 = vsel %vm2015, %v537, %v764
      %v2031 = vsel %vm2015, %v538, %v766
      %v2032 = vsel %vm2015, %v539, %v768
      %v2033 = vsel %vm2015, %v540, %v770
      %v2034 = vsel %vm2015, %v541, %v772
      %v2035 = vsel %vm2015, %v542, %v774
      %v2036 = vsel %vm2015, %v543, %v776
      %v2037 = vsel %vm2015, %v544, %v778
      %v2038 = vsel %vm2015, %v545, %v780
      %v2039 = vsel %vm2015, %v546, %v782
      %v2040 = vsel %vm2015, %v547, %v784
      %v2041 = vsel %vm2015, %v548, %v786
      %v2042 = vsel %vm2015, %v549, %v788
      %v2043 = vsel %vm2015, %v550, %v790
      %v2044 = vsel %vm2015, %v551, %v792
      %v2045 = vsel %vm2015, %v552, %v794
      %v2046 = vsel %vm2015, %v553, %v796
      %v2047 = vsel %vm2015, %v554, %v798
      %v2048 = vsel %vm2015, %v555, %v800
      %v2049 = vsel %vm2015, %v556, %v802
      %v2050 = vsel %vm2015, %v557, %v804
      %v2051 = vsel %vm2015, %v558, %v806
      %v2052 = vsel %vm2015, %v559, %v808
      %v2053 = vsel %vm2015, %v560, %v810
      %v2054 = vsel %vm2015, %v561, %v812
      %v2055 = vsel %vm2015, %v562, %v814
      %v2056 = vsel %vm2015, %v563, %v816
      %v2057 = vsel %vm2015, %v564, %v818
      %v2058 = vsel %vm2015, %v565, %v820
      %v2059 = vsel %vm2015, %v566, %v822
      %v2060 = vsel %vm2015, %v567, %v824
      %v2061 = vsel %vm2015, %v568, %v826
      %v2062 = vsel %vm2015, %v569, %v828
      %v2063 = vsel %vm2015, %v570, %v830
      %vm2064 = vcmask 130048
      %v2065 = vsel %vm2064, %v2016, %v978
      %v2066 = vsel %vm2064, %v2017, %v980
      %v2067 = vsel %vm2064, %v2018, %v982
      %v2068 = vsel %vm2064, %v2019, %v984
      %v2069 = vsel %vm2064, %v2020, %v986
      %v2070 = vsel %vm2064, %v2021, %v988
      %v2071 = vsel %vm2064, %v2022, %v990
      %v2072 = vsel %vm2064, %v2023, %v992
      %v2073 = vsel %vm2064, %v2024, %v994
      %v2074 = vsel %vm2064, %v2025, %v996
      %v2075 = vsel %vm2064, %v2026, %v998
      %v2076 = vsel %vm2064, %v2027, %v1000
      %v2077 = vsel %vm2064, %v2028, %v1002
      %v2078 = vsel %vm2064, %v2029, %v1004
      %v2079 = vsel %vm2064, %v2030, %v1006
      %v2080 = vsel %vm2064, %v2031, %v1008
      %v2081 = vsel %vm2064, %v2032, %v1010
      %v2082 = vsel %vm2064, %v2033, %v1012
      %v2083 = vsel %vm2064, %v2034, %v1014
      %v2084 = vsel %vm2064, %v2035, %v1016
      %v2085 = vsel %vm2064, %v2036, %v1018
      %v2086 = vsel %vm2064, %v2037, %v1020
      %v2087 = vsel %vm2064, %v2038, %v1022
      %v2088 = vsel %vm2064, %v2039, %v1024
      %v2089 = vsel %vm2064, %v2040, %v1026
      %v2090 = vsel %vm2064, %v2041, %v1028
      %v2091 = vsel %vm2064, %v2042, %v1030
      %v2092 = vsel %vm2064, %v2043, %v1032
      %v2093 = vsel %vm2064, %v2044, %v1034
      %v2094 = vsel %vm2064, %v2045, %v1036
      %v2095 = vsel %vm2064, %v2046, %v1038
      %v2096 = vsel %vm2064, %v2047, %v1040
      %v2097 = vsel %vm2064, %v2048, %v1042
      %v2098 = vsel %vm2064, %v2049, %v1044
      %v2099 = vsel %vm2064, %v2050, %v1046
      %v2100 = vsel %vm2064, %v2051, %v1048
      %v2101 = vsel %vm2064, %v2052, %v1050
      %v2102 = vsel %vm2064, %v2053, %v1052
      %v2103 = vsel %vm2064, %v2054, %v1054
      %v2104 = vsel %vm2064, %v2055, %v1056
      %v2105 = vsel %vm2064, %v2056, %v1058
      %v2106 = vsel %vm2064, %v2057, %v1060
      %v2107 = vsel %vm2064, %v2058, %v1062
      %v2108 = vsel %vm2064, %v2059, %v1064
      %v2109 = vsel %vm2064, %v2060, %v1066
      %v2110 = vsel %vm2064, %v2061, %v1068
      %v2111 = vsel %vm2064, %v2062, %v1070
      %v2112 = vsel %vm2064, %v2063, %v1072
      %vm2113 = vcmask 195584
      %v2114 = vsel %vm2113, %v2065, %v1124
      %v2115 = vsel %vm2113, %v2066, %v1126
      %v2116 = vsel %vm2113, %v2067, %v1128
      %v2117 = vsel %vm2113, %v2068, %v1130
      %v2118 = vsel %vm2113, %v2069, %v1132
      %v2119 = vsel %vm2113, %v2070, %v1134
      %v2120 = vsel %vm2113, %v2071, %v1136
      %v2121 = vsel %vm2113, %v2072, %v1138
      %v2122 = vsel %vm2113, %v2073, %v1140
      %v2123 = vsel %vm2113, %v2074, %v1142
      %v2124 = vsel %vm2113, %v2075, %v1144
      %v2125 = vsel %vm2113, %v2076, %v1146
      %v2126 = vsel %vm2113, %v2077, %v1148
      %v2127 = vsel %vm2113, %v2078, %v1150
      %v2128 = vsel %vm2113, %v2079, %v1152
      %v2129 = vsel %vm2113, %v2080, %v1154
      %v2130 = vsel %vm2113, %v2081, %v1156
      %v2131 = vsel %vm2113, %v2082, %v1158
      %v2132 = vsel %vm2113, %v2083, %v1160
      %v2133 = vsel %vm2113, %v2084, %v1162
      %v2134 = vsel %vm2113, %v2085, %v1164
      %v2135 = vsel %vm2113, %v2086, %v1166
      %v2136 = vsel %vm2113, %v2087, %v1168
      %v2137 = vsel %vm2113, %v2088, %v1170
      %v2138 = vsel %vm2113, %v2089, %v1172
      %v2139 = vsel %vm2113, %v2090, %v1174
      %v2140 = vsel %vm2113, %v2091, %v1176
      %v2141 = vsel %vm2113, %v2092, %v1178
      %v2142 = vsel %vm2113, %v2093, %v1180
      %v2143 = vsel %vm2113, %v2094, %v1182
      %v2144 = vsel %vm2113, %v2095, %v1184
      %v2145 = vsel %vm2113, %v2096, %v1186
      %v2146 = vsel %vm2113, %v2097, %v1188
      %v2147 = vsel %vm2113, %v2098, %v1190
      %v2148 = vsel %vm2113, %v2099, %v1192
      %v2149 = vsel %vm2113, %v2100, %v1194
      %v2150 = vsel %vm2113, %v2101, %v1196
      %v2151 = vsel %vm2113, %v2102, %v1198
      %v2152 = vsel %vm2113, %v2103, %v1200
      %v2153 = vsel %vm2113, %v2104, %v1202
      %v2154 = vsel %vm2113, %v2105, %v1204
      %v2155 = vsel %vm2113, %v2106, %v1206
      %v2156 = vsel %vm2113, %v2107, %v1208
      %v2157 = vsel %vm2113, %v2108, %v1210
      %v2158 = vsel %vm2113, %v2109, %v1212
      %v2159 = vsel %vm2113, %v2110, %v1214
      %v2160 = vsel %vm2113, %v2111, %v1216
      %v2161 = vsel %vm2113, %v2112, %v1218
      %vm2162 = vcmask 261120
      %v2163 = vsel %vm2162, %v2114, %v1275
      %v2164 = vsel %vm2162, %v2115, %v1277
      %v2165 = vsel %vm2162, %v2116, %v1279
      %v2166 = vsel %vm2162, %v2117, %v1281
      %v2167 = vsel %vm2162, %v2118, %v1283
      %v2168 = vsel %vm2162, %v2119, %v1285
      %v2169 = vsel %vm2162, %v2120, %v1287
      %v2170 = vsel %vm2162, %v2121, %v1289
      %v2171 = vsel %vm2162, %v2122, %v1291
      %v2172 = vsel %vm2162, %v2123, %v1293
      %v2173 = vsel %vm2162, %v2124, %v1295
      %v2174 = vsel %vm2162, %v2125, %v1297
      %v2175 = vsel %vm2162, %v2126, %v1299
      %v2176 = vsel %vm2162, %v2127, %v1301
      %v2177 = vsel %vm2162, %v2128, %v1303
      %v2178 = vsel %vm2162, %v2129, %v1305
      %v2179 = vsel %vm2162, %v2130, %v1307
      %v2180 = vsel %vm2162, %v2131, %v1309
      %v2181 = vsel %vm2162, %v2132, %v1311
      %v2182 = vsel %vm2162, %v2133, %v1313
      %v2183 = vsel %vm2162, %v2134, %v1315
      %v2184 = vsel %vm2162, %v2135, %v1317
      %v2185 = vsel %vm2162, %v2136, %v1319
      %v2186 = vsel %vm2162, %v2137, %v1321
      %v2187 = vsel %vm2162, %v2138, %v1323
      %v2188 = vsel %vm2162, %v2139, %v1325
      %v2189 = vsel %vm2162, %v2140, %v1327
      %v2190 = vsel %vm2162, %v2141, %v1329
      %v2191 = vsel %vm2162, %v2142, %v1331
      %v2192 = vsel %vm2162, %v2143, %v1333
      %v2193 = vsel %vm2162, %v2144, %v1335
      %v2194 = vsel %vm2162, %v2145, %v1337
      %v2195 = vsel %vm2162, %v2146, %v1339
      %v2196 = vsel %vm2162, %v2147, %v1341
      %v2197 = vsel %vm2162, %v2148, %v1343
      %v2198 = vsel %vm2162, %v2149, %v1345
      %v2199 = vsel %vm2162, %v2150, %v1347
      %v2200 = vsel %vm2162, %v2151, %v1349
      %v2201 = vsel %vm2162, %v2152, %v1351
      %v2202 = vsel %vm2162, %v2153, %v1353
      %v2203 = vsel %vm2162, %v2154, %v1355
      %v2204 = vsel %vm2162, %v2155, %v1357
      %v2205 = vsel %vm2162, %v2156, %v1359
      %v2206 = vsel %vm2162, %v2157, %v1361
      %v2207 = vsel %vm2162, %v2158, %v1363
      %v2208 = vsel %vm2162, %v2159, %v1365
      %v2209 = vsel %vm2162, %v2160, %v1367
      %v2210 = vsel %vm2162, %v2161, %v1369
      %vm2211 = vcmask 326656
      %v2212 = vsel %vm2211, %v2163, %v1425
      %v2213 = vsel %vm2211, %v2164, %v1427
      %v2214 = vsel %vm2211, %v2165, %v1429
      %v2215 = vsel %vm2211, %v2166, %v1431
      %v2216 = vsel %vm2211, %v2167, %v1433
      %v2217 = vsel %vm2211, %v2168, %v1435
      %v2218 = vsel %vm2211, %v2169, %v1437
      %v2219 = vsel %vm2211, %v2170, %v1439
      %v2220 = vsel %vm2211, %v2171, %v1441
      %v2221 = vsel %vm2211, %v2172, %v1443
      %v2222 = vsel %vm2211, %v2173, %v1445
      %v2223 = vsel %vm2211, %v2174, %v1447
      %v2224 = vsel %vm2211, %v2175, %v1449
      %v2225 = vsel %vm2211, %v2176, %v1451
      %v2226 = vsel %vm2211, %v2177, %v1453
      %v2227 = vsel %vm2211, %v2178, %v1455
      %v2228 = vsel %vm2211, %v2179, %v1457
      %v2229 = vsel %vm2211, %v2180, %v1459
      %v2230 = vsel %vm2211, %v2181, %v1461
      %v2231 = vsel %vm2211, %v2182, %v1463
      %v2232 = vsel %vm2211, %v2183, %v1465
      %v2233 = vsel %vm2211, %v2184, %v1467
      %v2234 = vsel %vm2211, %v2185, %v1469
      %v2235 = vsel %vm2211, %v2186, %v1471
      %v2236 = vsel %vm2211, %v2187, %v1473
      %v2237 = vsel %vm2211, %v2188, %v1475
      %v2238 = vsel %vm2211, %v2189, %v1477
      %v2239 = vsel %vm2211, %v2190, %v1479
      %v2240 = vsel %vm2211, %v2191, %v1481
      %v2241 = vsel %vm2211, %v2192, %v1483
      %v2242 = vsel %vm2211, %v2193, %v1485
      %v2243 = vsel %vm2211, %v2194, %v1487
      %v2244 = vsel %vm2211, %v2195, %v1489
      %v2245 = vsel %vm2211, %v2196, %v1491
      %v2246 = vsel %vm2211, %v2197, %v1493
      %v2247 = vsel %vm2211, %v2198, %v1495
      %v2248 = vsel %vm2211, %v2199, %v1497
      %v2249 = vsel %vm2211, %v2200, %v1499
      %v2250 = vsel %vm2211, %v2201, %v1501
      %v2251 = vsel %vm2211, %v2202, %v1503
      %v2252 = vsel %vm2211, %v2203, %v1505
      %v2253 = vsel %vm2211, %v2204, %v1507
      %v2254 = vsel %vm2211, %v2205, %v1509
      %v2255 = vsel %vm2211, %v2206, %v1511
      %v2256 = vsel %vm2211, %v2207, %v1513
      %v2257 = vsel %vm2211, %v2208, %v1515
      %v2258 = vsel %vm2211, %v2209, %v1517
      %v2259 = vsel %vm2211, %v2210, %v1519
      %vm2260 = vcmask 392192
      %v2261 = vsel %vm2260, %v2212, %v1571
      %v2262 = vsel %vm2260, %v2213, %v1573
      %v2263 = vsel %vm2260, %v2214, %v1575
      %v2264 = vsel %vm2260, %v2215, %v1577
      %v2265 = vsel %vm2260, %v2216, %v1579
      %v2266 = vsel %vm2260, %v2217, %v1581
      %v2267 = vsel %vm2260, %v2218, %v1583
      %v2268 = vsel %vm2260, %v2219, %v1585
      %v2269 = vsel %vm2260, %v2220, %v1587
      %v2270 = vsel %vm2260, %v2221, %v1589
      %v2271 = vsel %vm2260, %v2222, %v1591
      %v2272 = vsel %vm2260, %v2223, %v1593
      %v2273 = vsel %vm2260, %v2224, %v1595
      %v2274 = vsel %vm2260, %v2225, %v1597
      %v2275 = vsel %vm2260, %v2226, %v1599
      %v2276 = vsel %vm2260, %v2227, %v1601
      %v2277 = vsel %vm2260, %v2228, %v1603
      %v2278 = vsel %vm2260, %v2229, %v1605
      %v2279 = vsel %vm2260, %v2230, %v1607
      %v2280 = vsel %vm2260, %v2231, %v1609
      %v2281 = vsel %vm2260, %v2232, %v1611
      %v2282 = vsel %vm2260, %v2233, %v1613
      %v2283 = vsel %vm2260, %v2234, %v1615
      %v2284 = vsel %vm2260, %v2235, %v1617
      %v2285 = vsel %vm2260, %v2236, %v1619
      %v2286 = vsel %vm2260, %v2237, %v1621
      %v2287 = vsel %vm2260, %v2238, %v1623
      %v2288 = vsel %vm2260, %v2239, %v1625
      %v2289 = vsel %vm2260, %v2240, %v1627
      %v2290 = vsel %vm2260, %v2241, %v1629
      %v2291 = vsel %vm2260, %v2242, %v1631
      %v2292 = vsel %vm2260, %v2243, %v1633
      %v2293 = vsel %vm2260, %v2244, %v1635
      %v2294 = vsel %vm2260, %v2245, %v1637
      %v2295 = vsel %vm2260, %v2246, %v1639
      %v2296 = vsel %vm2260, %v2247, %v1641
      %v2297 = vsel %vm2260, %v2248, %v1643
      %v2298 = vsel %vm2260, %v2249, %v1645
      %v2299 = vsel %vm2260, %v2250, %v1647
      %v2300 = vsel %vm2260, %v2251, %v1649
      %v2301 = vsel %vm2260, %v2252, %v1651
      %v2302 = vsel %vm2260, %v2253, %v1653
      %v2303 = vsel %vm2260, %v2254, %v1655
      %v2304 = vsel %vm2260, %v2255, %v1657
      %v2305 = vsel %vm2260, %v2256, %v1659
      %v2306 = vsel %vm2260, %v2257, %v1661
      %v2307 = vsel %vm2260, %v2258, %v1663
      %v2308 = vsel %vm2260, %v2259, %v1665
      %vm2309 = vcmask 457728
      %v2310 = vsel %vm2309, %v2261, %v1722
      %v2311 = vsel %vm2309, %v2262, %v1724
      %v2312 = vsel %vm2309, %v2263, %v1726
      %v2313 = vsel %vm2309, %v2264, %v1728
      %v2314 = vsel %vm2309, %v2265, %v1730
      %v2315 = vsel %vm2309, %v2266, %v1732
      %v2316 = vsel %vm2309, %v2267, %v1734
      %v2317 = vsel %vm2309, %v2268, %v1736
      %v2318 = vsel %vm2309, %v2269, %v1738
      %v2319 = vsel %vm2309, %v2270, %v1740
      %v2320 = vsel %vm2309, %v2271, %v1742
      %v2321 = vsel %vm2309, %v2272, %v1744
      %v2322 = vsel %vm2309, %v2273, %v1746
      %v2323 = vsel %vm2309, %v2274, %v1748
      %v2324 = vsel %vm2309, %v2275, %v1750
      %v2325 = vsel %vm2309, %v2276, %v1752
      %v2326 = vsel %vm2309, %v2277, %v1754
      %v2327 = vsel %vm2309, %v2278, %v1756
      %v2328 = vsel %vm2309, %v2279, %v1758
      %v2329 = vsel %vm2309, %v2280, %v1760
      %v2330 = vsel %vm2309, %v2281, %v1762
      %v2331 = vsel %vm2309, %v2282, %v1764
      %v2332 = vsel %vm2309, %v2283, %v1766
      %v2333 = vsel %vm2309, %v2284, %v1768
      %v2334 = vsel %vm2309, %v2285, %v1770
      %v2335 = vsel %vm2309, %v2286, %v1772
      %v2336 = vsel %vm2309, %v2287, %v1774
      %v2337 = vsel %vm2309, %v2288, %v1776
      %v2338 = vsel %vm2309, %v2289, %v1778
      %v2339 = vsel %vm2309, %v2290, %v1780
      %v2340 = vsel %vm2309, %v2291, %v1782
      %v2341 = vsel %vm2309, %v2292, %v1784
      %v2342 = vsel %vm2309, %v2293, %v1786
      %v2343 = vsel %vm2309, %v2294, %v1788
      %v2344 = vsel %vm2309, %v2295, %v1790
      %v2345 = vsel %vm2309, %v2296, %v1792
      %v2346 = vsel %vm2309, %v2297, %v1794
      %v2347 = vsel %vm2309, %v2298, %v1796
      %v2348 = vsel %vm2309, %v2299, %v1798
      %v2349 = vsel %vm2309, %v2300, %v1800
      %v2350 = vsel %vm2309, %v2301, %v1802
      %v2351 = vsel %vm2309, %v2302, %v1804
      %v2352 = vsel %vm2309, %v2303, %v1806
      %v2353 = vsel %vm2309, %v2304, %v1808
      %v2354 = vsel %vm2309, %v2305, %v1810
      %v2355 = vsel %vm2309, %v2306, %v1812
      %v2356 = vsel %vm2309, %v2307, %v1814
      %v2357 = vsel %vm2309, %v2308, %v1816
      %vm2358 = vcmask 523264
      %v2359 = vsel %vm2358, %v2310, %v1872
      %v2360 = vsel %vm2358, %v2311, %v1874
      %v2361 = vsel %vm2358, %v2312, %v1876
      %v2362 = vsel %vm2358, %v2313, %v1878
      %v2363 = vsel %vm2358, %v2314, %v1880
      %v2364 = vsel %vm2358, %v2315, %v1882
      %v2365 = vsel %vm2358, %v2316, %v1884
      %v2366 = vsel %vm2358, %v2317, %v1886
      %v2367 = vsel %vm2358, %v2318, %v1888
      %v2368 = vsel %vm2358, %v2319, %v1890
      %v2369 = vsel %vm2358, %v2320, %v1892
      %v2370 = vsel %vm2358, %v2321, %v1894
      %v2371 = vsel %vm2358, %v2322, %v1896
      %v2372 = vsel %vm2358, %v2323, %v1898
      %v2373 = vsel %vm2358, %v2324, %v1900
      %v2374 = vsel %vm2358, %v2325, %v1902
      %v2375 = vsel %vm2358, %v2326, %v1904
      %v2376 = vsel %vm2358, %v2327, %v1906
      %v2377 = vsel %vm2358, %v2328, %v1908
      %v2378 = vsel %vm2358, %v2329, %v1910
      %v2379 = vsel %vm2358, %v2330, %v1912
      %v2380 = vsel %vm2358, %v2331, %v1914
      %v2381 = vsel %vm2358, %v2332, %v1916
      %v2382 = vsel %vm2358, %v2333, %v1918
      %v2383 = vsel %vm2358, %v2334, %v1920
      %v2384 = vsel %vm2358, %v2335, %v1922
      %v2385 = vsel %vm2358, %v2336, %v1924
      %v2386 = vsel %vm2358, %v2337, %v1926
      %v2387 = vsel %vm2358, %v2338, %v1928
      %v2388 = vsel %vm2358, %v2339, %v1930
      %v2389 = vsel %vm2358, %v2340, %v1932
      %v2390 = vsel %vm2358, %v2341, %v1934
      %v2391 = vsel %vm2358, %v2342, %v1936
      %v2392 = vsel %vm2358, %v2343, %v1938
      %v2393 = vsel %vm2358, %v2344, %v1940
      %v2394 = vsel %vm2358, %v2345, %v1942
      %v2395 = vsel %vm2358, %v2346, %v1944
      %v2396 = vsel %vm2358, %v2347, %v1946
      %v2397 = vsel %vm2358, %v2348, %v1948
      %v2398 = vsel %vm2358, %v2349, %v1950
      %v2399 = vsel %vm2358, %v2350, %v1952
      %v2400 = vsel %vm2358, %v2351, %v1954
      %v2401 = vsel %vm2358, %v2352, %v1956
      %v2402 = vsel %vm2358, %v2353, %v1958
      %v2403 = vsel %vm2358, %v2354, %v1960
      %v2404 = vsel %vm2358, %v2355, %v1962
      %v2405 = vsel %vm2358, %v2356, %v1964
      %v2406 = vsel %vm2358, %v2357, %v1966
      %v2407 = vpack.c.bf16 %v2360, %v2359
      %v2408 = vpack.c.bf16 %v2362, %v2361
      %v2409 = vpack.c.bf16 %v2364, %v2363
      %v2410 = vpack.c.bf16 %v2366, %v2365
      %v2411 = vpack.c.bf16 %v2368, %v2367
      %v2412 = vpack.c.bf16 %v2370, %v2369
      %v2413 = vpack.c.bf16 %v2372, %v2371
      %v2414 = vpack.c.bf16 %v2374, %v2373
      %v2415 = vpack.c.bf16 %v2376, %v2375
      %v2416 = vpack.c.bf16 %v2378, %v2377
      %v2417 = vpack.c.bf16 %v2380, %v2379
      %v2418 = vpack.c.bf16 %v2382, %v2381
      %v2419 = vpack.c.bf16 %v2384, %v2383
      %v2420 = vpack.c.bf16 %v2386, %v2385
      %v2421 = vpack.c.bf16 %v2388, %v2387
      %v2422 = vpack.c.bf16 %v2390, %v2389
      %v2423 = vpack.c.bf16 %v2392, %v2391
      %v2424 = vpack.c.bf16 %v2394, %v2393
      %v2425 = vpack.c.bf16 %v2396, %v2395
      %v2426 = vpack.c.bf16 %v2398, %v2397
      %v2427 = vpack.c.bf16 %v2400, %v2399
      %v2428 = vpack.c.bf16 %v2402, %v2401
      %v2429 = vpack.c.bf16 %v2404, %v2403
      %v2430 = vpack.c.bf16 %v2406, %v2405
      %v2432 = vperm.slane %v587, 0
      %v2443 = vunpack.c.l.b16 %v578
      %v2444 = vunpack.c.l.b16 %v579
      %v2445 = vunpack.c.l.b16 %v580
      %v2446 = vunpack.c.l.b16 %v581
      %v2447 = vunpack.c.l.b16 %v582
      %v2448 = vunpack.c.l.b16 %v583
      %v2449 = vunpack.c.l.b16 %v584
      %v2450 = vunpack.c.l.b16 %v585
      %v2451 = vunpack.c.l.b16 %v586
      %v2452 = vpack.c.b16 %v2444, %v2443
      %v2453 = vpack.c.b16 %v2446, %v2445
      %v2454 = vpack.c.b16 %v2448, %v2447
      %v2455 = vpack.c.b16 %v2450, %v2449
      %v2456 = vpack.c.b16 %v2451, %v2451
      %vm2461 = vcmask 588800
      %v2463 = vsel %vm2461, %v2407, 0
      %v2466 = vsel %vm2461, %v2408, 0
      %v2469 = vsel %vm2461, %v2409, 0
      %v2472 = vsel %vm2461, %v2410, 0
      %v2475 = vsel %vm2461, %v2411, 0
      %v2478 = vsel %vm2461, %v2412, 0
      %v2481 = vsel %vm2461, %v2413, 0
      %v2484 = vsel %vm2461, %v2414, 0
      %v2487 = vsel %vm2461, %v2415, 0
      %v2490 = vsel %vm2461, %v2416, 0
      %v2493 = vsel %vm2461, %v2417, 0
      %v2496 = vsel %vm2461, %v2418, 0
      %v2499 = vsel %vm2461, %v2419, 0
      %v2502 = vsel %vm2461, %v2420, 0
      %v2505 = vsel %vm2461, %v2421, 0
      %v2508 = vsel %vm2461, %v2422, 0
      %v2511 = vsel %vm2461, %v2423, 0
      %v2514 = vsel %vm2461, %v2424, 0
      %v2517 = vsel %vm2461, %v2425, 0
      %v2520 = vsel %vm2461, %v2426, 0
      %v2523 = vsel %vm2461, %v2427, 0
      %v2526 = vsel %vm2461, %v2428, 0
      %v2529 = vsel %vm2461, %v2429, 0
      %v2532 = vsel %vm2461, %v2430, 0
      %vm2534 = vcmask 1043456
      %v2536 = vsel %vm2534, %v2456, 0
      %2538 = vmatpush.bf16.msra.mxu0 0
      %2539 = vmatpush.bf16.msra.mxu0 0
      %2540 = vmatpush.bf16.msra.mxu0 0
      %2541 = vmatpush.bf16.msra.mxu0 %v2536
      %2542 = vmatpush.bf16.msra.mxu0 %v2455
      %2543 = vmatpush.bf16.msra.mxu0 %v2454
      %2544 = vmatpush.bf16.msra.mxu0 %v2453
      %2545 = vmatpush.bf16.msra.mxu0 %v2452
      %2546 = vmatmul.bf16.gmra.mxu0 %v2463
      %v2547 = vpop.f32.mrf.mxu0
      %v2548 = vadd.f32 %v2432, %v2547
      %v2549 = vpop.f32.mrf.mxu0
      %v2550 = vadd.f32 %v2432, %v2549
      %2551 = vmatmul.bf16.gmra.mxu0 %v2466
      %v2552 = vpop.f32.mrf.mxu0
      %v2553 = vadd.f32 %v2432, %v2552
      %v2554 = vpop.f32.mrf.mxu0
      %v2555 = vadd.f32 %v2432, %v2554
      %2556 = vmatmul.bf16.gmra.mxu0 %v2469
      %v2557 = vpop.f32.mrf.mxu0
      %v2558 = vadd.f32 %v2432, %v2557
      %v2559 = vpop.f32.mrf.mxu0
      %v2560 = vadd.f32 %v2432, %v2559
      %2561 = vmatmul.bf16.gmra.mxu0 %v2472
      %v2562 = vpop.f32.mrf.mxu0
      %v2563 = vadd.f32 %v2432, %v2562
      %v2564 = vpop.f32.mrf.mxu0
      %v2565 = vadd.f32 %v2432, %v2564
      %2566 = vmatmul.bf16.gmra.mxu0 %v2475
      %v2567 = vpop.f32.mrf.mxu0
      %v2568 = vadd.f32 %v2432, %v2567
      %v2569 = vpop.f32.mrf.mxu0
      %v2570 = vadd.f32 %v2432, %v2569
      %2571 = vmatmul.bf16.gmra.mxu0 %v2478
      %v2572 = vpop.f32.mrf.mxu0
      %v2573 = vadd.f32 %v2432, %v2572
      %v2574 = vpop.f32.mrf.mxu0
      %v2575 = vadd.f32 %v2432, %v2574
      %2576 = vmatmul.bf16.gmra.mxu0 %v2481
      %v2577 = vpop.f32.mrf.mxu0
      %v2578 = vadd.f32 %v2432, %v2577
      %v2579 = vpop.f32.mrf.mxu0
      %v2580 = vadd.f32 %v2432, %v2579
      %2581 = vmatmul.bf16.gmra.mxu0 %v2484
      %v2582 = vpop.f32.mrf.mxu0
      %v2583 = vadd.f32 %v2432, %v2582
      %v2584 = vpop.f32.mrf.mxu0
      %v2585 = vadd.f32 %v2432, %v2584
      %2586 = vmatmul.bf16.gmra.mxu0 %v2487
      %v2587 = vpop.f32.mrf.mxu0
      %v2588 = vadd.f32 %v2432, %v2587
      %v2589 = vpop.f32.mrf.mxu0
      %v2590 = vadd.f32 %v2432, %v2589
      %2591 = vmatmul.bf16.gmra.mxu0 %v2490
      %v2592 = vpop.f32.mrf.mxu0
      %v2593 = vadd.f32 %v2432, %v2592
      %v2594 = vpop.f32.mrf.mxu0
      %v2595 = vadd.f32 %v2432, %v2594
      %2596 = vmatmul.bf16.gmra.mxu0 %v2493
      %v2597 = vpop.f32.mrf.mxu0
      %v2598 = vadd.f32 %v2432, %v2597
      %v2599 = vpop.f32.mrf.mxu0
      %v2600 = vadd.f32 %v2432, %v2599
      %2601 = vmatmul.bf16.gmra.mxu0 %v2496
      %v2602 = vpop.f32.mrf.mxu0
      %v2603 = vadd.f32 %v2432, %v2602
      %v2604 = vpop.f32.mrf.mxu0
      %v2605 = vadd.f32 %v2432, %v2604
      %2606 = vmatmul.bf16.gmra.mxu0 %v2499
      %v2607 = vpop.f32.mrf.mxu0
      %v2608 = vadd.f32 %v2432, %v2607
      %v2609 = vpop.f32.mrf.mxu0
      %v2610 = vadd.f32 %v2432, %v2609
      %2611 = vmatmul.bf16.gmra.mxu0 %v2502
      %v2612 = vpop.f32.mrf.mxu0
      %v2613 = vadd.f32 %v2432, %v2612
      %v2614 = vpop.f32.mrf.mxu0
      %v2615 = vadd.f32 %v2432, %v2614
      %2616 = vmatmul.bf16.gmra.mxu0 %v2505
      %v2617 = vpop.f32.mrf.mxu0
      %v2618 = vadd.f32 %v2432, %v2617
      %v2619 = vpop.f32.mrf.mxu0
      %v2620 = vadd.f32 %v2432, %v2619
      %2621 = vmatmul.bf16.gmra.mxu0 %v2508
      %v2622 = vpop.f32.mrf.mxu0
      %v2623 = vadd.f32 %v2432, %v2622
      %v2624 = vpop.f32.mrf.mxu0
      %v2625 = vadd.f32 %v2432, %v2624
      %2626 = vmatmul.bf16.gmra.mxu0 %v2511
      %v2627 = vpop.f32.mrf.mxu0
      %v2628 = vadd.f32 %v2432, %v2627
      %v2629 = vpop.f32.mrf.mxu0
      %v2630 = vadd.f32 %v2432, %v2629
      %2631 = vmatmul.bf16.gmra.mxu0 %v2514
      %v2632 = vpop.f32.mrf.mxu0
      %v2633 = vadd.f32 %v2432, %v2632
      %v2634 = vpop.f32.mrf.mxu0
      %v2635 = vadd.f32 %v2432, %v2634
      %2636 = vmatmul.bf16.gmra.mxu0 %v2517
      %v2637 = vpop.f32.mrf.mxu0
      %v2638 = vadd.f32 %v2432, %v2637
      %v2639 = vpop.f32.mrf.mxu0
      %v2640 = vadd.f32 %v2432, %v2639
      %2641 = vmatmul.bf16.gmra.mxu0 %v2520
      %v2642 = vpop.f32.mrf.mxu0
      %v2643 = vadd.f32 %v2432, %v2642
      %v2644 = vpop.f32.mrf.mxu0
      %v2645 = vadd.f32 %v2432, %v2644
      %2646 = vmatmul.bf16.gmra.mxu0 %v2523
      %v2647 = vpop.f32.mrf.mxu0
      %v2648 = vadd.f32 %v2432, %v2647
      %v2649 = vpop.f32.mrf.mxu0
      %v2650 = vadd.f32 %v2432, %v2649
      %2651 = vmatmul.bf16.gmra.mxu0 %v2526
      %v2652 = vpop.f32.mrf.mxu0
      %v2653 = vadd.f32 %v2432, %v2652
      %v2654 = vpop.f32.mrf.mxu0
      %v2655 = vadd.f32 %v2432, %v2654
      %2656 = vmatmul.bf16.gmra.mxu0 %v2529
      %v2657 = vpop.f32.mrf.mxu0
      %v2658 = vadd.f32 %v2432, %v2657
      %v2659 = vpop.f32.mrf.mxu0
      %v2660 = vadd.f32 %v2432, %v2659
      %2661 = vmatmul.bf16.gmra.mxu0 %v2532
      %v2662 = vpop.f32.mrf.mxu0
      %v2663 = vadd.f32 %v2432, %v2662
      %v2664 = vpop.f32.mrf.mxu0
      %v2665 = vadd.f32 %v2432, %v2664
      %2666 = vdwg.mxu0
      %v2667 = vmax.f32 %v2548, 0.0
      %v2668 = vmax.f32 %v2550, 0.0
      %v2669 = vmax.f32 %v2553, 0.0
      %v2670 = vmax.f32 %v2555, 0.0
      %v2671 = vmax.f32 %v2558, 0.0
      %v2672 = vmax.f32 %v2560, 0.0
      %v2673 = vmax.f32 %v2563, 0.0
      %v2674 = vmax.f32 %v2565, 0.0
      %v2675 = vmax.f32 %v2568, 0.0
      %v2676 = vmax.f32 %v2570, 0.0
      %v2677 = vmax.f32 %v2573, 0.0
      %v2678 = vmax.f32 %v2575, 0.0
      %v2679 = vmax.f32 %v2578, 0.0
      %v2680 = vmax.f32 %v2580, 0.0
      %v2681 = vmax.f32 %v2583, 0.0
      %v2682 = vmax.f32 %v2585, 0.0
      %v2683 = vmax.f32 %v2588, 0.0
      %v2684 = vmax.f32 %v2590, 0.0
      %v2685 = vmax.f32 %v2593, 0.0
      %v2686 = vmax.f32 %v2595, 0.0
      %v2687 = vmax.f32 %v2598, 0.0
      %v2688 = vmax.f32 %v2600, 0.0
      %v2689 = vmax.f32 %v2603, 0.0
      %v2690 = vmax.f32 %v2605, 0.0
      %v2691 = vmax.f32 %v2608, 0.0
      %v2692 = vmax.f32 %v2610, 0.0
      %v2693 = vmax.f32 %v2613, 0.0
      %v2694 = vmax.f32 %v2615, 0.0
      %v2695 = vmax.f32 %v2618, 0.0
      %v2696 = vmax.f32 %v2620, 0.0
      %v2697 = vmax.f32 %v2623, 0.0
      %v2698 = vmax.f32 %v2625, 0.0
      %v2699 = vmax.f32 %v2628, 0.0
      %v2700 = vmax.f32 %v2630, 0.0
      %v2701 = vmax.f32 %v2633, 0.0
      %v2702 = vmax.f32 %v2635, 0.0
      %v2703 = vmax.f32 %v2638, 0.0
      %v2704 = vmax.f32 %v2640, 0.0
      %v2705 = vmax.f32 %v2643, 0.0
      %v2706 = vmax.f32 %v2645, 0.0
      %v2707 = vmax.f32 %v2648, 0.0
      %v2708 = vmax.f32 %v2650, 0.0
      %v2709 = vmax.f32 %v2653, 0.0
      %v2710 = vmax.f32 %v2655, 0.0
      %v2711 = vmax.f32 %v2658, 0.0
      %v2712 = vmax.f32 %v2660, 0.0
      %v2713 = vmax.f32 %v2663, 0.0
      %v2714 = vmax.f32 %v2665, 0.0
      %2715 = vst.msk [vmem:[#allocation2] sm:$0xff] %vm2064, 0.0
      %2716 = vst.msk [vmem:[#allocation2 + $0x8] sm:$0xff] %vm2064, 0.0
      %2717 = vst.msk [vmem:[#allocation2 + $0x10] sm:$0xff] %vm2064, 0.0
      %2718 = vst.msk [vmem:[#allocation2 + $0x18] sm:$0xff] %vm2064, 0.0
      %2719 = vst.msk [vmem:[#allocation2 + $0x20] sm:$0xff] %vm2064, 0.0
      %2720 = vst.msk [vmem:[#allocation2 + $0x28] sm:$0xff] %vm2064, 0.0
      %2721 = vst.msk [vmem:[#allocation2 + $0x30] sm:$0xff] %vm2064, 0.0
      %2722 = vst.msk [vmem:[#allocation2 + $0x38] sm:$0xff] %vm2064, 0.0
      %2723 = vst.msk [vmem:[#allocation2 + $0x40] sm:$0xff] %vm2064, 0.0
      %2724 = vst.msk [vmem:[#allocation2 + $0x48] sm:$0xff] %vm2064, 0.0
      %2725 = vst.msk [vmem:[#allocation2 + $0x50] sm:$0xff] %vm2064, 0.0
      %2726 = vst.msk [vmem:[#allocation2 + $0x58] sm:$0xff] %vm2064, 0.0
      %2727 = vst.msk [vmem:[#allocation2 + $0x60] sm:$0xff] %vm2064, 0.0
      %2728 = vst.msk [vmem:[#allocation2 + $0x68] sm:$0xff] %vm2064, 0.0
      %2729 = vst.msk [vmem:[#allocation2 + $0x70] sm:$0xff] %vm2064, 0.0
      %2730 = vst.msk [vmem:[#allocation2 + $0x78] sm:$0xff] %vm2064, 0.0
      %2731 = vst.msk [vmem:[#allocation2 + $0x80] sm:$0xff] %vm2064, 0.0
      %2732 = vst.msk [vmem:[#allocation2 + $0x88] sm:$0xff] %vm2064, 0.0
      %2733 = vst.msk [vmem:[#allocation2 + $0x90] sm:$0xff] %vm2064, 0.0
      %2734 = vst.msk [vmem:[#allocation2 + $0x98] sm:$0xff] %vm2064, 0.0
      %2735 = vst.msk [vmem:[#allocation2 + $0xa0] sm:$0xff] %vm2064, 0.0
      %2736 = vst.msk [vmem:[#allocation2 + $0xa8] sm:$0xff] %vm2064, 0.0
      %v2737 = vld [vmem:[%s7] sm:$0xff]
      %v2738 = vld [vmem:[%s7 + $0x8] sm:$0xff]
      %v2739 = vmax.f32 %v2667, %v2670
      %v2740 = vmax.f32 %v2668, %v2671
      %v2741 = vmax.f32 %v2669, %v2672
      %v2743 = vsel %vm2113, %v2737, 0
      %v2746 = vsel %vm2113, %v2738, 0
      %2748 = vmatpush.msra.mxu0 0.0
      %2749 = vmatpush.msra.mxu0 0.0
      %2750 = vmatpush.msra.mxu0 0.0
      %2751 = vmatpush.msra.mxu0 0.0
      %2752 = vmatpush.msra.mxu0 0.0
      %2753 = vmatpush.msra.mxu0 0.0
      %2754 = vmatpush.msra.mxu0 0.0
      %2755 = vmatpush.msra.mxu0 0.0
      %2756 = vmatpush.msra.mxu0 0.0
      %2757 = vmatpush.msra.mxu0 0.0
      %2758 = vmatpush.msra.mxu0 0.0
      %2759 = vmatpush.msra.mxu0 0.0
      %2760 = vmatpush.msra.mxu0 0.0
      %2761 = vmatpush.msra.mxu0 %v2741
      %2762 = vmatpush.msra.mxu0 %v2740
      %2763 = vmatpush.msra.mxu0 %v2739
      %2764 = vmatmul.f32.gmra.mxu0 %v2743
      %v2765 = vpop.f32.mrf.mxu0
      %v2766 = vadd.f32 0.0, %v2765
      %2767 = vmatmul.f32.gmra.mxu0 %v2746
      %v2768 = vpop.f32.mrf.mxu0
      %v2769 = vadd.f32 0.0, %v2768
      %2770 = vdwg.mxu0
      %v2771 = vmax.f32 %v2766, %v2769
      %2772 = vst.msk [vmem:[#allocation2 + $0x11] sm:$0xff] %vm2064, %v2771
      %v2773 = vmax.f32 %v2673, %v2676
      %v2774 = vmax.f32 %v2674, %v2677
      %v2775 = vmax.f32 %v2675, %v2678
      %2776 = vmatpush.msra.mxu0 0.0
      %2777 = vmatpush.msra.mxu0 0.0
      %2778 = vmatpush.msra.mxu0 0.0
      %2779 = vmatpush.msra.mxu0 0.0
      %2780 = vmatpush.msra.mxu0 0.0
      %2781 = vmatpush.msra.mxu0 0.0
      %2782 = vmatpush.msra.mxu0 0.0
      %2783 = vmatpush.msra.mxu0 0.0
      %2784 = vmatpush.msra.mxu0 0.0
      %2785 = vmatpush.msra.mxu0 0.0
      %2786 = vmatpush.msra.mxu0 0.0
      %2787 = vmatpush.msra.mxu0 0.0
      %2788 = vmatpush.msra.mxu0 0.0
      %2789 = vmatpush.msra.mxu0 %v2775
      %2790 = vmatpush.msra.mxu0 %v2774
      %2791 = vmatpush.msra.mxu0 %v2773
      %2792 = vmatmul.f32.gmra.mxu0 %v2743
      %v2793 = vpop.f32.mrf.mxu0
      %v2794 = vadd.f32 0.0, %v2793
      %2795 = vmatmul.f32.gmra.mxu0 %v2746
      %v2796 = vpop.f32.mrf.mxu0
      %v2797 = vadd.f32 0.0, %v2796
      %2798 = vdwg.mxu0
      %v2799 = vmax.f32 %v2794, %v2797
      %2800 = vst.msk [vmem:[#allocation2 + $0x21] sm:$0xff] %vm2064, %v2799
      %v2801 = vmax.f32 %v2679, %v2682
      %v2802 = vmax.f32 %v2680, %v2683
      %v2803 = vmax.f32 %v2681, %v2684
      %2804 = vmatpush.msra.mxu0 0.0
      %2805 = vmatpush.msra.mxu0 0.0
      %2806 = vmatpush.msra.mxu0 0.0
      %2807 = vmatpush.msra.mxu0 0.0
      %2808 = vmatpush.msra.mxu0 0.0
      %2809 = vmatpush.msra.mxu0 0.0
      %2810 = vmatpush.msra.mxu0 0.0
      %2811 = vmatpush.msra.mxu0 0.0
      %2812 = vmatpush.msra.mxu0 0.0
      %2813 = vmatpush.msra.mxu0 0.0
      %2814 = vmatpush.msra.mxu0 0.0
      %2815 = vmatpush.msra.mxu0 0.0
      %2816 = vmatpush.msra.mxu0 0.0
      %2817 = vmatpush.msra.mxu0 %v2803
      %2818 = vmatpush.msra.mxu0 %v2802
      %2819 = vmatpush.msra.mxu0 %v2801
      %2820 = vmatmul.f32.gmra.mxu0 %v2743
      %v2821 = vpop.f32.mrf.mxu0
      %v2822 = vadd.f32 0.0, %v2821
      %2823 = vmatmul.f32.gmra.mxu0 %v2746
      %v2824 = vpop.f32.mrf.mxu0
      %v2825 = vadd.f32 0.0, %v2824
      %2826 = vdwg.mxu0
      %v2827 = vmax.f32 %v2822, %v2825
      %2828 = vst.msk [vmem:[#allocation2 + $0x31] sm:$0xff] %vm2064, %v2827
      %v2829 = vmax.f32 %v2685, %v2688
      %v2830 = vmax.f32 %v2686, %v2689
      %v2831 = vmax.f32 %v2687, %v2690
      %2832 = vmatpush.msra.mxu0 0.0
      %2833 = vmatpush.msra.mxu0 0.0
      %2834 = vmatpush.msra.mxu0 0.0
      %2835 = vmatpush.msra.mxu0 0.0
      %2836 = vmatpush.msra.mxu0 0.0
      %2837 = vmatpush.msra.mxu0 0.0
      %2838 = vmatpush.msra.mxu0 0.0
      %2839 = vmatpush.msra.mxu0 0.0
      %2840 = vmatpush.msra.mxu0 0.0
      %2841 = vmatpush.msra.mxu0 0.0
      %2842 = vmatpush.msra.mxu0 0.0
      %2843 = vmatpush.msra.mxu0 0.0
      %2844 = vmatpush.msra.mxu0 0.0
      %2845 = vmatpush.msra.mxu0 %v2831
      %2846 = vmatpush.msra.mxu0 %v2830
      %2847 = vmatpush.msra.mxu0 %v2829
      %2848 = vmatmul.f32.gmra.mxu0 %v2743
      %v2849 = vpop.f32.mrf.mxu0
      %v2850 = vadd.f32 0.0, %v2849
      %2851 = vmatmul.f32.gmra.mxu0 %v2746
      %v2852 = vpop.f32.mrf.mxu0
      %v2853 = vadd.f32 0.0, %v2852
      %2854 = vdwg.mxu0
      %v2855 = vmax.f32 %v2850, %v2853
      %2856 = vst.msk [vmem:[#allocation2 + $0x41] sm:$0xff] %vm2064, %v2855
      %v2857 = vmax.f32 %v2691, %v2694
      %v2858 = vmax.f32 %v2692, %v2695
      %v2859 = vmax.f32 %v2693, %v2696
      %2860 = vmatpush.msra.mxu0 0.0
      %2861 = vmatpush.msra.mxu0 0.0
      %2862 = vmatpush.msra.mxu0 0.0
      %2863 = vmatpush.msra.mxu0 0.0
      %2864 = vmatpush.msra.mxu0 0.0
      %2865 = vmatpush.msra.mxu0 0.0
      %2866 = vmatpush.msra.mxu0 0.0
      %2867 = vmatpush.msra.mxu0 0.0
      %2868 = vmatpush.msra.mxu0 0.0
      %2869 = vmatpush.msra.mxu0 0.0
      %2870 = vmatpush.msra.mxu0 0.0
      %2871 = vmatpush.msra.mxu0 0.0
      %2872 = vmatpush.msra.mxu0 0.0
      %2873 = vmatpush.msra.mxu0 %v2859
      %2874 = vmatpush.msra.mxu0 %v2858
      %2875 = vmatpush.msra.mxu0 %v2857
      %2876 = vmatmul.f32.gmra.mxu0 %v2743
      %v2877 = vpop.f32.mrf.mxu0
      %v2878 = vadd.f32 0.0, %v2877
      %2879 = vmatmul.f32.gmra.mxu0 %v2746
      %v2880 = vpop.f32.mrf.mxu0
      %v2881 = vadd.f32 0.0, %v2880
      %2882 = vdwg.mxu0
      %v2883 = vmax.f32 %v2878, %v2881
      %2884 = vst.msk [vmem:[#allocation2 + $0x51] sm:$0xff] %vm2064, %v2883
      %v2885 = vmax.f32 %v2697, %v2700
      %v2886 = vmax.f32 %v2698, %v2701
      %v2887 = vmax.f32 %v2699, %v2702
      %2888 = vmatpush.msra.mxu0 0.0
      %2889 = vmatpush.msra.mxu0 0.0
      %2890 = vmatpush.msra.mxu0 0.0
      %2891 = vmatpush.msra.mxu0 0.0
      %2892 = vmatpush.msra.mxu0 0.0
      %2893 = vmatpush.msra.mxu0 0.0
      %2894 = vmatpush.msra.mxu0 0.0
      %2895 = vmatpush.msra.mxu0 0.0
      %2896 = vmatpush.msra.mxu0 0.0
      %2897 = vmatpush.msra.mxu0 0.0
      %2898 = vmatpush.msra.mxu0 0.0
      %2899 = vmatpush.msra.mxu0 0.0
      %2900 = vmatpush.msra.mxu0 0.0
      %2901 = vmatpush.msra.mxu0 %v2887
      %2902 = vmatpush.msra.mxu0 %v2886
      %2903 = vmatpush.msra.mxu0 %v2885
      %2904 = vmatmul.f32.gmra.mxu0 %v2743
      %v2905 = vpop.f32.mrf.mxu0
      %v2906 = vadd.f32 0.0, %v2905
      %2907 = vmatmul.f32.gmra.mxu0 %v2746
      %v2908 = vpop.f32.mrf.mxu0
      %v2909 = vadd.f32 0.0, %v2908
      %2910 = vdwg.mxu0
      %v2911 = vmax.f32 %v2906, %v2909
      %2912 = vst.msk [vmem:[#allocation2 + $0x61] sm:$0xff] %vm2064, %v2911
      %v2913 = vmax.f32 %v2703, %v2706
      %v2914 = vmax.f32 %v2704, %v2707
      %v2915 = vmax.f32 %v2705, %v2708
      %2916 = vmatpush.msra.mxu0 0.0
      %2917 = vmatpush.msra.mxu0 0.0
      %2918 = vmatpush.msra.mxu0 0.0
      %2919 = vmatpush.msra.mxu0 0.0
      %2920 = vmatpush.msra.mxu0 0.0
      %2921 = vmatpush.msra.mxu0 0.0
      %2922 = vmatpush.msra.mxu0 0.0
      %2923 = vmatpush.msra.mxu0 0.0
      %2924 = vmatpush.msra.mxu0 0.0
      %2925 = vmatpush.msra.mxu0 0.0
      %2926 = vmatpush.msra.mxu0 0.0
      %2927 = vmatpush.msra.mxu0 0.0
      %2928 = vmatpush.msra.mxu0 0.0
      %2929 = vmatpush.msra.mxu0 %v2915
      %2930 = vmatpush.msra.mxu0 %v2914
      %2931 = vmatpush.msra.mxu0 %v2913
      %2932 = vmatmul.f32.gmra.mxu0 %v2743
      %v2933 = vpop.f32.mrf.mxu0
      %v2934 = vadd.f32 0.0, %v2933
      %2935 = vmatmul.f32.gmra.mxu0 %v2746
      %v2936 = vpop.f32.mrf.mxu0
      %v2937 = vadd.f32 0.0, %v2936
      %2938 = vdwg.mxu0
      %v2939 = vmax.f32 %v2934, %v2937
      %2940 = vst.msk [vmem:[#allocation2 + $0x71] sm:$0xff] %vm2064, %v2939
      %v2941 = vmax.f32 %v2709, %v2712
      %v2942 = vmax.f32 %v2710, %v2713
      %v2943 = vmax.f32 %v2711, %v2714
      %2944 = vmatpush.msra.mxu0 0.0
      %2945 = vmatpush.msra.mxu0 0.0
      %2946 = vmatpush.msra.mxu0 0.0
      %2947 = vmatpush.msra.mxu0 0.0
      %2948 = vmatpush.msra.mxu0 0.0
      %2949 = vmatpush.msra.mxu0 0.0
      %2950 = vmatpush.msra.mxu0 0.0
      %2951 = vmatpush.msra.mxu0 0.0
      %2952 = vmatpush.msra.mxu0 0.0
      %2953 = vmatpush.msra.mxu0 0.0
      %2954 = vmatpush.msra.mxu0 0.0
      %2955 = vmatpush.msra.mxu0 0.0
      %2956 = vmatpush.msra.mxu0 0.0
      %2957 = vmatpush.msra.mxu0 %v2943
      %2958 = vmatpush.msra.mxu0 %v2942
      %2959 = vmatpush.msra.mxu0 %v2941
      %2960 = vmatmul.f32.gmra.mxu0 %v2743
      %v2961 = vpop.f32.mrf.mxu0
      %v2962 = vadd.f32 0.0, %v2961
      %2963 = vmatmul.f32.gmra.mxu0 %v2746
      %v2964 = vpop.f32.mrf.mxu0
      %v2965 = vadd.f32 0.0, %v2964
      %2966 = vdwg.mxu0
      %v2967 = vmax.f32 %v2962, %v2965
      %2968 = vst.msk [vmem:[#allocation2 + $0x81] sm:$0xff] %vm2064, %v2967
      %v2969 = vld [vmem:[#allocation2] sm:$0xff]
      %v2970 = vld [vmem:[#allocation2 + $0x8] sm:$0xff]
      %v2971 = vld [vmem:[#allocation2 + $0x10] sm:$0xff]
      %v2972 = vld [vmem:[#allocation2 + $0x18] sm:$0xff]
      %v2973 = vld [vmem:[#allocation2 + $0x20] sm:$0xff]
      %v2974 = vld [vmem:[#allocation2 + $0x28] sm:$0xff]
      %v2975 = vld [vmem:[#allocation2 + $0x30] sm:$0xff]
      %v2976 = vld [vmem:[#allocation2 + $0x38] sm:$0xff]
      %v2977 = vld [vmem:[#allocation2 + $0x40] sm:$0xff]
      %v2978 = vld [vmem:[#allocation2 + $0x48] sm:$0xff]
      %v2979 = vld [vmem:[#allocation2 + $0x50] sm:$0xff]
      %v2980 = vld [vmem:[#allocation2 + $0x58] sm:$0xff]
      %v2981 = vld [vmem:[#allocation2 + $0x60] sm:$0xff]
      %v2982 = vld [vmem:[#allocation2 + $0x68] sm:$0xff]
      %v2983 = vld [vmem:[#allocation2 + $0x70] sm:$0xff]
      %v2984 = vld [vmem:[#allocation2 + $0x78] sm:$0xff]
      %v2985 = vld [vmem:[#allocation2 + $0x80] sm:$0xff]
      %v2986 = vld [vmem:[#allocation2 + $0x88] sm:$0xff]
      %v2987 = vld [vmem:[#allocation2 + $0x90] sm:$0xff]
      %v2988 = vld [vmem:[#allocation2 + $0x98] sm:$0xff]
      %v2989 = vld [vmem:[#allocation2 + $0xa0] sm:$0xff]
      %v2990 = vld [vmem:[%s3] sm:$0xf]
      %v2991 = vld [vmem:[%s3 + $0x4] sm:$0xf]
      %v2992 = vld [vmem:[%s3 + $0x8] sm:$0xf]
      %v2993 = vld [vmem:[%s3 + $0xc] sm:$0xf]
      %v2994 = vld [vmem:[%s3 + $0x10] sm:$0xf]
      %v2995 = vld [vmem:[%s3 + $0x14] sm:$0xf]
      %v2996 = vld [vmem:[%s3 + $0x18] sm:$0xf]
      %v2997 = vld [vmem:[%s3 + $0x1c] sm:$0xf]
      %v2998 = vld [vmem:[%s3 + $0x20] sm:$0xf]
      %v2999 = vld [vmem:[%s3 + $0x24] sm:$0xf]
      %v3000 = vld [vmem:[%s3 + $0x28] sm:$0xf]
      %v3001 = vld [vmem:[%s3 + $0x2c] sm:$0xf]
      %v3002 = vld [vmem:[%s3 + $0x30] sm:$0xf]
      %v3003 = vld [vmem:[%s3 + $0x34] sm:$0xf]
      %v3004 = vld [vmem:[%s3 + $0x38] sm:$0xf]
      %v3005 = vld [vmem:[%s3 + $0x3c] sm:$0xf]
      %v3006 = vld [vmem:[%s3 + $0x40] sm:$0xf]
      %v3007 = vld [vmem:[%s3 + $0x44] sm:$0xf]
      %v3008 = vld [vmem:[%s4] sm:$0x1]
      %v3026 = vrot.slane %v2969, 1
      %v3027 = vrot.slane %v2970, 1
      %v3028 = vsel %vm637, %v3026, %v3027
      %v3029 = vrot.slane %v2971, 1
      %v3030 = vsel %vm637, %v3027, %v3029
      %v3031 = vrot.slane %v2972, 1
      %v3032 = vsel %vm637, %v3029, %v3031
      %v3033 = vrot.slane %v2973, 1
      %v3034 = vsel %vm637, %v3031, %v3033
      %v3035 = vrot.slane %v2974, 1
      %v3036 = vsel %vm637, %v3033, %v3035
      %v3037 = vrot.slane %v2975, 1
      %v3038 = vsel %vm637, %v3035, %v3037
      %v3039 = vrot.slane %v2976, 1
      %v3040 = vsel %vm637, %v3037, %v3039
      %v3041 = vrot.slane %v2977, 1
      %v3042 = vsel %vm637, %v3039, %v3041
      %v3043 = vrot.slane %v2978, 1
      %v3044 = vsel %vm637, %v3041, %v3043
      %v3045 = vrot.slane %v2979, 1
      %v3046 = vsel %vm637, %v3043, %v3045
      %v3047 = vrot.slane %v2980, 1
      %v3048 = vsel %vm637, %v3045, %v3047
      %v3049 = vrot.slane %v2981, 1
      %v3050 = vsel %vm637, %v3047, %v3049
      %v3051 = vrot.slane %v2982, 1
      %v3052 = vsel %vm637, %v3049, %v3051
      %v3053 = vrot.slane %v2983, 1
      %v3054 = vsel %vm637, %v3051, %v3053
      %v3055 = vrot.slane %v2984, 1
      %v3056 = vsel %vm637, %v3053, %v3055
      %v3057 = vrot.slane %v2985, 1
      %v3058 = vsel %vm637, %v3055, %v3057
      %3059 = vrot.lane.b32.xlu0 %v3028, 16
      %v3060 = vpop.permute.xlu0 %3059
      %3061 = vrot.lane.b32.xlu0 %v3030, 16
      %v3062 = vpop.permute.xlu0 %3061
      %3063 = vrot.lane.b32.xlu0 %v3032, 16
      %v3064 = vpop.permute.xlu0 %3063
      %3065 = vrot.lane.b32.xlu0 %v3034, 16
      %v3066 = vpop.permute.xlu0 %3065
      %3067 = vrot.lane.b32.xlu0 %v3036, 16
      %v3068 = vpop.permute.xlu0 %3067
      %3069 = vrot.lane.b32.xlu0 %v3038, 16
      %v3070 = vpop.permute.xlu0 %3069
      %3071 = vrot.lane.b32.xlu0 %v3040, 16
      %v3072 = vpop.permute.xlu0 %3071
      %3073 = vrot.lane.b32.xlu0 %v3042, 16
      %v3074 = vpop.permute.xlu0 %3073
      %3075 = vrot.lane.b32.xlu0 %v3044, 16
      %v3076 = vpop.permute.xlu0 %3075
      %3077 = vrot.lane.b32.xlu0 %v3046, 16
      %v3078 = vpop.permute.xlu0 %3077
      %3079 = vrot.lane.b32.xlu0 %v3048, 16
      %v3080 = vpop.permute.xlu0 %3079
      %3081 = vrot.lane.b32.xlu0 %v3050, 16
      %v3082 = vpop.permute.xlu0 %3081
      %3083 = vrot.lane.b32.xlu0 %v3052, 16
      %v3084 = vpop.permute.xlu0 %3083
      %3085 = vrot.lane.b32.xlu0 %v3054, 16
      %v3086 = vpop.permute.xlu0 %3085
      %3087 = vrot.lane.b32.xlu0 %v3056, 16
      %v3088 = vpop.permute.xlu0 %3087
      %3089 = vrot.lane.b32.xlu0 %v3058, 16
      %v3090 = vpop.permute.xlu0 %3089
      %v3107 = vrot.slane %v2969, 2
      %v3108 = vrot.slane %v2970, 2
      %v3109 = vsel %vm879, %v3107, %v3108
      %v3110 = vrot.slane %v2971, 2
      %v3111 = vsel %vm879, %v3108, %v3110
      %v3112 = vrot.slane %v2972, 2
      %v3113 = vsel %vm879, %v3110, %v3112
      %v3114 = vrot.slane %v2973, 2
      %v3115 = vsel %vm879, %v3112, %v3114
      %v3116 = vrot.slane %v2974, 2
      %v3117 = vsel %vm879, %v3114, %v3116
      %v3118 = vrot.slane %v2975, 2
      %v3119 = vsel %vm879, %v3116, %v3118
      %v3120 = vrot.slane %v2976, 2
      %v3121 = vsel %vm879, %v3118, %v3120
      %v3122 = vrot.slane %v2977, 2
      %v3123 = vsel %vm879, %v3120, %v3122
      %v3124 = vrot.slane %v2978, 2
      %v3125 = vsel %vm879, %v3122, %v3124
      %v3126 = vrot.slane %v2979, 2
      %v3127 = vsel %vm879, %v3124, %v3126
      %v3128 = vrot.slane %v2980, 2
      %v3129 = vsel %vm879, %v3126, %v3128
      %v3130 = vrot.slane %v2981, 2
      %v3131 = vsel %vm879, %v3128, %v3130
      %v3132 = vrot.slane %v2982, 2
      %v3133 = vsel %vm879, %v3130, %v3132
      %v3134 = vrot.slane %v2983, 2
      %v3135 = vsel %vm879, %v3132, %v3134
      %v3136 = vrot.slane %v2984, 2
      %v3137 = vsel %vm879, %v3134, %v3136
      %v3138 = vrot.slane %v2985, 2
      %v3139 = vsel %vm879, %v3136, %v3138
      %3140 = vrot.lane.b32.xlu0 %v3109, 32
      %v3141 = vpop.permute.xlu0 %3140
      %3142 = vrot.lane.b32.xlu0 %v3111, 32
      %v3143 = vpop.permute.xlu0 %3142
      %3144 = vrot.lane.b32.xlu0 %v3113, 32
      %v3145 = vpop.permute.xlu0 %3144
      %3146 = vrot.lane.b32.xlu0 %v3115, 32
      %v3147 = vpop.permute.xlu0 %3146
      %3148 = vrot.lane.b32.xlu0 %v3117, 32
      %v3149 = vpop.permute.xlu0 %3148
      %3150 = vrot.lane.b32.xlu0 %v3119, 32
      %v3151 = vpop.permute.xlu0 %3150
      %3152 = vrot.lane.b32.xlu0 %v3121, 32
      %v3153 = vpop.permute.xlu0 %3152
      %3154 = vrot.lane.b32.xlu0 %v3123, 32
      %v3155 = vpop.permute.xlu0 %3154
      %3156 = vrot.lane.b32.xlu0 %v3125, 32
      %v3157 = vpop.permute.xlu0 %3156
      %3158 = vrot.lane.b32.xlu0 %v3127, 32
      %v3159 = vpop.permute.xlu0 %3158
      %3160 = vrot.lane.b32.xlu0 %v3129, 32
      %v3161 = vpop.permute.xlu0 %3160
      %3162 = vrot.lane.b32.xlu0 %v3131, 32
      %v3163 = vpop.permute.xlu0 %3162
      %3164 = vrot.lane.b32.xlu0 %v3133, 32
      %v3165 = vpop.permute.xlu0 %3164
      %3166 = vrot.lane.b32.xlu0 %v3135, 32
      %v3167 = vpop.permute.xlu0 %3166
      %3168 = vrot.lane.b32.xlu0 %v3137, 32
      %v3169 = vpop.permute.xlu0 %3168
      %3170 = vrot.lane.b32.xlu0 %v3139, 32
      %v3171 = vpop.permute.xlu0 %3170
      %3189 = vrot.lane.b32.xlu0 %v2971, 48
      %v3190 = vpop.permute.xlu0 %3189
      %3191 = vrot.lane.b32.xlu0 %v2972, 48
      %v3192 = vpop.permute.xlu0 %3191
      %3193 = vrot.lane.b32.xlu0 %v2973, 48
      %v3194 = vpop.permute.xlu0 %3193
      %3195 = vrot.lane.b32.xlu0 %v2974, 48
      %v3196 = vpop.permute.xlu0 %3195
      %3197 = vrot.lane.b32.xlu0 %v2975, 48
      %v3198 = vpop.permute.xlu0 %3197
      %3199 = vrot.lane.b32.xlu0 %v2976, 48
      %v3200 = vpop.permute.xlu0 %3199
      %3201 = vrot.lane.b32.xlu0 %v2977, 48
      %v3202 = vpop.permute.xlu0 %3201
      %3203 = vrot.lane.b32.xlu0 %v2978, 48
      %v3204 = vpop.permute.xlu0 %3203
      %3205 = vrot.lane.b32.xlu0 %v2979, 48
      %v3206 = vpop.permute.xlu0 %3205
      %3207 = vrot.lane.b32.xlu0 %v2980, 48
      %v3208 = vpop.permute.xlu0 %3207
      %3209 = vrot.lane.b32.xlu0 %v2981, 48
      %v3210 = vpop.permute.xlu0 %3209
      %3211 = vrot.lane.b32.xlu0 %v2982, 48
      %v3212 = vpop.permute.xlu0 %3211
      %3213 = vrot.lane.b32.xlu0 %v2983, 48
      %v3214 = vpop.permute.xlu0 %3213
      %3215 = vrot.lane.b32.xlu0 %v2984, 48
      %v3216 = vpop.permute.xlu0 %3215
      %3217 = vrot.lane.b32.xlu0 %v2985, 48
      %v3218 = vpop.permute.xlu0 %3217
      %3219 = vrot.lane.b32.xlu0 %v2986, 48
      %v3220 = vpop.permute.xlu0 %3219
      %v3238 = vrot.slane %v2986, 1
      %v3239 = vsel %vm637, %v3057, %v3238
      %v3240 = vrot.slane %v2987, 1
      %v3241 = vsel %vm637, %v3238, %v3240
      %3242 = vrot.lane.b32.xlu0 %v3032, 64
      %v3243 = vpop.permute.xlu0 %3242
      %3244 = vrot.lane.b32.xlu0 %v3034, 64
      %v3245 = vpop.permute.xlu0 %3244
      %3246 = vrot.lane.b32.xlu0 %v3036, 64
      %v3247 = vpop.permute.xlu0 %3246
      %3248 = vrot.lane.b32.xlu0 %v3038, 64
      %v3249 = vpop.permute.xlu0 %3248
      %3250 = vrot.lane.b32.xlu0 %v3040, 64
      %v3251 = vpop.permute.xlu0 %3250
      %3252 = vrot.lane.b32.xlu0 %v3042, 64
      %v3253 = vpop.permute.xlu0 %3252
      %3254 = vrot.lane.b32.xlu0 %v3044, 64
      %v3255 = vpop.permute.xlu0 %3254
      %3256 = vrot.lane.b32.xlu0 %v3046, 64
      %v3257 = vpop.permute.xlu0 %3256
      %3258 = vrot.lane.b32.xlu0 %v3048, 64
      %v3259 = vpop.permute.xlu0 %3258
      %3260 = vrot.lane.b32.xlu0 %v3050, 64
      %v3261 = vpop.permute.xlu0 %3260
      %3262 = vrot.lane.b32.xlu0 %v3052, 64
      %v3263 = vpop.permute.xlu0 %3262
      %3264 = vrot.lane.b32.xlu0 %v3054, 64
      %v3265 = vpop.permute.xlu0 %3264
      %3266 = vrot.lane.b32.xlu0 %v3056, 64
      %v3267 = vpop.permute.xlu0 %3266
      %3268 = vrot.lane.b32.xlu0 %v3058, 64
      %v3269 = vpop.permute.xlu0 %3268
      %3270 = vrot.lane.b32.xlu0 %v3239, 64
      %v3271 = vpop.permute.xlu0 %3270
      %3272 = vrot.lane.b32.xlu0 %v3241, 64
      %v3273 = vpop.permute.xlu0 %3272
      %v3290 = vrot.slane %v2986, 2
      %v3291 = vsel %vm879, %v3138, %v3290
      %v3292 = vrot.slane %v2987, 2
      %v3293 = vsel %vm879, %v3290, %v3292
      %3294 = vrot.lane.b32.xlu0 %v3113, 80
      %v3295 = vpop.permute.xlu0 %3294
      %3296 = vrot.lane.b32.xlu0 %v3115, 80
      %v3297 = vpop.permute.xlu0 %3296
      %3298 = vrot.lane.b32.xlu0 %v3117, 80
      %v3299 = vpop.permute.xlu0 %3298
      %3300 = vrot.lane.b32.xlu0 %v3119, 80
      %v3301 = vpop.permute.xlu0 %3300
      %3302 = vrot.lane.b32.xlu0 %v3121, 80
      %v3303 = vpop.permute.xlu0 %3302
      %3304 = vrot.lane.b32.xlu0 %v3123, 80
      %v3305 = vpop.permute.xlu0 %3304
      %3306 = vrot.lane.b32.xlu0 %v3125, 80
      %v3307 = vpop.permute.xlu0 %3306
      %3308 = vrot.lane.b32.xlu0 %v3127, 80
      %v3309 = vpop.permute.xlu0 %3308
      %3310 = vrot.lane.b32.xlu0 %v3129, 80
      %v3311 = vpop.permute.xlu0 %3310
      %3312 = vrot.lane.b32.xlu0 %v3131, 80
      %v3313 = vpop.permute.xlu0 %3312
      %3314 = vrot.lane.b32.xlu0 %v3133, 80
      %v3315 = vpop.permute.xlu0 %3314
      %3316 = vrot.lane.b32.xlu0 %v3135, 80
      %v3317 = vpop.permute.xlu0 %3316
      %3318 = vrot.lane.b32.xlu0 %v3137, 80
      %v3319 = vpop.permute.xlu0 %3318
      %3320 = vrot.lane.b32.xlu0 %v3139, 80
      %v3321 = vpop.permute.xlu0 %3320
      %3322 = vrot.lane.b32.xlu0 %v3291, 80
      %v3323 = vpop.permute.xlu0 %3322
      %3324 = vrot.lane.b32.xlu0 %v3293, 80
      %v3325 = vpop.permute.xlu0 %3324
      %3343 = vrot.lane.b32.xlu0 %v2973, 96
      %v3344 = vpop.permute.xlu0 %3343
      %3345 = vrot.lane.b32.xlu0 %v2974, 96
      %v3346 = vpop.permute.xlu0 %3345
      %3347 = vrot.lane.b32.xlu0 %v2975, 96
      %v3348 = vpop.permute.xlu0 %3347
      %3349 = vrot.lane.b32.xlu0 %v2976, 96
      %v3350 = vpop.permute.xlu0 %3349
      %3351 = vrot.lane.b32.xlu0 %v2977, 96
      %v3352 = vpop.permute.xlu0 %3351
      %3353 = vrot.lane.b32.xlu0 %v2978, 96
      %v3354 = vpop.permute.xlu0 %3353
      %3355 = vrot.lane.b32.xlu0 %v2979, 96
      %v3356 = vpop.permute.xlu0 %3355
      %3357 = vrot.lane.b32.xlu0 %v2980, 96
      %v3358 = vpop.permute.xlu0 %3357
      %3359 = vrot.lane.b32.xlu0 %v2981, 96
      %v3360 = vpop.permute.xlu0 %3359
      %3361 = vrot.lane.b32.xlu0 %v2982, 96
      %v3362 = vpop.permute.xlu0 %3361
      %3363 = vrot.lane.b32.xlu0 %v2983, 96
      %v3364 = vpop.permute.xlu0 %3363
      %3365 = vrot.lane.b32.xlu0 %v2984, 96
      %v3366 = vpop.permute.xlu0 %3365
      %3367 = vrot.lane.b32.xlu0 %v2985, 96
      %v3368 = vpop.permute.xlu0 %3367
      %3369 = vrot.lane.b32.xlu0 %v2986, 96
      %v3370 = vpop.permute.xlu0 %3369
      %3371 = vrot.lane.b32.xlu0 %v2987, 96
      %v3372 = vpop.permute.xlu0 %3371
      %3373 = vrot.lane.b32.xlu0 %v2988, 96
      %v3374 = vpop.permute.xlu0 %3373
      %v3392 = vrot.slane %v2988, 1
      %v3393 = vsel %vm637, %v3240, %v3392
      %v3394 = vrot.slane %v2989, 1
      %v3395 = vsel %vm637, %v3392, %v3394
      %3396 = vrot.lane.b32.xlu0 %v3036, 112
      %v3397 = vpop.permute.xlu0 %3396
      %3398 = vrot.lane.b32.xlu0 %v3038, 112
      %v3399 = vpop.permute.xlu0 %3398
      %3400 = vrot.lane.b32.xlu0 %v3040, 112
      %v3401 = vpop.permute.xlu0 %3400
      %3402 = vrot.lane.b32.xlu0 %v3042, 112
      %v3403 = vpop.permute.xlu0 %3402
      %3404 = vrot.lane.b32.xlu0 %v3044, 112
      %v3405 = vpop.permute.xlu0 %3404
      %3406 = vrot.lane.b32.xlu0 %v3046, 112
      %v3407 = vpop.permute.xlu0 %3406
      %3408 = vrot.lane.b32.xlu0 %v3048, 112
      %v3409 = vpop.permute.xlu0 %3408
      %3410 = vrot.lane.b32.xlu0 %v3050, 112
      %v3411 = vpop.permute.xlu0 %3410
      %3412 = vrot.lane.b32.xlu0 %v3052, 112
      %v3413 = vpop.permute.xlu0 %3412
      %3414 = vrot.lane.b32.xlu0 %v3054, 112
      %v3415 = vpop.permute.xlu0 %3414
      %3416 = vrot.lane.b32.xlu0 %v3056, 112
      %v3417 = vpop.permute.xlu0 %3416
      %3418 = vrot.lane.b32.xlu0 %v3058, 112
      %v3419 = vpop.permute.xlu0 %3418
      %3420 = vrot.lane.b32.xlu0 %v3239, 112
      %v3421 = vpop.permute.xlu0 %3420
      %3422 = vrot.lane.b32.xlu0 %v3241, 112
      %v3423 = vpop.permute.xlu0 %3422
      %3424 = vrot.lane.b32.xlu0 %v3393, 112
      %v3425 = vpop.permute.xlu0 %3424
      %3426 = vrot.lane.b32.xlu0 %v3395, 112
      %v3427 = vpop.permute.xlu0 %3426
      %v3444 = vrot.slane %v2988, 2
      %v3445 = vsel %vm879, %v3292, %v3444
      %v3446 = vrot.slane %v2989, 2
      %v3447 = vsel %vm879, %v3444, %v3446
      %v3464 = vsel %vm2064, %v2969, %v3060
      %v3465 = vsel %vm2064, %v2970, %v3062
      %v3466 = vsel %vm2064, %v2971, %v3064
      %v3467 = vsel %vm2064, %v2972, %v3066
      %v3468 = vsel %vm2064, %v2973, %v3068
      %v3469 = vsel %vm2064, %v2974, %v3070
      %v3470 = vsel %vm2064, %v2975, %v3072
      %v3471 = vsel %vm2064, %v2976, %v3074
      %v3472 = vsel %vm2064, %v2977, %v3076
      %v3473 = vsel %vm2064, %v2978, %v3078
      %v3474 = vsel %vm2064, %v2979, %v3080
      %v3475 = vsel %vm2064, %v2980, %v3082
      %v3476 = vsel %vm2064, %v2981, %v3084
      %v3477 = vsel %vm2064, %v2982, %v3086
      %v3478 = vsel %vm2064, %v2983, %v3088
      %v3479 = vsel %vm2064, %v2984, %v3090
      %v3480 = vsel %vm2162, %v3464, %v3141
      %v3481 = vsel %vm2162, %v3465, %v3143
      %v3482 = vsel %vm2162, %v3466, %v3145
      %v3483 = vsel %vm2162, %v3467, %v3147
      %v3484 = vsel %vm2162, %v3468, %v3149
      %v3485 = vsel %vm2162, %v3469, %v3151
      %v3486 = vsel %vm2162, %v3470, %v3153
      %v3487 = vsel %vm2162, %v3471, %v3155
      %v3488 = vsel %vm2162, %v3472, %v3157
      %v3489 = vsel %vm2162, %v3473, %v3159
      %v3490 = vsel %vm2162, %v3474, %v3161
      %v3491 = vsel %vm2162, %v3475, %v3163
      %v3492 = vsel %vm2162, %v3476, %v3165
      %v3493 = vsel %vm2162, %v3477, %v3167
      %v3494 = vsel %vm2162, %v3478, %v3169
      %v3495 = vsel %vm2162, %v3479, %v3171
      %v3496 = vsel %vm2260, %v3480, %v3190
      %v3497 = vsel %vm2260, %v3481, %v3192
      %v3498 = vsel %vm2260, %v3482, %v3194
      %v3499 = vsel %vm2260, %v3483, %v3196
      %v3500 = vsel %vm2260, %v3484, %v3198
      %v3501 = vsel %vm2260, %v3485, %v3200
      %v3502 = vsel %vm2260, %v3486, %v3202
      %v3503 = vsel %vm2260, %v3487, %v3204
      %v3504 = vsel %vm2260, %v3488, %v3206
      %v3505 = vsel %vm2260, %v3489, %v3208
      %v3506 = vsel %vm2260, %v3490, %v3210
      %v3507 = vsel %vm2260, %v3491, %v3212
      %v3508 = vsel %vm2260, %v3492, %v3214
      %v3509 = vsel %vm2260, %v3493, %v3216
      %v3510 = vsel %vm2260, %v3494, %v3218
      %v3511 = vsel %vm2260, %v3495, %v3220
      %v3512 = vsel %vm2358, %v3496, %v3243
      %v3513 = vsel %vm2358, %v3497, %v3245
      %v3514 = vsel %vm2358, %v3498, %v3247
      %v3515 = vsel %vm2358, %v3499, %v3249
      %v3516 = vsel %vm2358, %v3500, %v3251
      %v3517 = vsel %vm2358, %v3501, %v3253
      %v3518 = vsel %vm2358, %v3502, %v3255
      %v3519 = vsel %vm2358, %v3503, %v3257
      %v3520 = vsel %vm2358, %v3504, %v3259
      %v3521 = vsel %vm2358, %v3505, %v3261
      %v3522 = vsel %vm2358, %v3506, %v3263
      %v3523 = vsel %vm2358, %v3507, %v3265
      %v3524 = vsel %vm2358, %v3508, %v3267
      %v3525 = vsel %vm2358, %v3509, %v3269
      %v3526 = vsel %vm2358, %v3510, %v3271
      %v3527 = vsel %vm2358, %v3511, %v3273
      %vm3528 = vcmask 654336
      %v3529 = vsel %vm3528, %v3512, %v3295
      %v3530 = vsel %vm3528, %v3513, %v3297
      %v3531 = vsel %vm3528, %v3514, %v3299
      %v3532 = vsel %vm3528, %v3515, %v3301
      %v3533 = vsel %vm3528, %v3516, %v3303
      %v3534 = vsel %vm3528, %v3517, %v3305
      %v3535 = vsel %vm3528, %v3518, %v3307
      %v3536 = vsel %vm3528, %v3519, %v3309
      %v3537 = vsel %vm3528, %v3520, %v3311
      %v3538 = vsel %vm3528, %v3521, %v3313
      %v3539 = vsel %vm3528, %v3522, %v3315
      %v3540 = vsel %vm3528, %v3523, %v3317
      %v3541 = vsel %vm3528, %v3524, %v3319
      %v3542 = vsel %vm3528, %v3525, %v3321
      %v3543 = vsel %vm3528, %v3526, %v3323
      %v3544 = vsel %vm3528, %v3527, %v3325
      %vm3545 = vcmask 785408
      %v3546 = vsel %vm3545, %v3529, %v3344
      %v3547 = vsel %vm3545, %v3530, %v3346
      %v3548 = vsel %vm3545, %v3531, %v3348
      %v3549 = vsel %vm3545, %v3532, %v3350
      %v3550 = vsel %vm3545, %v3533, %v3352
      %v3551 = vsel %vm3545, %v3534, %v3354
      %v3552 = vsel %vm3545, %v3535, %v3356
      %v3553 = vsel %vm3545, %v3536, %v3358
      %v3554 = vsel %vm3545, %v3537, %v3360
      %v3555 = vsel %vm3545, %v3538, %v3362
      %v3556 = vsel %vm3545, %v3539, %v3364
      %v3557 = vsel %vm3545, %v3540, %v3366
      %v3558 = vsel %vm3545, %v3541, %v3368
      %v3559 = vsel %vm3545, %v3542, %v3370
      %v3560 = vsel %vm3545, %v3543, %v3372
      %v3561 = vsel %vm3545, %v3544, %v3374
      %vm3562 = vcmask 916480
      %v3563 = vsel %vm3562, %v3546, %v3397
      %v3564 = vsel %vm3562, %v3547, %v3399
      %v3565 = vsel %vm3562, %v3548, %v3401
      %v3566 = vsel %vm3562, %v3549, %v3403
      %v3567 = vsel %vm3562, %v3550, %v3405
      %v3568 = vsel %vm3562, %v3551, %v3407
      %v3569 = vsel %vm3562, %v3552, %v3409
      %v3570 = vsel %vm3562, %v3553, %v3411
      %v3571 = vsel %vm3562, %v3554, %v3413
      %v3572 = vsel %vm3562, %v3555, %v3415
      %v3573 = vsel %vm3562, %v3556, %v3417
      %v3574 = vsel %vm3562, %v3557, %v3419
      %v3575 = vsel %vm3562, %v3558, %v3421
      %v3576 = vsel %vm3562, %v3559, %v3423
      %v3577 = vsel %vm3562, %v3560, %v3425
      %v3578 = vsel %vm3562, %v3561, %v3427
      %v3579 = vpack.c.bf16 %v3564, %v3563
      %v3580 = vpack.c.bf16 %v3119, %v3117
      %v3581 = vpack.c.bf16 %v3566, %v3565
      %v3582 = vpack.c.bf16 %v3123, %v3121
      %v3583 = vpack.c.bf16 %v3568, %v3567
      %v3584 = vpack.c.bf16 %v3127, %v3125
      %v3585 = vpack.c.bf16 %v3570, %v3569
      %v3586 = vpack.c.bf16 %v3131, %v3129
      %v3587 = vpack.c.bf16 %v3572, %v3571
      %v3588 = vpack.c.bf16 %v3135, %v3133
      %v3589 = vpack.c.bf16 %v3574, %v3573
      %v3590 = vpack.c.bf16 %v3139, %v3137
      %v3591 = vpack.c.bf16 %v3576, %v3575
      %v3592 = vpack.c.bf16 %v3293, %v3291
      %v3593 = vpack.c.bf16 %v3578, %v3577
      %v3594 = vpack.c.bf16 %v3447, %v3445
      %v3596 = vperm.slane %v3008, 0
      %v3616 = vunpack.c.l.b16 %v2990
      %v3617 = vunpack.c.l.b16 %v2991
      %v3618 = vunpack.c.l.b16 %v2992
      %v3619 = vunpack.c.l.b16 %v2993
      %v3620 = vunpack.c.l.b16 %v2994
      %v3621 = vunpack.c.l.b16 %v2995
      %v3622 = vunpack.c.l.b16 %v2996
      %v3623 = vunpack.c.l.b16 %v2997
      %v3624 = vunpack.c.l.b16 %v2998
      %v3625 = vunpack.c.l.b16 %v2999
      %v3626 = vunpack.c.l.b16 %v3000
      %v3627 = vunpack.c.l.b16 %v3001
      %v3628 = vunpack.c.l.b16 %v3002
      %v3629 = vunpack.c.l.b16 %v3003
      %v3630 = vunpack.c.l.b16 %v3004
      %v3631 = vunpack.c.l.b16 %v3005
      %v3632 = vunpack.c.l.b16 %v3006
      %v3633 = vunpack.c.l.b16 %v3007
      %v3634 = vpack.c.b16 %v3617, %v3616
      %v3635 = vpack.c.b16 %v3619, %v3618
      %v3636 = vpack.c.b16 %v3621, %v3620
      %v3637 = vpack.c.b16 %v3623, %v3622
      %v3638 = vpack.c.b16 %v3625, %v3624
      %v3639 = vpack.c.b16 %v3627, %v3626
      %v3640 = vpack.c.b16 %v3629, %v3628
      %v3641 = vpack.c.b16 %v3631, %v3630
      %v3642 = vpack.c.b16 %v3633, %v3632
      %v3653 = vsel %vm2064, %v3580, 0
      %v3656 = vsel %vm2064, %v3582, 0
      %v3659 = vsel %vm2064, %v3584, 0
      %v3662 = vsel %vm2064, %v3586, 0
      %v3665 = vsel %vm2064, %v3588, 0
      %v3668 = vsel %vm2064, %v3590, 0
      %v3671 = vsel %vm2064, %v3592, 0
      %v3674 = vsel %vm2064, %v3594, 0
      %3676 = vmatpush.bf16.msra.mxu0 %v3641
      %3677 = vmatpush.bf16.msra.mxu0 %v3640
      %3678 = vmatpush.bf16.msra.mxu0 %v3639
      %3679 = vmatpush.bf16.msra.mxu0 %v3638
      %3680 = vmatpush.bf16.msra.mxu0 %v3637
      %3681 = vmatpush.bf16.msra.mxu0 %v3636
      %3682 = vmatpush.bf16.msra.mxu0 %v3635
      %3683 = vmatpush.bf16.msra.mxu0 %v3634
      %3684 = vmatmul.bf16.gmra.mxu0 %v3579
      %v3685 = vpop.f32.mrf.mxu0
      %v3686 = vadd.f32 %v3596, %v3685
      %v3687 = vpop.f32.mrf.mxu0
      %v3688 = vadd.f32 %v3596, %v3687
      %3689 = vmatmul.bf16.gmra.mxu0 %v3581
      %v3690 = vpop.f32.mrf.mxu0
      %v3691 = vadd.f32 %v3596, %v3690
      %v3692 = vpop.f32.mrf.mxu0
      %v3693 = vadd.f32 %v3596, %v3692
      %3694 = vmatmul.bf16.gmra.mxu0 %v3583
      %v3695 = vpop.f32.mrf.mxu0
      %v3696 = vadd.f32 %v3596, %v3695
      %v3697 = vpop.f32.mrf.mxu0
      %v3698 = vadd.f32 %v3596, %v3697
      %3699 = vmatmul.bf16.gmra.mxu0 %v3585
      %v3700 = vpop.f32.mrf.mxu0
      %v3701 = vadd.f32 %v3596, %v3700
      %v3702 = vpop.f32.mrf.mxu0
      %v3703 = vadd.f32 %v3596, %v3702
      %3704 = vmatmul.bf16.gmra.mxu0 %v3587
      %v3705 = vpop.f32.mrf.mxu0
      %v3706 = vadd.f32 %v3596, %v3705
      %v3707 = vpop.f32.mrf.mxu0
      %v3708 = vadd.f32 %v3596, %v3707
      %3709 = vmatmul.bf16.gmra.mxu0 %v3589
      %v3710 = vpop.f32.mrf.mxu0
      %v3711 = vadd.f32 %v3596, %v3710
      %v3712 = vpop.f32.mrf.mxu0
      %v3713 = vadd.f32 %v3596, %v3712
      %3714 = vmatmul.bf16.gmra.mxu0 %v3591
      %v3715 = vpop.f32.mrf.mxu0
      %v3716 = vadd.f32 %v3596, %v3715
      %v3717 = vpop.f32.mrf.mxu0
      %v3718 = vadd.f32 %v3596, %v3717
      %3719 = vmatmul.bf16.gmra.mxu0 %v3593
      %v3720 = vpop.f32.mrf.mxu0
      %v3721 = vadd.f32 %v3596, %v3720
      %v3722 = vpop.f32.mrf.mxu0
      %v3723 = vadd.f32 %v3596, %v3722
      %3724 = vdwg.mxu0
      %3725 = vmatpush.bf16.msra.mxu0 0
      %3726 = vmatpush.bf16.msra.mxu0 0
      %3727 = vmatpush.bf16.msra.mxu0 0
      %3728 = vmatpush.bf16.msra.mxu0 0
      %3729 = vmatpush.bf16.msra.mxu0 0
      %3730 = vmatpush.bf16.msra.mxu0 0
      %3731 = vmatpush.bf16.msra.mxu0 0
      %3732 = vmatpush.bf16.msra.mxu0 %v3642
      %3733 = vmatmul.bf16.gmra.mxu0 %v3653
      %v3734 = vpop.f32.mrf.mxu0
      %v3735 = vadd.f32 %v3686, %v3734
      %v3736 = vpop.f32.mrf.mxu0
      %v3737 = vadd.f32 %v3688, %v3736
      %3738 = vmatmul.bf16.gmra.mxu0 %v3656
      %v3739 = vpop.f32.mrf.mxu0
      %v3740 = vadd.f32 %v3691, %v3739
      %v3741 = vpop.f32.mrf.mxu0
      %v3742 = vadd.f32 %v3693, %v3741
      %3743 = vmatmul.bf16.gmra.mxu0 %v3659
      %v3744 = vpop.f32.mrf.mxu0
      %v3745 = vadd.f32 %v3696, %v3744
      %v3746 = vpop.f32.mrf.mxu0
      %v3747 = vadd.f32 %v3698, %v3746
      %3748 = vmatmul.bf16.gmra.mxu0 %v3662
      %v3749 = vpop.f32.mrf.mxu0
      %v3750 = vadd.f32 %v3701, %v3749
      %v3751 = vpop.f32.mrf.mxu0
      %v3752 = vadd.f32 %v3703, %v3751
      %3753 = vmatmul.bf16.gmra.mxu0 %v3665
      %v3754 = vpop.f32.mrf.mxu0
      %v3755 = vadd.f32 %v3706, %v3754
      %v3756 = vpop.f32.mrf.mxu0
      %v3757 = vadd.f32 %v3708, %v3756
      %3758 = vmatmul.bf16.gmra.mxu0 %v3668
      %v3759 = vpop.f32.mrf.mxu0
      %v3760 = vadd.f32 %v3711, %v3759
      %v3761 = vpop.f32.mrf.mxu0
      %v3762 = vadd.f32 %v3713, %v3761
      %3763 = vmatmul.bf16.gmra.mxu0 %v3671
      %v3764 = vpop.f32.mrf.mxu0
      %v3765 = vadd.f32 %v3716, %v3764
      %v3766 = vpop.f32.mrf.mxu0
      %v3767 = vadd.f32 %v3718, %v3766
      %3768 = vmatmul.bf16.gmra.mxu0 %v3674
      %v3769 = vpop.f32.mrf.mxu0
      %v3770 = vadd.f32 %v3721, %v3769
      %v3771 = vpop.f32.mrf.mxu0
      %v3772 = vadd.f32 %v3723, %v3771
      %3773 = vdwg.mxu0
      %v3774 = vmax.f32 %v3735, 0.0
      %v3775 = vmax.f32 %v3737, 0.0
      %v3776 = vmax.f32 %v3740, 0.0
      %v3777 = vmax.f32 %v3742, 0.0
      %v3778 = vmax.f32 %v3745, 0.0
      %v3779 = vmax.f32 %v3747, 0.0
      %v3780 = vmax.f32 %v3750, 0.0
      %v3781 = vmax.f32 %v3752, 0.0
      %v3782 = vmax.f32 %v3755, 0.0
      %v3783 = vmax.f32 %v3757, 0.0
      %v3784 = vmax.f32 %v3760, 0.0
      %v3785 = vmax.f32 %v3762, 0.0
      %v3786 = vmax.f32 %v3765, 0.0
      %v3787 = vmax.f32 %v3767, 0.0
      %v3788 = vmax.f32 %v3770, 0.0
      %v3789 = vmax.f32 %v3772, 0.0
      %3790 = vst.msk [vmem:[#allocation3] sm:$0xff] %vm2162, 0.0
      %3791 = vst.msk [vmem:[#allocation3 + $0x8] sm:$0xff] %vm2162, 0.0
      %3792 = vst.msk [vmem:[#allocation3 + $0x10] sm:$0xff] %vm2162, 0.0
      %3793 = vst.msk [vmem:[#allocation3 + $0x18] sm:$0xff] %vm2162, 0.0
      %3794 = vst.msk [vmem:[#allocation3 + $0x20] sm:$0xff] %vm2162, 0.0
      %3795 = vst.msk [vmem:[#allocation3 + $0x28] sm:$0xff] %vm2162, 0.0
      %3796 = vst.msk [vmem:[#allocation3 + $0x30] sm:$0xff] %vm2162, 0.0
      %v3797 = vld [vmem:[%s8] sm:$0xff]
      %v3798 = vmax.f32 %v3774, %v3776
      %v3799 = vmax.f32 %v3775, %v3777
      %v3801 = vsel %vm2064, %v3797, 0
      %3803 = vmatpush.msra.mxu0 0.0
      %3804 = vmatpush.msra.mxu0 0.0
      %3805 = vmatpush.msra.mxu0 0.0
      %3806 = vmatpush.msra.mxu0 0.0
      %3807 = vmatpush.msra.mxu0 0.0
      %3808 = vmatpush.msra.mxu0 0.0
      %3809 = vmatpush.msra.mxu0 0.0
      %3810 = vmatpush.msra.mxu0 0.0
      %3811 = vmatpush.msra.mxu0 0.0
      %3812 = vmatpush.msra.mxu0 0.0
      %3813 = vmatpush.msra.mxu0 0.0
      %3814 = vmatpush.msra.mxu0 0.0
      %3815 = vmatpush.msra.mxu0 0.0
      %3816 = vmatpush.msra.mxu0 0.0
      %3817 = vmatpush.msra.mxu0 %v3799
      %3818 = vmatpush.msra.mxu0 %v3798
      %3819 = vmatmul.f32.gmra.mxu0 %v3801
      %v3820 = vpop.f32.mrf.mxu0
      %v3821 = vadd.f32 0.0, %v3820
      %3822 = vdwg.mxu0
      %v3824 = vrot.slane %v3821, 4
      %v3826 = vmax.f32 %v3821, %v3824
      %vm3827 = vcmask 257024
      %3828 = vst.msk [vmem:[#allocation3 + $0x9] sm:$0xf] %vm3827, %v3826
      %v3829 = vmax.f32 %v3778, %v3780
      %v3830 = vmax.f32 %v3779, %v3781
      %3831 = vmatpush.msra.mxu0 0.0
      %3832 = vmatpush.msra.mxu0 0.0
      %3833 = vmatpush.msra.mxu0 0.0
      %3834 = vmatpush.msra.mxu0 0.0
      %3835 = vmatpush.msra.mxu0 0.0
      %3836 = vmatpush.msra.mxu0 0.0
      %3837 = vmatpush.msra.mxu0 0.0
      %3838 = vmatpush.msra.mxu0 0.0
      %3839 = vmatpush.msra.mxu0 0.0
      %3840 = vmatpush.msra.mxu0 0.0
      %3841 = vmatpush.msra.mxu0 0.0
      %3842 = vmatpush.msra.mxu0 0.0
      %3843 = vmatpush.msra.mxu0 0.0
      %3844 = vmatpush.msra.mxu0 0.0
      %3845 = vmatpush.msra.mxu0 %v3830
      %3846 = vmatpush.msra.mxu0 %v3829
      %3847 = vmatmul.f32.gmra.mxu0 %v3801
      %v3848 = vpop.f32.mrf.mxu0
      %v3849 = vadd.f32 0.0, %v3848
      %3850 = vdwg.mxu0
      %v3852 = vrot.slane %v3849, 4
      %v3854 = vmax.f32 %v3849, %v3852
      %3855 = vst.msk [vmem:[#allocation3 + $0x11] sm:$0xf] %vm3827, %v3854
      %v3856 = vmax.f32 %v3782, %v3784
      %v3857 = vmax.f32 %v3783, %v3785
      %3858 = vmatpush.msra.mxu0 0.0
      %3859 = vmatpush.msra.mxu0 0.0
      %3860 = vmatpush.msra.mxu0 0.0
      %3861 = vmatpush.msra.mxu0 0.0
      %3862 = vmatpush.msra.mxu0 0.0
      %3863 = vmatpush.msra.mxu0 0.0
      %3864 = vmatpush.msra.mxu0 0.0
      %3865 = vmatpush.msra.mxu0 0.0
      %3866 = vmatpush.msra.mxu0 0.0
      %3867 = vmatpush.msra.mxu0 0.0
      %3868 = vmatpush.msra.mxu0 0.0
      %3869 = vmatpush.msra.mxu0 0.0
      %3870 = vmatpush.msra.mxu0 0.0
      %3871 = vmatpush.msra.mxu0 0.0
      %3872 = vmatpush.msra.mxu0 %v3857
      %3873 = vmatpush.msra.mxu0 %v3856
      %3874 = vmatmul.f32.gmra.mxu0 %v3801
      %v3875 = vpop.f32.mrf.mxu0
      %v3876 = vadd.f32 0.0, %v3875
      %3877 = vdwg.mxu0
      %v3879 = vrot.slane %v3876, 4
      %v3881 = vmax.f32 %v3876, %v3879
      %3882 = vst.msk [vmem:[#allocation3 + $0x19] sm:$0xf] %vm3827, %v3881
      %v3883 = vmax.f32 %v3786, %v3788
      %v3884 = vmax.f32 %v3787, %v3789
      %3885 = vmatpush.msra.mxu0 0.0
      %3886 = vmatpush.msra.mxu0 0.0
      %3887 = vmatpush.msra.mxu0 0.0
      %3888 = vmatpush.msra.mxu0 0.0
      %3889 = vmatpush.msra.mxu0 0.0
      %3890 = vmatpush.msra.mxu0 0.0
      %3891 = vmatpush.msra.mxu0 0.0
      %3892 = vmatpush.msra.mxu0 0.0
      %3893 = vmatpush.msra.mxu0 0.0
      %3894 = vmatpush.msra.mxu0 0.0
      %3895 = vmatpush.msra.mxu0 0.0
      %3896 = vmatpush.msra.mxu0 0.0
      %3897 = vmatpush.msra.mxu0 0.0
      %3898 = vmatpush.msra.mxu0 0.0
      %3899 = vmatpush.msra.mxu0 %v3884
      %3900 = vmatpush.msra.mxu0 %v3883
      %3901 = vmatmul.f32.gmra.mxu0 %v3801
      %v3902 = vpop.f32.mrf.mxu0
      %v3903 = vadd.f32 0.0, %v3902
      %3904 = vdwg.mxu0
      %v3906 = vrot.slane %v3903, 4
      %v3908 = vmax.f32 %v3903, %v3906
      %3909 = vst.msk [vmem:[#allocation3 + $0x21] sm:$0xf] %vm3827, %v3908
      %v3910 = vld [vmem:[#allocation3] sm:$0xff]
      %v3911 = vld [vmem:[#allocation3 + $0x8] sm:$0xff]
      %v3912 = vld [vmem:[#allocation3 + $0x10] sm:$0xff]
      %v3913 = vld [vmem:[#allocation3 + $0x18] sm:$0xff]
      %v3914 = vld [vmem:[#allocation3 + $0x20] sm:$0xff]
      %v3915 = vld [vmem:[#allocation3 + $0x28] sm:$0xff]
      %v3916 = vld [vmem:[#allocation3 + $0x30] sm:$0xff]
      %v3917 = vld [vmem:[%s5] sm:$0xf]
      %v3918 = vld [vmem:[%s5 + $0x4] sm:$0xf]
      %v3919 = vld [vmem:[%s5 + $0x8] sm:$0xf]
      %v3920 = vld [vmem:[%s5 + $0xc] sm:$0xf]
      %v3921 = vld [vmem:[%s5 + $0x10] sm:$0xf]
      %v3922 = vld [vmem:[%s5 + $0x14] sm:$0xf]
      %v3923 = vld [vmem:[%s5 + $0x18] sm:$0xf]
      %v3924 = vld [vmem:[%s5 + $0x1c] sm:$0xf]
      %v3925 = vld [vmem:[%s5 + $0x20] sm:$0xf]
      %v3926 = vld [vmem:[%s5 + $0x24] sm:$0xf]
      %v3927 = vld [vmem:[%s5 + $0x28] sm:$0xf]
      %v3928 = vld [vmem:[%s5 + $0x2c] sm:$0xf]
      %v3929 = vld [vmem:[%s5 + $0x30] sm:$0xf]
      %v3930 = vld [vmem:[%s5 + $0x34] sm:$0xf]
      %v3931 = vld [vmem:[%s5 + $0x38] sm:$0xf]
      %v3932 = vld [vmem:[%s5 + $0x3c] sm:$0xf]
      %v3933 = vld [vmem:[%s5 + $0x40] sm:$0xf]
      %v3934 = vld [vmem:[%s5 + $0x44] sm:$0xf]
      %v3935 = vld [vmem:[%s5 + $0x48] sm:$0xf]
      %v3936 = vld [vmem:[%s5 + $0x4c] sm:$0xf]
      %v3937 = vld [vmem:[%s5 + $0x50] sm:$0xf]
      %v3938 = vld [vmem:[%s5 + $0x54] sm:$0xf]
      %v3939 = vld [vmem:[%s5 + $0x58] sm:$0xf]
      %v3940 = vld [vmem:[%s5 + $0x5c] sm:$0xf]
      %v3941 = vld [vmem:[%s5 + $0x60] sm:$0xf]
      %v3942 = vld [vmem:[%s5 + $0x64] sm:$0xf]
      %v3943 = vld [vmem:[%s5 + $0x68] sm:$0xf]
      %v3944 = vld [vmem:[%s5 + $0x6c] sm:$0xf]
      %v3945 = vld [vmem:[%s5 + $0x70] sm:$0xf]
      %v3946 = vld [vmem:[%s5 + $0x74] sm:$0xf]
      %v3947 = vld [vmem:[%s5 + $0x78] sm:$0xf]
      %v3948 = vld [vmem:[%s5 + $0x7c] sm:$0xf]
      %v3949 = vld [vmem:[%s5 + $0x80] sm:$0xf]
      %v3950 = vld [vmem:[%s5 + $0x84] sm:$0xf]
      %v3951 = vld [vmem:[%s5 + $0x88] sm:$0xf]
      %v3952 = vld [vmem:[%s5 + $0x8c] sm:$0xf]
      %v3953 = vld [vmem:[%s6] sm:$0x1]
      %v3959 = vrot.slane %v3910, 1
      %v3960 = vrot.slane %v3911, 1
      %v3961 = vsel %vm637, %v3959, %v3960
      %v3962 = vrot.slane %v3912, 1
      %v3963 = vsel %vm637, %v3960, %v3962
      %v3964 = vrot.slane %v3913, 1
      %v3965 = vsel %vm637, %v3962, %v3964
      %v3966 = vrot.slane %v3914, 1
      %v3967 = vsel %vm637, %v3964, %v3966
      %3968 = vrot.lane.b32.xlu0 %v3961, 32
      %v3969 = vpop.permute.xlu0 %3968
      %3970 = vrot.lane.b32.xlu0 %v3963, 32
      %v3971 = vpop.permute.xlu0 %3970
      %3972 = vrot.lane.b32.xlu0 %v3965, 32
      %v3973 = vpop.permute.xlu0 %3972
      %3974 = vrot.lane.b32.xlu0 %v3967, 32
      %v3975 = vpop.permute.xlu0 %3974
      %v3980 = vrot.slane %v3910, 2
      %v3981 = vrot.slane %v3911, 2
      %v3982 = vsel %vm879, %v3980, %v3981
      %v3983 = vrot.slane %v3912, 2
      %v3984 = vsel %vm879, %v3981, %v3983
      %v3985 = vrot.slane %v3913, 2
      %v3986 = vsel %vm879, %v3983, %v3985
      %v3987 = vrot.slane %v3914, 2
      %v3988 = vsel %vm879, %v3985, %v3987
      %3989 = vrot.lane.b32.xlu0 %v3982, 64
      %v3990 = vpop.permute.xlu0 %3989
      %3991 = vrot.lane.b32.xlu0 %v3984, 64
      %v3992 = vpop.permute.xlu0 %3991
      %3993 = vrot.lane.b32.xlu0 %v3986, 64
      %v3994 = vpop.permute.xlu0 %3993
      %3995 = vrot.lane.b32.xlu0 %v3988, 64
      %v3996 = vpop.permute.xlu0 %3995
      %4001 = vrot.lane.b32.xlu0 %v3911, 96
      %v4002 = vpop.permute.xlu0 %4001
      %4003 = vrot.lane.b32.xlu0 %v3912, 96
      %v4004 = vpop.permute.xlu0 %4003
      %4005 = vrot.lane.b32.xlu0 %v3913, 96
      %v4006 = vpop.permute.xlu0 %4005
      %4007 = vrot.lane.b32.xlu0 %v3914, 96
      %v4008 = vpop.permute.xlu0 %4007
      %v4014 = vrot.slane %v3915, 1
      %v4015 = vsel %vm637, %v3966, %v4014
      %v4020 = vrot.slane %v3915, 2
      %v4021 = vsel %vm879, %v3987, %v4020
      %4022 = vrot.lane.b32.xlu0 %v3984, 32
      %v4023 = vpop.permute.xlu0 %4022
      %4024 = vrot.lane.b32.xlu0 %v3986, 32
      %v4025 = vpop.permute.xlu0 %4024
      %4026 = vrot.lane.b32.xlu0 %v3988, 32
      %v4027 = vpop.permute.xlu0 %4026
      %4028 = vrot.lane.b32.xlu0 %v4021, 32
      %v4029 = vpop.permute.xlu0 %4028
      %4034 = vrot.lane.b32.xlu0 %v3912, 64
      %v4035 = vpop.permute.xlu0 %4034
      %4036 = vrot.lane.b32.xlu0 %v3913, 64
      %v4037 = vpop.permute.xlu0 %4036
      %4038 = vrot.lane.b32.xlu0 %v3914, 64
      %v4039 = vpop.permute.xlu0 %4038
      %4040 = vrot.lane.b32.xlu0 %v3915, 64
      %v4041 = vpop.permute.xlu0 %4040
      %v4047 = vrot.slane %v3916, 1
      %v4048 = vsel %vm637, %v4014, %v4047
      %4049 = vrot.lane.b32.xlu0 %v3965, 96
      %v4050 = vpop.permute.xlu0 %4049
      %4051 = vrot.lane.b32.xlu0 %v3967, 96
      %v4052 = vpop.permute.xlu0 %4051
      %4053 = vrot.lane.b32.xlu0 %v4015, 96
      %v4054 = vpop.permute.xlu0 %4053
      %4055 = vrot.lane.b32.xlu0 %v4048, 96
      %v4056 = vpop.permute.xlu0 %4055
      %v4061 = vrot.slane %v3916, 2
      %v4062 = vsel %vm879, %v4020, %v4061
      %v4067 = vsel %vm2162, %v3910, %v3969
      %v4068 = vsel %vm2162, %v3911, %v3971
      %v4069 = vsel %vm2162, %v3912, %v3973
      %v4070 = vsel %vm2162, %v3913, %v3975
      %v4071 = vsel %vm2358, %v4067, %v3990
      %v4072 = vsel %vm2358, %v4068, %v3992
      %v4073 = vsel %vm2358, %v4069, %v3994
      %v4074 = vsel %vm2358, %v4070, %v3996
      %v4075 = vsel %vm3545, %v4071, %v4002
      %v4076 = vsel %vm3545, %v4072, %v4004
      %v4077 = vsel %vm3545, %v4073, %v4006
      %v4078 = vsel %vm3545, %v4074, %v4008
      %v4079 = vsel %vm2162, %v3963, %v4023
      %v4080 = vsel %vm2162, %v3965, %v4025
      %v4081 = vsel %vm2162, %v3967, %v4027
      %v4082 = vsel %vm2162, %v4015, %v4029
      %v4083 = vsel %vm2358, %v4079, %v4035
      %v4084 = vsel %vm2358, %v4080, %v4037
      %v4085 = vsel %vm2358, %v4081, %v4039
      %v4086 = vsel %vm2358, %v4082, %v4041
      %v4087 = vsel %vm3545, %v4083, %v4050
      %v4088 = vsel %vm3545, %v4084, %v4052
      %v4089 = vsel %vm3545, %v4085, %v4054
      %v4090 = vsel %vm3545, %v4086, %v4056
      %v4091 = vpack.c.bf16 %v4076, %v4075
      %v4092 = vpack.c.bf16 %v4088, %v4087
      %v4093 = vpack.c.bf16 %v3988, %v3986
      %v4094 = vpack.c.bf16 %v4078, %v4077
      %v4095 = vpack.c.bf16 %v4090, %v4089
      %v4096 = vpack.c.bf16 %v4062, %v4021
      %v4098 = vperm.slane %v3953, 0
      %v4136 = vunpack.c.l.b16 %v3917
      %v4137 = vunpack.c.l.b16 %v3918
      %v4138 = vunpack.c.l.b16 %v3919
      %v4139 = vunpack.c.l.b16 %v3920
      %v4140 = vunpack.c.l.b16 %v3921
      %v4141 = vunpack.c.l.b16 %v3922
      %v4142 = vunpack.c.l.b16 %v3923
      %v4143 = vunpack.c.l.b16 %v3924
      %v4144 = vunpack.c.l.b16 %v3925
      %v4145 = vunpack.c.l.b16 %v3926
      %v4146 = vunpack.c.l.b16 %v3927
      %v4147 = vunpack.c.l.b16 %v3928
      %v4148 = vunpack.c.l.b16 %v3929
      %v4149 = vunpack.c.l.b16 %v3930
      %v4150 = vunpack.c.l.b16 %v3931
      %v4151 = vunpack.c.l.b16 %v3932
      %v4152 = vunpack.c.l.b16 %v3933
      %v4153 = vunpack.c.l.b16 %v3934
      %v4154 = vunpack.c.l.b16 %v3935
      %v4155 = vunpack.c.l.b16 %v3936
      %v4156 = vunpack.c.l.b16 %v3937
      %v4157 = vunpack.c.l.b16 %v3938
      %v4158 = vunpack.c.l.b16 %v3939
      %v4159 = vunpack.c.l.b16 %v3940
      %v4160 = vunpack.c.l.b16 %v3941
      %v4161 = vunpack.c.l.b16 %v3942
      %v4162 = vunpack.c.l.b16 %v3943
      %v4163 = vunpack.c.l.b16 %v3944
      %v4164 = vunpack.c.l.b16 %v3945
      %v4165 = vunpack.c.l.b16 %v3946
      %v4166 = vunpack.c.l.b16 %v3947
      %v4167 = vunpack.c.l.b16 %v3948
      %v4168 = vunpack.c.l.b16 %v3949
      %v4169 = vunpack.c.l.b16 %v3950
      %v4170 = vunpack.c.l.b16 %v3951
      %v4171 = vunpack.c.l.b16 %v3952
      %v4172 = vpack.c.b16 %v4137, %v4136
      %v4173 = vpack.c.b16 %v4139, %v4138
      %v4174 = vpack.c.b16 %v4141, %v4140
      %v4175 = vpack.c.b16 %v4143, %v4142
      %v4176 = vpack.c.b16 %v4145, %v4144
      %v4177 = vpack.c.b16 %v4147, %v4146
      %v4178 = vpack.c.b16 %v4149, %v4148
      %v4179 = vpack.c.b16 %v4151, %v4150
      %v4180 = vpack.c.b16 %v4153, %v4152
      %v4181 = vpack.c.b16 %v4155, %v4154
      %v4182 = vpack.c.b16 %v4157, %v4156
      %v4183 = vpack.c.b16 %v4159, %v4158
      %v4184 = vpack.c.b16 %v4161, %v4160
      %v4185 = vpack.c.b16 %v4163, %v4162
      %v4186 = vpack.c.b16 %v4165, %v4164
      %v4187 = vpack.c.b16 %v4167, %v4166
      %v4188 = vpack.c.b16 %v4169, %v4168
      %v4189 = vpack.c.b16 %v4171, %v4170
      %v4209 = vsel %vm2162, %v4093, 0
      %v4212 = vsel %vm2162, %v4096, 0
      %4214 = vmatpush.bf16.msra.mxu0 %v4179
      %4215 = vmatpush.bf16.msra.mxu0 %v4178
      %4216 = vmatpush.bf16.msra.mxu0 %v4177
      %4217 = vmatpush.bf16.msra.mxu0 %v4176
      %4218 = vmatpush.bf16.msra.mxu0 %v4175
      %4219 = vmatpush.bf16.msra.mxu0 %v4174
      %4220 = vmatpush.bf16.msra.mxu0 %v4173
      %4221 = vmatpush.bf16.msra.mxu0 %v4172
      %4222 = vmatmul.bf16.gmra.mxu0 %v4091
      %v4223 = vpop.f32.mrf.mxu0
      %v4224 = vadd.f32 %v4098, %v4223
      %v4225 = vpop.f32.mrf.mxu0
      %v4226 = vadd.f32 %v4098, %v4225
      %4227 = vmatmul.bf16.gmra.mxu0 %v4094
      %v4228 = vpop.f32.mrf.mxu0
      %v4229 = vadd.f32 %v4098, %v4228
      %v4230 = vpop.f32.mrf.mxu0
      %v4231 = vadd.f32 %v4098, %v4230
      %4232 = vdwg.mxu0
      %4233 = vmatpush.bf16.msra.mxu0 %v4187
      %4234 = vmatpush.bf16.msra.mxu0 %v4186
      %4235 = vmatpush.bf16.msra.mxu0 %v4185
      %4236 = vmatpush.bf16.msra.mxu0 %v4184
      %4237 = vmatpush.bf16.msra.mxu0 %v4183
      %4238 = vmatpush.bf16.msra.mxu0 %v4182
      %4239 = vmatpush.bf16.msra.mxu0 %v4181
      %4240 = vmatpush.bf16.msra.mxu0 %v4180
      %4241 = vmatmul.bf16.gmra.mxu0 %v4092
      %v4242 = vpop.f32.mrf.mxu0
      %v4243 = vadd.f32 %v4224, %v4242
      %v4244 = vpop.f32.mrf.mxu0
      %v4245 = vadd.f32 %v4226, %v4244
      %4246 = vmatmul.bf16.gmra.mxu0 %v4095
      %v4247 = vpop.f32.mrf.mxu0
      %v4248 = vadd.f32 %v4229, %v4247
      %v4249 = vpop.f32.mrf.mxu0
      %v4250 = vadd.f32 %v4231, %v4249
      %4251 = vdwg.mxu0
      %4252 = vmatpush.bf16.msra.mxu0 0
      %4253 = vmatpush.bf16.msra.mxu0 0
      %4254 = vmatpush.bf16.msra.mxu0 0
      %4255 = vmatpush.bf16.msra.mxu0 0
      %4256 = vmatpush.bf16.msra.mxu0 0
      %4257 = vmatpush.bf16.msra.mxu0 0
      %4258 = vmatpush.bf16.msra.mxu0 %v4189
      %4259 = vmatpush.bf16.msra.mxu0 %v4188
      %4260 = vmatmul.bf16.gmra.mxu0 %v4209
      %v4261 = vpop.f32.mrf.mxu0
      %v4262 = vadd.f32 %v4243, %v4261
      %v4263 = vpop.f32.mrf.mxu0
      %v4264 = vadd.f32 %v4245, %v4263
      %4265 = vmatmul.bf16.gmra.mxu0 %v4212
      %v4266 = vpop.f32.mrf.mxu0
      %v4267 = vadd.f32 %v4248, %v4266
      %v4268 = vpop.f32.mrf.mxu0
      %v4269 = vadd.f32 %v4250, %v4268
      %4270 = vdwg.mxu0
      %v4271 = vmax.f32 %v4262, 0.0
      %v4272 = vmax.f32 %v4264, 0.0
      %v4273 = vmax.f32 %v4267, 0.0
      %v4274 = vmax.f32 %v4269, 0.0
      %v4275 = vld [vmem:[%s9] sm:$0xf]
      %v4276 = vmax.f32 %v4271, %v4272
      %v4278 = vsel %vm2015, %v4275, 0
      %4280 = vmatpush.msra.mxu0 0.0
      %4281 = vmatpush.msra.mxu0 0.0
      %4282 = vmatpush.msra.mxu0 0.0
      %4283 = vmatpush.msra.mxu0 0.0
      %4284 = vmatpush.msra.mxu0 0.0
      %4285 = vmatpush.msra.mxu0 0.0
      %4286 = vmatpush.msra.mxu0 0.0
      %4287 = vmatpush.msra.mxu0 0.0
      %4288 = vmatpush.msra.mxu0 0.0
      %4289 = vmatpush.msra.mxu0 0.0
      %4290 = vmatpush.msra.mxu0 0.0
      %4291 = vmatpush.msra.mxu0 0.0
      %4292 = vmatpush.msra.mxu0 0.0
      %4293 = vmatpush.msra.mxu0 0.0
      %4294 = vmatpush.msra.mxu0 0.0
      %4295 = vmatpush.msra.mxu0 %v4276
      %4296 = vmatmul.f32.gmra.mxu0 %v4278
      %v4297 = vpop.f32.mrf.mxu0
      %v4298 = vadd.f32 0.0, %v4297
      %4299 = vdwg.mxu0
      %v4301 = vrot.slane %v4298, 2
      %v4303 = vmax.f32 %v4298, %v4301
      %vm4304 = vcmask 517120
      %4305 = vst.msk [vmem:[#allocation4] sm:$0x3] %vm4304, %v4303
      %v4306 = vmax.f32 %v4273, %v4274
      %4307 = vmatpush.msra.mxu0 0.0
      %4308 = vmatpush.msra.mxu0 0.0
      %4309 = vmatpush.msra.mxu0 0.0
      %4310 = vmatpush.msra.mxu0 0.0
      %4311 = vmatpush.msra.mxu0 0.0
      %4312 = vmatpush.msra.mxu0 0.0
      %4313 = vmatpush.msra.mxu0 0.0
      %4314 = vmatpush.msra.mxu0 0.0
      %4315 = vmatpush.msra.mxu0 0.0
      %4316 = vmatpush.msra.mxu0 0.0
      %4317 = vmatpush.msra.mxu0 0.0
      %4318 = vmatpush.msra.mxu0 0.0
      %4319 = vmatpush.msra.mxu0 0.0
      %4320 = vmatpush.msra.mxu0 0.0
      %4321 = vmatpush.msra.mxu0 0.0
      %4322 = vmatpush.msra.mxu0 %v4306
      %4323 = vmatmul.f32.gmra.mxu0 %v4278
      %v4324 = vpop.f32.mrf.mxu0
      %v4325 = vadd.f32 0.0, %v4324
      %4326 = vdwg.mxu0
      %v4328 = vrot.slane %v4325, 2
      %v4330 = vmax.f32 %v4325, %v4328
      %4331 = vst.msk [vmem:[#allocation4 + $0x2] sm:$0x3] %vm4304, %v4330
      %v4332 = vld [vmem:[#allocation4] sm:$0xf]
      %v4333 = vpack.c.bf16 %v4332, %v4332
      %v4334 = vld [vmem:[%s10] sm:$0xf]
      %v4335 = vld [vmem:[%s10 + $0x4] sm:$0xf]
      %v4336 = vld [vmem:[%s10 + $0x8] sm:$0xf]
      %v4337 = vld [vmem:[%s10 + $0xc] sm:$0xf]
      %v4338 = vld [vmem:[%s10 + $0x10] sm:$0xf]
      %v4339 = vld [vmem:[%s10 + $0x14] sm:$0xf]
      %v4340 = vld [vmem:[%s10 + $0x18] sm:$0xf]
      %v4341 = vld [vmem:[%s10 + $0x1c] sm:$0xf]
      %v4342 = vld [vmem:[%s11] sm:$0x1]
      %v4344 = vperm.slane %v4342, 0
      %v4354 = vunpack.c.l.b16 %v4334
      %v4355 = vunpack.c.l.b16 %v4335
      %v4356 = vunpack.c.l.b16 %v4336
      %v4357 = vunpack.c.l.b16 %v4337
      %v4358 = vunpack.c.l.b16 %v4338
      %v4359 = vunpack.c.l.b16 %v4339
      %v4360 = vunpack.c.l.b16 %v4340
      %v4361 = vunpack.c.l.b16 %v4341
      %v4362 = vpack.c.b16 %v4355, %v4354
      %v4363 = vpack.c.b16 %v4357, %v4356
      %v4364 = vpack.c.b16 %v4359, %v4358
      %v4365 = vpack.c.b16 %v4361, %v4360
      %v4371 = vsel %vm2358, %v4333, 0
      %4373 = vmatpush.bf16.msra.mxu0 0
      %4374 = vmatpush.bf16.msra.mxu0 0
      %4375 = vmatpush.bf16.msra.mxu0 0
      %4376 = vmatpush.bf16.msra.mxu0 0
      %4377 = vmatpush.bf16.msra.mxu0 %v4365
      %4378 = vmatpush.bf16.msra.mxu0 %v4364
      %4379 = vmatpush.bf16.msra.mxu0 %v4363
      %4380 = vmatpush.bf16.msra.mxu0 %v4362
      %4381 = vmatmul.bf16.gmra.mxu0 %v4371
      %v4382 = vpop.f32.mrf.mxu0
      %v4383 = vadd.f32 %v4344, %v4382
      %v4384 = vpop.f32.mrf.mxu0
      %4385 = vdwg.mxu0
      %v4386 = vmax.f32 %v4383, 0.0
      %v4387 = vpack.c.bf16 %v4386, %v4386
      %v4388 = vld [vmem:[%s12] sm:$0xff]
      %v4389 = vld [vmem:[%s12 + $0x8] sm:$0xff]
      %v4390 = vld [vmem:[%s12 + $0x10] sm:$0xff]
      %v4391 = vld [vmem:[%s12 + $0x18] sm:$0xff]
      %v4392 = vld [vmem:[%s12 + $0x20] sm:$0xff]
      %v4393 = vld [vmem:[%s12 + $0x28] sm:$0xff]
      %v4394 = vld [vmem:[%s12 + $0x30] sm:$0xff]
      %v4395 = vld [vmem:[%s12 + $0x38] sm:$0xff]
      %v4396 = vld [vmem:[%s12 + $0x40] sm:$0xff]
      %v4397 = vld [vmem:[%s12 + $0x48] sm:$0xff]
      %v4398 = vld [vmem:[%s12 + $0x50] sm:$0xff]
      %v4399 = vld [vmem:[%s12 + $0x58] sm:$0xff]
      %v4400 = vld [vmem:[%s12 + $0x60] sm:$0xff]
      %v4401 = vld [vmem:[%s12 + $0x68] sm:$0xff]
      %v4402 = vld [vmem:[%s12 + $0x70] sm:$0xff]
      %v4403 = vld [vmem:[%s12 + $0x78] sm:$0xff]
      %v4404 = vld [vmem:[%s13] sm:$0x3]
      %v4406 = vperm.slane %v4404, 0
      %v4407 = vperm.slane %v4404, 1
      %v4426 = vunpack.c.l.b16 %v4388
      %v4427 = vunpack.c.h.b16 %v4388
      %v4428 = vunpack.c.l.b16 %v4389
      %v4429 = vunpack.c.h.b16 %v4389
      %v4430 = vunpack.c.l.b16 %v4390
      %v4431 = vunpack.c.h.b16 %v4390
      %v4432 = vunpack.c.l.b16 %v4391
      %v4433 = vunpack.c.h.b16 %v4391
      %v4434 = vunpack.c.l.b16 %v4392
      %v4435 = vunpack.c.h.b16 %v4392
      %v4436 = vunpack.c.l.b16 %v4393
      %v4437 = vunpack.c.h.b16 %v4393
      %v4438 = vunpack.c.l.b16 %v4394
      %v4439 = vunpack.c.h.b16 %v4394
      %v4440 = vunpack.c.l.b16 %v4395
      %v4441 = vunpack.c.h.b16 %v4395
      %v4442 = vunpack.c.l.b16 %v4396
      %v4443 = vunpack.c.h.b16 %v4396
      %v4444 = vunpack.c.l.b16 %v4397
      %v4445 = vunpack.c.h.b16 %v4397
      %v4446 = vunpack.c.l.b16 %v4398
      %v4447 = vunpack.c.h.b16 %v4398
      %v4448 = vunpack.c.l.b16 %v4399
      %v4449 = vunpack.c.h.b16 %v4399
      %v4450 = vunpack.c.l.b16 %v4400
      %v4451 = vunpack.c.h.b16 %v4400
      %v4452 = vunpack.c.l.b16 %v4401
      %v4453 = vunpack.c.h.b16 %v4401
      %v4454 = vunpack.c.l.b16 %v4402
      %v4455 = vunpack.c.h.b16 %v4402
      %v4456 = vunpack.c.l.b16 %v4403
      %v4457 = vunpack.c.h.b16 %v4403
      %v4458 = vpack.c.b16 %v4428, %v4426
      %v4459 = vpack.c.b16 %v4429, %v4427
      %v4460 = vpack.c.b16 %v4432, %v4430
      %v4461 = vpack.c.b16 %v4433, %v4431
      %v4462 = vpack.c.b16 %v4436, %v4434
      %v4463 = vpack.c.b16 %v4437, %v4435
      %v4464 = vpack.c.b16 %v4440, %v4438
      %v4465 = vpack.c.b16 %v4441, %v4439
      %v4466 = vpack.c.b16 %v4444, %v4442
      %v4467 = vpack.c.b16 %v4445, %v4443
      %v4468 = vpack.c.b16 %v4448, %v4446
      %v4469 = vpack.c.b16 %v4449, %v4447
      %v4470 = vpack.c.b16 %v4452, %v4450
      %v4471 = vpack.c.b16 %v4453, %v4451
      %v4472 = vpack.c.b16 %v4456, %v4454
      %v4473 = vpack.c.b16 %v4457, %v4455
      %4490 = vmatpush.bf16.msra.mxu0 %v4472
      %4491 = vmatpush.bf16.msra.mxu0 %v4470
      %4492 = vmatpush.bf16.msra.mxu0 %v4468
      %4493 = vmatpush.bf16.msra.mxu0 %v4466
      %4494 = vmatpush.bf16.msra.mxu0 %v4464
      %4495 = vmatpush.bf16.msra.mxu0 %v4462
      %4496 = vmatpush.bf16.msra.mxu0 %v4460
      %4497 = vmatpush.bf16.msra.mxu0 %v4458
      %4498 = vmatmul.bf16.gmra.mxu0 %v4387
      %v4499 = vpop.f32.mrf.mxu0
      %v4500 = vadd.f32 %v4406, %v4499
      %v4501 = vpop.f32.mrf.mxu0
      %4502 = vdwg.mxu0
      %4503 = vmatpush.bf16.msra.mxu0 %v4473
      %4504 = vmatpush.bf16.msra.mxu0 %v4471
      %4505 = vmatpush.bf16.msra.mxu0 %v4469
      %4506 = vmatpush.bf16.msra.mxu0 %v4467
      %4507 = vmatpush.bf16.msra.mxu0 %v4465
      %4508 = vmatpush.bf16.msra.mxu0 %v4463
      %4509 = vmatpush.bf16.msra.mxu0 %v4461
      %4510 = vmatpush.bf16.msra.mxu0 %v4459
      %4511 = vmatmul.bf16.gmra.mxu0 %v4387
      %v4512 = vpop.f32.mrf.mxu0
      %v4513 = vadd.f32 %v4407, %v4512
      %v4514 = vpop.f32.mrf.mxu0
      %4515 = vdwg.mxu0
      %v4516 = vmax.f32 %v4500, 0.0
      %v4517 = vmax.f32 %v4513, 0.0
      %v4518 = vpack.c.bf16 %v4516, %v4516
      %v4519 = vpack.c.bf16 %v4517, %v4517
      %v4520 = vld [vmem:[%s14] sm:$0xff]
      %v4521 = vld [vmem:[%s14 + $0x8] sm:$0xff]
      %v4522 = vld [vmem:[%s14 + $0x10] sm:$0xff]
      %v4523 = vld [vmem:[%s14 + $0x18] sm:$0xff]
      %v4524 = vld [vmem:[%s14 + $0x20] sm:$0xff]
      %v4525 = vld [vmem:[%s14 + $0x28] sm:$0xff]
      %v4526 = vld [vmem:[%s14 + $0x30] sm:$0xff]
      %v4527 = vld [vmem:[%s14 + $0x38] sm:$0xff]
      %v4528 = vld [vmem:[%s14 + $0x40] sm:$0xff]
      %v4529 = vld [vmem:[%s14 + $0x48] sm:$0xff]
      %v4530 = vld [vmem:[%s14 + $0x50] sm:$0xff]
      %v4531 = vld [vmem:[%s14 + $0x58] sm:$0xff]
      %v4532 = vld [vmem:[%s14 + $0x60] sm:$0xff]
      %v4533 = vld [vmem:[%s14 + $0x68] sm:$0xff]
      %v4534 = vld [vmem:[%s14 + $0x70] sm:$0xff]
      %v4535 = vld [vmem:[%s14 + $0x78] sm:$0xff]
      %v4536 = vld [vmem:[%s14 + $0x80] sm:$0xff]
      %v4537 = vld [vmem:[%s14 + $0x88] sm:$0xff]
      %v4538 = vld [vmem:[%s14 + $0x90] sm:$0xff]
      %v4539 = vld [vmem:[%s14 + $0x98] sm:$0xff]
      %v4540 = vld [vmem:[%s14 + $0xa0] sm:$0xff]
      %v4541 = vld [vmem:[%s14 + $0xa8] sm:$0xff]
      %v4542 = vld [vmem:[%s14 + $0xb0] sm:$0xff]
      %v4543 = vld [vmem:[%s14 + $0xb8] sm:$0xff]
      %v4544 = vld [vmem:[%s14 + $0xc0] sm:$0xff]
      %v4545 = vld [vmem:[%s14 + $0xc8] sm:$0xff]
      %v4546 = vld [vmem:[%s14 + $0xd0] sm:$0xff]
      %v4547 = vld [vmem:[%s14 + $0xd8] sm:$0xff]
      %v4548 = vld [vmem:[%s14 + $0xe0] sm:$0xff]
      %v4549 = vld [vmem:[%s14 + $0xe8] sm:$0xff]
      %v4550 = vld [vmem:[%s14 + $0xf0] sm:$0xff]
      %v4551 = vld [vmem:[%s14 + $0xf8] sm:$0xff]
      %v4552 = vld [vmem:[%s15] sm:$0x3]
      %v4554 = vperm.slane %v4552, 0
      %v4555 = vperm.slane %v4552, 1
      %v4590 = vunpack.c.l.b16 %v4520
      %v4591 = vunpack.c.h.b16 %v4520
      %v4592 = vunpack.c.l.b16 %v4521
      %v4593 = vunpack.c.h.b16 %v4521
      %v4594 = vunpack.c.l.b16 %v4522
      %v4595 = vunpack.c.h.b16 %v4522
      %v4596 = vunpack.c.l.b16 %v4523
      %v4597 = vunpack.c.h.b16 %v4523
      %v4598 = vunpack.c.l.b16 %v4524
      %v4599 = vunpack.c.h.b16 %v4524
      %v4600 = vunpack.c.l.b16 %v4525
      %v4601 = vunpack.c.h.b16 %v4525
      %v4602 = vunpack.c.l.b16 %v4526
      %v4603 = vunpack.c.h.b16 %v4526
      %v4604 = vunpack.c.l.b16 %v4527
      %v4605 = vunpack.c.h.b16 %v4527
      %v4606 = vunpack.c.l.b16 %v4528
      %v4607 = vunpack.c.h.b16 %v4528
      %v4608 = vunpack.c.l.b16 %v4529
      %v4609 = vunpack.c.h.b16 %v4529
      %v4610 = vunpack.c.l.b16 %v4530
      %v4611 = vunpack.c.h.b16 %v4530
      %v4612 = vunpack.c.l.b16 %v4531
      %v4613 = vunpack.c.h.b16 %v4531
      %v4614 = vunpack.c.l.b16 %v4532
      %v4615 = vunpack.c.h.b16 %v4532
      %v4616 = vunpack.c.l.b16 %v4533
      %v4617 = vunpack.c.h.b16 %v4533
      %v4618 = vunpack.c.l.b16 %v4534
      %v4619 = vunpack.c.h.b16 %v4534
      %v4620 = vunpack.c.l.b16 %v4535
      %v4621 = vunpack.c.h.b16 %v4535
      %v4622 = vunpack.c.l.b16 %v4536
      %v4623 = vunpack.c.h.b16 %v4536
      %v4624 = vunpack.c.l.b16 %v4537
      %v4625 = vunpack.c.h.b16 %v4537
      %v4626 = vunpack.c.l.b16 %v4538
      %v4627 = vunpack.c.h.b16 %v4538
      %v4628 = vunpack.c.l.b16 %v4539
      %v4629 = vunpack.c.h.b16 %v4539
      %v4630 = vunpack.c.l.b16 %v4540
      %v4631 = vunpack.c.h.b16 %v4540
      %v4632 = vunpack.c.l.b16 %v4541
      %v4633 = vunpack.c.h.b16 %v4541
      %v4634 = vunpack.c.l.b16 %v4542
      %v4635 = vunpack.c.h.b16 %v4542
      %v4636 = vunpack.c.l.b16 %v4543
      %v4637 = vunpack.c.h.b16 %v4543
      %v4638 = vunpack.c.l.b16 %v4544
      %v4639 = vunpack.c.h.b16 %v4544
      %v4640 = vunpack.c.l.b16 %v4545
      %v4641 = vunpack.c.h.b16 %v4545
      %v4642 = vunpack.c.l.b16 %v4546
      %v4643 = vunpack.c.h.b16 %v4546
      %v4644 = vunpack.c.l.b16 %v4547
      %v4645 = vunpack.c.h.b16 %v4547
      %v4646 = vunpack.c.l.b16 %v4548
      %v4647 = vunpack.c.h.b16 %v4548
      %v4648 = vunpack.c.l.b16 %v4549
      %v4649 = vunpack.c.h.b16 %v4549
      %v4650 = vunpack.c.l.b16 %v4550
      %v4651 = vunpack.c.h.b16 %v4550
      %v4652 = vunpack.c.l.b16 %v4551
      %v4653 = vunpack.c.h.b16 %v4551
      %v4654 = vpack.c.b16 %v4592, %v4590
      %v4655 = vpack.c.b16 %v4593, %v4591
      %v4656 = vpack.c.b16 %v4596, %v4594
      %v4657 = vpack.c.b16 %v4597, %v4595
      %v4658 = vpack.c.b16 %v4600, %v4598
      %v4659 = vpack.c.b16 %v4601, %v4599
      %v4660 = vpack.c.b16 %v4604, %v4602
      %v4661 = vpack.c.b16 %v4605, %v4603
      %v4662 = vpack.c.b16 %v4608, %v4606
      %v4663 = vpack.c.b16 %v4609, %v4607
      %v4664 = vpack.c.b16 %v4612, %v4610
      %v4665 = vpack.c.b16 %v4613, %v4611
      %v4666 = vpack.c.b16 %v4616, %v4614
      %v4667 = vpack.c.b16 %v4617, %v4615
      %v4668 = vpack.c.b16 %v4620, %v4618
      %v4669 = vpack.c.b16 %v4621, %v4619
      %v4670 = vpack.c.b16 %v4624, %v4622
      %v4671 = vpack.c.b16 %v4625, %v4623
      %v4672 = vpack.c.b16 %v4628, %v4626
      %v4673 = vpack.c.b16 %v4629, %v4627
      %v4674 = vpack.c.b16 %v4632, %v4630
      %v4675 = vpack.c.b16 %v4633, %v4631
      %v4676 = vpack.c.b16 %v4636, %v4634
      %v4677 = vpack.c.b16 %v4637, %v4635
      %v4678 = vpack.c.b16 %v4640, %v4638
      %v4679 = vpack.c.b16 %v4641, %v4639
      %v4680 = vpack.c.b16 %v4644, %v4642
      %v4681 = vpack.c.b16 %v4645, %v4643
      %v4682 = vpack.c.b16 %v4648, %v4646
      %v4683 = vpack.c.b16 %v4649, %v4647
      %v4684 = vpack.c.b16 %v4652, %v4650
      %v4685 = vpack.c.b16 %v4653, %v4651
      %4718 = vmatpush.bf16.msra.mxu0 %v4668
      %4719 = vmatpush.bf16.msra.mxu0 %v4666
      %4720 = vmatpush.bf16.msra.mxu0 %v4664
      %4721 = vmatpush.bf16.msra.mxu0 %v4662
      %4722 = vmatpush.bf16.msra.mxu0 %v4660
      %4723 = vmatpush.bf16.msra.mxu0 %v4658
      %4724 = vmatpush.bf16.msra.mxu0 %v4656
      %4725 = vmatpush.bf16.msra.mxu0 %v4654
      %4726 = vmatmul.bf16.gmra.mxu0 %v4518
      %v4727 = vpop.f32.mrf.mxu0
      %v4728 = vadd.f32 %v4554, %v4727
      %v4729 = vpop.f32.mrf.mxu0
      %4730 = vdwg.mxu0
      %4731 = vmatpush.bf16.msra.mxu0 %v4684
      %4732 = vmatpush.bf16.msra.mxu0 %v4682
      %4733 = vmatpush.bf16.msra.mxu0 %v4680
      %4734 = vmatpush.bf16.msra.mxu0 %v4678
      %4735 = vmatpush.bf16.msra.mxu0 %v4676
      %4736 = vmatpush.bf16.msra.mxu0 %v4674
      %4737 = vmatpush.bf16.msra.mxu0 %v4672
      %4738 = vmatpush.bf16.msra.mxu0 %v4670
      %4739 = vmatmul.bf16.gmra.mxu0 %v4519
      %v4740 = vpop.f32.mrf.mxu0
      %v4741 = vadd.f32 %v4728, %v4740
      %v4742 = vpop.f32.mrf.mxu0
      %4743 = vdwg.mxu0
      %4744 = vmatpush.bf16.msra.mxu0 %v4669
      %4745 = vmatpush.bf16.msra.mxu0 %v4667
      %4746 = vmatpush.bf16.msra.mxu0 %v4665
      %4747 = vmatpush.bf16.msra.mxu0 %v4663
      %4748 = vmatpush.bf16.msra.mxu0 %v4661
      %4749 = vmatpush.bf16.msra.mxu0 %v4659
      %4750 = vmatpush.bf16.msra.mxu0 %v4657
      %4751 = vmatpush.bf16.msra.mxu0 %v4655
      %4752 = vmatmul.bf16.gmra.mxu0 %v4518
      %v4753 = vpop.f32.mrf.mxu0
      %v4754 = vadd.f32 %v4555, %v4753
      %v4755 = vpop.f32.mrf.mxu0
      %4756 = vdwg.mxu0
      %4757 = vmatpush.bf16.msra.mxu0 %v4685
      %4758 = vmatpush.bf16.msra.mxu0 %v4683
      %4759 = vmatpush.bf16.msra.mxu0 %v4681
      %4760 = vmatpush.bf16.msra.mxu0 %v4679
      %4761 = vmatpush.bf16.msra.mxu0 %v4677
      %4762 = vmatpush.bf16.msra.mxu0 %v4675
      %4763 = vmatpush.bf16.msra.mxu0 %v4673
      %4764 = vmatpush.bf16.msra.mxu0 %v4671
      %4765 = vmatmul.bf16.gmra.mxu0 %v4519
      %v4766 = vpop.f32.mrf.mxu0
      %v4767 = vadd.f32 %v4754, %v4766
      %v4768 = vpop.f32.mrf.mxu0
      %4769 = vdwg.mxu0
      %v4772 = vrot.slane %v4767, 4
      %v4773 = vsel %vm2534, %v4741, %v4772
      %4775 = vst [vmem:[%s521] sm:$0xff] %v4773
      %p4776 = scmp.lt.s32.totalorder %s27, 1
      %s4777 = scalar_select %p4776, %s27, 1
      %s4778 = smul.addr %s4777, 2
      %s4779 = smul.addr %s4778, 4
      %s4780 = scalar_lea.vmem %s16, %s4779
      // Predicated region
      $region85: #{convnet_forward.1} parent=83 // pred_check
        %p4781 = pneg %p386
      $region86: #{convnet_forward.1} parent=83 // pred_check_branch
        %4783 = sbr.rel (%p4781) target = $region88
      $region87: #{convnet_forward.1} parent=83 // pred_region
        _
      $region88: #{convnet_forward.1} parent=83 // pred_fallthru
        _
    $region84: #{convnet_forward.1} parent=5 // pred_fallthru
      _
    %p4784 = scmp.le.s32.totalorder 2, %s22
    // Predicated region
    $region89: #{convnet_forward.1} parent=5 // pred_check
      %p4785 = pneg %p4784
    $region90: #{convnet_forward.1} parent=5 // pred_check_branch
      %4787 = sbr.rel (%p4785) target = $region92
    $region91: #{convnet_forward.1} parent=5 // pred_region
      %s4788 = ssub.s32 %s22, 2
      // Predicated region
      $region93: #{convnet_forward.1} parent=91 // pred_check
        %p4789 = pneg %p392
      $region94: #{convnet_forward.1} parent=91 // pred_check_branch
        %4791 = sbr.rel (%p4789) target = $region96
      $region95: #{convnet_forward.1} parent=91 // pred_region
        %p4792 = scmp.lt.s32.totalorder %s28, 1
        %s4793 = scalar_select %p4792, %s28, 1
        %s4794 = smul.addr %s4793, 2
        %s4795 = smul.addr %s4794, 4
        %s4796 = scalar_lea.vmem %s16, %s4795
      $region96: #{convnet_forward.1} parent=91 // pred_fallthru
        _
    $region92: #{convnet_forward.1} parent=5 // pred_fallthru
      _
  $region6: #{convnet_forward.1} parent=0 // loop_footer
    %s26 = sadd.s32 1, %s22
  $region7: #{convnet_forward.1} parent=0 // loop_footer_branch
    %21 = sbr.rel target = $region3
  $region8: #{convnet_forward.1} parent=0 // loop_exit
    _

</llo_original>
